<compile_context>
chip_gen: v6e
topology: v6e:2x2x1
jax: 0.10.0
libtpu: 0.0.40
codegen_flags: <defaults>
</compile_context>

<pallas_src>
import jax
import jax.numpy as jnp
from jax.experimental import pallas as pl
from jax.experimental.pallas import tpu as pltpu

IN_DIM = 78
MU_DIM = 3
OUT_DIM = 9
PAD = 128                                              # lane-dense width
ZX_DIMS = [(78, 58), (58, 38), (38, 18), (18, 6)]      # l_z_x
YXZ_DIMS = [(81, 61), (61, 41), (41, 21), (21, 9)]     # l_y_xz  (81 = 78 + 3)


def _round_up(n, m):
    return ((n + m - 1) // m) * m


def _softplus(x):
    # numerically-stable softplus in f32 (safe on v5e: no bf16 VPU/EUP there)
    return jnp.maximum(x, 0.0) + jnp.log1p(jnp.exp(-jnp.abs(x)))


def cvae3_kernel(x_ref,
                 wx0,            # [78, 256] = [ zw0_pad | ywx0_pad ]  (N-fused)
                 zb0, zw1, zb1, zw2, zb2,
                 wfuse,          # [128,128] = pad(zw3[:, :3] @ ywm0)  (K-fused)
                 yb0,            # [1, 128]  = pad(c0 + zb3[:, :3] @ ywm0)
                 yw1, yb1, yw2, yb2, yw3, yb3,
                 out_ref):
    f32 = jnp.float32
    bf16 = jnp.bfloat16

    x = x_ref[...]                                                    # [TB, 78] bf16

    # One N=256 MXU pass covers the z-branch layer 0 AND the x-part of the
    # first y-branch layer (fills the 256-wide MXU on v6e/v7x).
    xh = jnp.dot(x, wx0[...], preferred_element_type=f32)             # [TB, 256]
    gx = xh[:, PAD:]                                                  # x @ ywx0 (pre-bias)

    # ---- l_z_x: (Linear+ReLU) x3; the last 18->6 Linear is fused into wfuse ----
    h = jnp.maximum(xh[:, :PAD] + zb0[...], 0.0)
    h = jnp.maximum(jnp.dot(h.astype(bf16), zw1[...], preferred_element_type=f32) + zb1[...], 0.0)
    h = jnp.maximum(jnp.dot(h.astype(bf16), zw2[...], preferred_element_type=f32) + zb2[...], 0.0)

    # ---- l_y_xz layer 0: x@ywx0 + mu@ywm0 + c0, with the linear-linear chain
    # (zw3 -> take mu -> ywm0) collapsed into one matrix and zb3@ywm0 folded
    # into yb0 ahead of time.
    g = gx + jnp.dot(h.astype(bf16), wfuse[...], preferred_element_type=f32) + yb0[...]
    g = _softplus(g)
    g = _softplus(jnp.dot(g.astype(bf16), yw1[...], preferred_element_type=f32) + yb1[...])
    g = _softplus(jnp.dot(g.astype(bf16), yw2[...], preferred_element_type=f32) + yb2[...])
    logits = jnp.dot(g.astype(bf16), yw3[...], preferred_element_type=f32) + yb3[...]

    # sigmoid as a single EUP op: sigmoid(z) = 0.5 * (tanh(z/2) + 1)
    out_ref[...] = (0.5 * (jnp.tanh(0.5 * logits) + 1.0)).astype(out_ref.dtype)


def init_params(key):
    """Deterministic PyTorch-style (kaiming-uniform-ish) init for all Linears."""
    params = []
    for (fan_in, fan_out) in ZX_DIMS + YXZ_DIMS:
        key, kw, kb = jax.random.split(key, 3)
        bound = 1.0 / jnp.sqrt(jnp.float32(fan_in))
        w = jax.random.uniform(kw, (fan_in, fan_out), jnp.float32, -bound, bound)
        b = jax.random.uniform(kb, (1, fan_out), jnp.float32, -bound, bound)
        params.append((w, b))
    return params  # 8 (w, b) pairs: 4 for l_z_x, 4 for l_y_xz


def _pad2d(a, rows, cols, dtype):
    r, c = a.shape
    return jnp.pad(a, ((0, rows - r), (0, cols - c))).astype(dtype)


def _prepare_kernel_params(params):
    """Build the fused / lane-dense [*,128]-padded bf16 weight slabs and f32 biases.

    Every layer's padded K rows are zero, so the junk values living in padded
    output lanes (0 after ReLU, ln2 after Softplus, 0.5 after Sigmoid) never
    contribute to the real lanes.
    """
    bf16, f32 = jnp.bfloat16, jnp.float32
    (w0, b0), (w1, b1), (w2, b2), (w3, b3) = params[:4]
    (v0, c0), (v1, c1), (v2, c2), (v3, c3) = params[4:]

    # N-fusion: [zw0 | ywx0] -> a single [78, 256] MXU operand.
    wx0 = jnp.concatenate(
        [_pad2d(w0, IN_DIM, PAD, f32), _pad2d(v0[:IN_DIM], IN_DIM, PAD, f32)],
        axis=1).astype(bf16)

    # K-fusion: zw3 -> take mu -> ywm0 collapses to one matrix (f32 product,
    # then a single bf16 cast); the bias contribution folds into yb0.
    w_mu = w3[:, :MU_DIM] @ v0[IN_DIM:]          # [18, 61] f32
    b_mu = b3[:, :MU_DIM] @ v0[IN_DIM:]          # [1, 61]  f32
    yb0_fused = c0 + b_mu

    flat = [
        wx0,
        _pad2d(b0, 1, PAD, f32),
        _pad2d(w1, PAD, PAD, bf16), _pad2d(b1, 1, PAD, f32),
        _pad2d(w2, PAD, PAD, bf16), _pad2d(b2, 1, PAD, f32),
        _pad2d(w_mu, PAD, PAD, bf16),
        _pad2d(yb0_fused, 1, PAD, f32),
        _pad2d(v1, PAD, PAD, bf16), _pad2d(c1, 1, PAD, f32),
        _pad2d(v2, PAD, PAD, bf16), _pad2d(c2, 1, PAD, f32),
        _pad2d(v3, PAD, PAD, bf16), _pad2d(c3, 1, PAD, f32),
    ]
    return flat


def cvae3_forward(x, params, *, max_tb=2048):
    B = x.shape[0]

    # Batch tile: multiple of 16 (bf16 sublane packing), as large as max_tb,
    # but keep >= 2 "parallel" grid steps when the batch allows so both v7x
    # TensorCores get work (megacore sharding of the "parallel" axis).
    TB = min(max_tb, _round_up(B, 16))
    if _round_up(B, TB) // TB < 2 and B > 16:
        TB = _round_up(pl.cdiv(B, 2), 16)
    Bp = _round_up(B, TB)

    xb = x.astype(jnp.bfloat16)
    if Bp != B:
        xb = jnp.pad(xb, ((0, Bp - B), (0, 0)))

    flat = _prepare_kernel_params(params)

    # x / out are batch-tiled; weights & biases use constant index_maps so they
    # stay VMEM-resident across all grid steps.
    in_specs = [pl.BlockSpec((TB, IN_DIM), lambda i: (i, 0))]
    in_specs += [pl.BlockSpec(a.shape, lambda i, _nd=a.ndim: (0,) * _nd) for a in flat]
    out_spec = pl.BlockSpec((TB, PAD), lambda i: (i, 0))

    param_bytes = sum(int(a.size) * a.dtype.itemsize for a in flat)
    cost = pl.CostEstimate(
        # one [TB,78]x[78,256] pass + six [TB,128]x[128,128] passes
        flops=2 * Bp * (IN_DIM * 2 * PAD + 6 * PAD * PAD),
        transcendentals=Bp * PAD * 7,        # 3 softplus x (exp + log1p) + 1 tanh
        bytes_accessed=int(xb.size) * 2 + Bp * PAD * 2 + param_bytes,
    )

    out = pl.pallas_call(
        cvae3_kernel,
        out_shape=jax.ShapeDtypeStruct((Bp, PAD), jnp.bfloat16),
        grid=(Bp // TB,),
        in_specs=in_specs,
        out_specs=out_spec,
        compiler_params=pltpu.CompilerParams(
            dimension_semantics=("parallel",)),
        cost_estimate=cost,
    )(xb, *flat)

    # TODO(synk): if the downstream consumer can accept the padded lane-dense
    # [Bp, 128] bf16 slab, skip this slice (it re-reads the slab just to emit
    # 9 columns per row) and fold the narrowing into the consumer's first op.
    return out[:B, :OUT_DIM]


def cvae3_reference(x, params):
    """Pure-JAX reference matching the PyTorch forward, with the same bf16
    matmul / f32-accumulate numerics family as the kernel (no fusions)."""
    bf16, f32 = jnp.bfloat16, jnp.float32

    def mm(a, w):
        return jnp.dot(a.astype(bf16), w.astype(bf16), preferred_element_type=f32)

    (w0, b0), (w1, b1), (w2, b2), (w3, b3) = params[:4]
    h = jnp.maximum(mm(x, w0) + b0, 0.0)
    h = jnp.maximum(mm(h, w1) + b1, 0.0)
    h = jnp.maximum(mm(h, w2) + b2, 0.0)
    h = mm(h, w3) + b3
    mu = h[:, :MU_DIM]
    xz = jnp.concatenate([x, mu], axis=1)
    (v0, c0), (v1, c1), (v2, c2), (v3, c3) = params[4:]
    g = jax.nn.softplus(mm(xz, v0) + c0)
    g = jax.nn.softplus(mm(g, v1) + c1)
    g = jax.nn.softplus(mm(g, v2) + c2)
    g = jax.nn.sigmoid(mm(g, v3) + c3)
    return g


if __name__ == "__main__":
    key = jax.random.PRNGKey(0)
    kx, kp = jax.random.split(key)

    # small but non-trivial batch: exercises the >=2-step "parallel" grid
    # (TB=144, Bp=288) and the tail-padding path.
    B = 257
    x = jax.random.normal(kx, (B, IN_DIM), jnp.float32)
    params = init_params(kp)

    out = cvae3_forward(x, params)
    out = jax.block_until_ready(out)

    ref = cvae3_reference(x, params)
    assert out.shape == (B, OUT_DIM)
    # tolerance covers bf16 matmuls, the zw3/ywm0 fusion reassociation, and the
    # bf16 output cast (sigmoid outputs, so abs error <= ~2e-3 from the cast)
    assert jnp.allclose(out.astype(jnp.float32), ref, atol=1e-2, rtol=1e-2), \
        "mismatch vs JAX reference"

    print("KERNEL_OK")
</pallas_src>

<mosaic_0001>
module attributes {stable_mosaic.version = 11 : i64} {
  func.func @cvae3_kernel(%arg0: i32, %arg1: memref<144x78xbf16, #tpu.memory_space<vmem>>, %arg2: memref<78x256xbf16, #tpu.memory_space<vmem>>, %arg3: memref<1x128xf32, #tpu.memory_space<vmem>>, %arg4: memref<128x128xbf16, #tpu.memory_space<vmem>>, %arg5: memref<1x128xf32, #tpu.memory_space<vmem>>, %arg6: memref<128x128xbf16, #tpu.memory_space<vmem>>, %arg7: memref<1x128xf32, #tpu.memory_space<vmem>>, %arg8: memref<128x128xbf16, #tpu.memory_space<vmem>>, %arg9: memref<1x128xf32, #tpu.memory_space<vmem>>, %arg10: memref<128x128xbf16, #tpu.memory_space<vmem>>, %arg11: memref<1x128xf32, #tpu.memory_space<vmem>>, %arg12: memref<128x128xbf16, #tpu.memory_space<vmem>>, %arg13: memref<1x128xf32, #tpu.memory_space<vmem>>, %arg14: memref<128x128xbf16, #tpu.memory_space<vmem>>, %arg15: memref<1x128xf32, #tpu.memory_space<vmem>>, %arg16: memref<144x128xbf16, #tpu.memory_space<vmem>>) attributes {dimension_semantics = [#tpu.dimension_semantics<parallel>], iteration_bounds = array<i64: 2>, scalar_prefetch = 0 : i64, scratch_operands = 0 : i64, tpu.core_type = #tpu.core_type<tc>, window_params = [{transform_indices = @transform_0, window_bounds = array<i64: 144, 78>}, {pipeline_mode = #tpu.pipeline_mode<synchronous>, transform_indices = @transform_1, window_bounds = array<i64: 78, 256>}, {pipeline_mode = #tpu.pipeline_mode<synchronous>, transform_indices = @transform_2, window_bounds = array<i64: 1, 128>}, {pipeline_mode = #tpu.pipeline_mode<synchronous>, transform_indices = @transform_3, window_bounds = array<i64: 128, 128>}, {pipeline_mode = #tpu.pipeline_mode<synchronous>, transform_indices = @transform_4, window_bounds = array<i64: 1, 128>}, {pipeline_mode = #tpu.pipeline_mode<synchronous>, transform_indices = @transform_5, window_bounds = array<i64: 128, 128>}, {pipeline_mode = #tpu.pipeline_mode<synchronous>, transform_indices = @transform_6, window_bounds = array<i64: 1, 128>}, {pipeline_mode = #tpu.pipeline_mode<synchronous>, transform_indices = @transform_7, window_bounds = array<i64: 128, 128>}, {pipeline_mode = #tpu.pipeline_mode<synchronous>, transform_indices = @transform_8, window_bounds = array<i64: 1, 128>}, {pipeline_mode = #tpu.pipeline_mode<synchronous>, transform_indices = @transform_9, window_bounds = array<i64: 128, 128>}, {pipeline_mode = #tpu.pipeline_mode<synchronous>, transform_indices = @transform_10, window_bounds = array<i64: 1, 128>}, {pipeline_mode = #tpu.pipeline_mode<synchronous>, transform_indices = @transform_11, window_bounds = array<i64: 128, 128>}, {pipeline_mode = #tpu.pipeline_mode<synchronous>, transform_indices = @transform_12, window_bounds = array<i64: 1, 128>}, {pipeline_mode = #tpu.pipeline_mode<synchronous>, transform_indices = @transform_13, window_bounds = array<i64: 128, 128>}, {pipeline_mode = #tpu.pipeline_mode<synchronous>, transform_indices = @transform_14, window_bounds = array<i64: 1, 128>}, {transform_indices = @transform_15, window_bounds = array<i64: 144, 128>}]} {
    %c0 = arith.constant 0 : index
    %c0_0 = arith.constant 0 : index
    %0 = vector.load %arg1[%c0, %c0_0] : memref<144x78xbf16, #tpu.memory_space<vmem>>, vector<144x78xbf16>
    %c0_1 = arith.constant 0 : index
    %c0_2 = arith.constant 0 : index
    %1 = vector.load %arg2[%c0_1, %c0_2] : memref<78x256xbf16, #tpu.memory_space<vmem>>, vector<78x256xbf16>
    %cst = arith.constant dense<0.000000e+00> : vector<144x256xf32>
    %2 = tpu.matmul %0, %1, %cst {dimension_numbers = #tpu.dot_dimension_numbers<[1], [0], [0], [1], [0, 0, 1, 1], [], []>} : vector<144x78xbf16>, vector<78x256xbf16>, vector<144x256xf32> -> vector<144x256xf32>
    %3 = vector.extract_strided_slice %2 {offsets = [0, 128], sizes = [144, 128], strides = [1, 1]} : vector<144x256xf32> to vector<144x128xf32>
    %4 = vector.extract_strided_slice %2 {offsets = [0, 0], sizes = [144, 128], strides = [1, 1]} : vector<144x256xf32> to vector<144x128xf32>
    %c0_3 = arith.constant 0 : index
    %c0_4 = arith.constant 0 : index
    %5 = vector.load %arg3[%c0_3, %c0_4] : memref<1x128xf32, #tpu.memory_space<vmem>>, vector<1x128xf32>
    %6 = vector.broadcast %5 : vector<1x128xf32> to vector<144x128xf32>
    %7 = arith.addf %4, %6 : vector<144x128xf32>
    %cst_5 = arith.constant 0.000000e+00 : f32
    %8 = vector.broadcast %cst_5 : f32 to vector<144x128xf32>
    %9 = arith.maximumf %7, %8 : vector<144x128xf32>
    %10 = arith.truncf %9 : vector<144x128xf32> to vector<144x128xbf16>
    %c0_6 = arith.constant 0 : index
    %c0_7 = arith.constant 0 : index
    %11 = vector.load %arg4[%c0_6, %c0_7] : memref<128x128xbf16, #tpu.memory_space<vmem>>, vector<128x128xbf16>
    %cst_8 = arith.constant dense<0.000000e+00> : vector<144x128xf32>
    %12 = tpu.matmul %10, %11, %cst_8 {dimension_numbers = #tpu.dot_dimension_numbers<[1], [0], [0], [1], [0, 0, 1, 1], [], []>} : vector<144x128xbf16>, vector<128x128xbf16>, vector<144x128xf32> -> vector<144x128xf32>
    %c0_9 = arith.constant 0 : index
    %c0_10 = arith.constant 0 : index
    %13 = vector.load %arg5[%c0_9, %c0_10] : memref<1x128xf32, #tpu.memory_space<vmem>>, vector<1x128xf32>
    %14 = vector.broadcast %13 : vector<1x128xf32> to vector<144x128xf32>
    %15 = arith.addf %12, %14 : vector<144x128xf32>
    %cst_11 = arith.constant 0.000000e+00 : f32
    %16 = vector.broadcast %cst_11 : f32 to vector<144x128xf32>
    %17 = arith.maximumf %15, %16 : vector<144x128xf32>
    %18 = arith.truncf %17 : vector<144x128xf32> to vector<144x128xbf16>
    %c0_12 = arith.constant 0 : index
    %c0_13 = arith.constant 0 : index
    %19 = vector.load %arg6[%c0_12, %c0_13] : memref<128x128xbf16, #tpu.memory_space<vmem>>, vector<128x128xbf16>
    %cst_14 = arith.constant dense<0.000000e+00> : vector<144x128xf32>
    %20 = tpu.matmul %18, %19, %cst_14 {dimension_numbers = #tpu.dot_dimension_numbers<[1], [0], [0], [1], [0, 0, 1, 1], [], []>} : vector<144x128xbf16>, vector<128x128xbf16>, vector<144x128xf32> -> vector<144x128xf32>
    %c0_15 = arith.constant 0 : index
    %c0_16 = arith.constant 0 : index
    %21 = vector.load %arg7[%c0_15, %c0_16] : memref<1x128xf32, #tpu.memory_space<vmem>>, vector<1x128xf32>
    %22 = vector.broadcast %21 : vector<1x128xf32> to vector<144x128xf32>
    %23 = arith.addf %20, %22 : vector<144x128xf32>
    %cst_17 = arith.constant 0.000000e+00 : f32
    %24 = vector.broadcast %cst_17 : f32 to vector<144x128xf32>
    %25 = arith.maximumf %23, %24 : vector<144x128xf32>
    %26 = arith.truncf %25 : vector<144x128xf32> to vector<144x128xbf16>
    %c0_18 = arith.constant 0 : index
    %c0_19 = arith.constant 0 : index
    %27 = vector.load %arg8[%c0_18, %c0_19] : memref<128x128xbf16, #tpu.memory_space<vmem>>, vector<128x128xbf16>
    %cst_20 = arith.constant dense<0.000000e+00> : vector<144x128xf32>
    %28 = tpu.matmul %26, %27, %cst_20 {dimension_numbers = #tpu.dot_dimension_numbers<[1], [0], [0], [1], [0, 0, 1, 1], [], []>} : vector<144x128xbf16>, vector<128x128xbf16>, vector<144x128xf32> -> vector<144x128xf32>
    %29 = arith.addf %3, %28 : vector<144x128xf32>
    %c0_21 = arith.constant 0 : index
    %c0_22 = arith.constant 0 : index
    %30 = vector.load %arg9[%c0_21, %c0_22] : memref<1x128xf32, #tpu.memory_space<vmem>>, vector<1x128xf32>
    %31 = vector.broadcast %30 : vector<1x128xf32> to vector<144x128xf32>
    %32 = arith.addf %29, %31 : vector<144x128xf32>
    %cst_23 = arith.constant 0.000000e+00 : f32
    %33 = vector.broadcast %cst_23 : f32 to vector<144x128xf32>
    %34 = arith.maximumf %32, %33 : vector<144x128xf32>
    %35 = math.absf %32 : vector<144x128xf32>
    %cst_24 = arith.constant 0.000000e+00 : f32
    %36 = vector.broadcast %cst_24 : f32 to vector<144x128xf32>
    %37 = arith.subf %36, %35 : vector<144x128xf32>
    %38 = math.exp %37 : vector<144x128xf32>
    %39 = math.log1p %38 : vector<144x128xf32>
    %40 = arith.addf %34, %39 : vector<144x128xf32>
    %41 = arith.truncf %40 : vector<144x128xf32> to vector<144x128xbf16>
    %c0_25 = arith.constant 0 : index
    %c0_26 = arith.constant 0 : index
    %42 = vector.load %arg10[%c0_25, %c0_26] : memref<128x128xbf16, #tpu.memory_space<vmem>>, vector<128x128xbf16>
    %cst_27 = arith.constant dense<0.000000e+00> : vector<144x128xf32>
    %43 = tpu.matmul %41, %42, %cst_27 {dimension_numbers = #tpu.dot_dimension_numbers<[1], [0], [0], [1], [0, 0, 1, 1], [], []>} : vector<144x128xbf16>, vector<128x128xbf16>, vector<144x128xf32> -> vector<144x128xf32>
    %c0_28 = arith.constant 0 : index
    %c0_29 = arith.constant 0 : index
    %44 = vector.load %arg11[%c0_28, %c0_29] : memref<1x128xf32, #tpu.memory_space<vmem>>, vector<1x128xf32>
    %45 = vector.broadcast %44 : vector<1x128xf32> to vector<144x128xf32>
    %46 = arith.addf %43, %45 : vector<144x128xf32>
    %cst_30 = arith.constant 0.000000e+00 : f32
    %47 = vector.broadcast %cst_30 : f32 to vector<144x128xf32>
    %48 = arith.maximumf %46, %47 : vector<144x128xf32>
    %49 = math.absf %46 : vector<144x128xf32>
    %cst_31 = arith.constant 0.000000e+00 : f32
    %50 = vector.broadcast %cst_31 : f32 to vector<144x128xf32>
    %51 = arith.subf %50, %49 : vector<144x128xf32>
    %52 = math.exp %51 : vector<144x128xf32>
    %53 = math.log1p %52 : vector<144x128xf32>
    %54 = arith.addf %48, %53 : vector<144x128xf32>
    %55 = arith.truncf %54 : vector<144x128xf32> to vector<144x128xbf16>
    %c0_32 = arith.constant 0 : index
    %c0_33 = arith.constant 0 : index
    %56 = vector.load %arg12[%c0_32, %c0_33] : memref<128x128xbf16, #tpu.memory_space<vmem>>, vector<128x128xbf16>
    %cst_34 = arith.constant dense<0.000000e+00> : vector<144x128xf32>
    %57 = tpu.matmul %55, %56, %cst_34 {dimension_numbers = #tpu.dot_dimension_numbers<[1], [0], [0], [1], [0, 0, 1, 1], [], []>} : vector<144x128xbf16>, vector<128x128xbf16>, vector<144x128xf32> -> vector<144x128xf32>
    %c0_35 = arith.constant 0 : index
    %c0_36 = arith.constant 0 : index
    %58 = vector.load %arg13[%c0_35, %c0_36] : memref<1x128xf32, #tpu.memory_space<vmem>>, vector<1x128xf32>
    %59 = vector.broadcast %58 : vector<1x128xf32> to vector<144x128xf32>
    %60 = arith.addf %57, %59 : vector<144x128xf32>
    %cst_37 = arith.constant 0.000000e+00 : f32
    %61 = vector.broadcast %cst_37 : f32 to vector<144x128xf32>
    %62 = arith.maximumf %60, %61 : vector<144x128xf32>
    %63 = math.absf %60 : vector<144x128xf32>
    %cst_38 = arith.constant 0.000000e+00 : f32
    %64 = vector.broadcast %cst_38 : f32 to vector<144x128xf32>
    %65 = arith.subf %64, %63 : vector<144x128xf32>
    %66 = math.exp %65 : vector<144x128xf32>
    %67 = math.log1p %66 : vector<144x128xf32>
    %68 = arith.addf %62, %67 : vector<144x128xf32>
    %69 = arith.truncf %68 : vector<144x128xf32> to vector<144x128xbf16>
    %c0_39 = arith.constant 0 : index
    %c0_40 = arith.constant 0 : index
    %70 = vector.load %arg14[%c0_39, %c0_40] : memref<128x128xbf16, #tpu.memory_space<vmem>>, vector<128x128xbf16>
    %cst_41 = arith.constant dense<0.000000e+00> : vector<144x128xf32>
    %71 = tpu.matmul %69, %70, %cst_41 {dimension_numbers = #tpu.dot_dimension_numbers<[1], [0], [0], [1], [0, 0, 1, 1], [], []>} : vector<144x128xbf16>, vector<128x128xbf16>, vector<144x128xf32> -> vector<144x128xf32>
    %c0_42 = arith.constant 0 : index
    %c0_43 = arith.constant 0 : index
    %72 = vector.load %arg15[%c0_42, %c0_43] : memref<1x128xf32, #tpu.memory_space<vmem>>, vector<1x128xf32>
    %73 = vector.broadcast %72 : vector<1x128xf32> to vector<144x128xf32>
    %74 = arith.addf %71, %73 : vector<144x128xf32>
    %cst_44 = arith.constant 5.000000e-01 : f32
    %75 = vector.broadcast %cst_44 : f32 to vector<144x128xf32>
    %76 = arith.mulf %75, %74 : vector<144x128xf32>
    %77 = math.tanh %76 : vector<144x128xf32>
    %cst_45 = arith.constant 1.000000e+00 : f32
    %78 = vector.broadcast %cst_45 : f32 to vector<144x128xf32>
    %79 = arith.addf %77, %78 : vector<144x128xf32>
    %cst_46 = arith.constant 5.000000e-01 : f32
    %80 = vector.broadcast %cst_46 : f32 to vector<144x128xf32>
    %81 = arith.mulf %80, %79 : vector<144x128xf32>
    %82 = arith.truncf %81 : vector<144x128xf32> to vector<144x128xbf16>
    %c0_47 = arith.constant 0 : index
    %c0_48 = arith.constant 0 : index
    %83 = vector.load %arg16[%c0_47, %c0_48] : memref<144x128xbf16, #tpu.memory_space<vmem>>, vector<144x128xbf16>
    tpu.vector_store %arg16[%c0_47, %c0_48], %82 {strides = array<i32>} : memref<144x128xbf16, #tpu.memory_space<vmem>>, vector<144x128xbf16>,
    return
  }
  func.func @transform_0(%arg0: i32) -> (i32, i32) {
    %c0_i32 = arith.constant 0 : i32
    %c0_i32_0 = arith.constant 0 : i32
    return %arg0, %c0_i32 : i32, i32
  }
  func.func @transform_1(%arg0: i32) -> (i32, i32) {
    %c0_i32 = arith.constant 0 : i32
    %c0_i32_0 = arith.constant 0 : i32
    %c0_i32_1 = arith.constant 0 : i32
    return %c0_i32, %c0_i32_0 : i32, i32
  }
  func.func @transform_2(%arg0: i32) -> (i32, i32) {
    %c0_i32 = arith.constant 0 : i32
    %c0_i32_0 = arith.constant 0 : i32
    %c0_i32_1 = arith.constant 0 : i32
    return %c0_i32, %c0_i32_0 : i32, i32
  }
  func.func @transform_3(%arg0: i32) -> (i32, i32) {
    %c0_i32 = arith.constant 0 : i32
    %c0_i32_0 = arith.constant 0 : i32
    %c0_i32_1 = arith.constant 0 : i32
    return %c0_i32, %c0_i32_0 : i32, i32
  }
  func.func @transform_4(%arg0: i32) -> (i32, i32) {
    %c0_i32 = arith.constant 0 : i32
    %c0_i32_0 = arith.constant 0 : i32
    %c0_i32_1 = arith.constant 0 : i32
    return %c0_i32, %c0_i32_0 : i32, i32
  }
  func.func @transform_5(%arg0: i32) -> (i32, i32) {
    %c0_i32 = arith.constant 0 : i32
    %c0_i32_0 = arith.constant 0 : i32
    %c0_i32_1 = arith.constant 0 : i32
    return %c0_i32, %c0_i32_0 : i32, i32
  }
  func.func @transform_6(%arg0: i32) -> (i32, i32) {
    %c0_i32 = arith.constant 0 : i32
    %c0_i32_0 = arith.constant 0 : i32
    %c0_i32_1 = arith.constant 0 : i32
    return %c0_i32, %c0_i32_0 : i32, i32
  }
  func.func @transform_7(%arg0: i32) -> (i32, i32) {
    %c0_i32 = arith.constant 0 : i32
    %c0_i32_0 = arith.constant 0 : i32
    %c0_i32_1 = arith.constant 0 : i32
    return %c0_i32, %c0_i32_0 : i32, i32
  }
  func.func @transform_8(%arg0: i32) -> (i32, i32) {
    %c0_i32 = arith.constant 0 : i32
    %c0_i32_0 = arith.constant 0 : i32
    %c0_i32_1 = arith.constant 0 : i32
    return %c0_i32, %c0_i32_0 : i32, i32
  }
  func.func @transform_9(%arg0: i32) -> (i32, i32) {
    %c0_i32 = arith.constant 0 : i32
    %c0_i32_0 = arith.constant 0 : i32
    %c0_i32_1 = arith.constant 0 : i32
    return %c0_i32, %c0_i32_0 : i32, i32
  }
  func.func @transform_10(%arg0: i32) -> (i32, i32) {
    %c0_i32 = arith.constant 0 : i32
    %c0_i32_0 = arith.constant 0 : i32
    %c0_i32_1 = arith.constant 0 : i32
    return %c0_i32, %c0_i32_0 : i32, i32
  }
  func.func @transform_11(%arg0: i32) -> (i32, i32) {
    %c0_i32 = arith.constant 0 : i32
    %c0_i32_0 = arith.constant 0 : i32
    %c0_i32_1 = arith.constant 0 : i32
    return %c0_i32, %c0_i32_0 : i32, i32
  }
  func.func @transform_12(%arg0: i32) -> (i32, i32) {
    %c0_i32 = arith.constant 0 : i32
    %c0_i32_0 = arith.constant 0 : i32
    %c0_i32_1 = arith.constant 0 : i32
    return %c0_i32, %c0_i32_0 : i32, i32
  }
  func.func @transform_13(%arg0: i32) -> (i32, i32) {
    %c0_i32 = arith.constant 0 : i32
    %c0_i32_0 = arith.constant 0 : i32
    %c0_i32_1 = arith.constant 0 : i32
    return %c0_i32, %c0_i32_0 : i32, i32
  }
  func.func @transform_14(%arg0: i32) -> (i32, i32) {
    %c0_i32 = arith.constant 0 : i32
    %c0_i32_0 = arith.constant 0 : i32
    %c0_i32_1 = arith.constant 0 : i32
    return %c0_i32, %c0_i32_0 : i32, i32
  }
  func.func @transform_15(%arg0: i32) -> (i32, i32) {
    %c0_i32 = arith.constant 0 : i32
    %c0_i32_0 = arith.constant 0 : i32
    return %arg0, %c0_i32 : i32, i32
  }
}

</mosaic_0001>

<llo_original>
// kernel: tpu_custom_call.1
$region0: #{tpu_custom_call.1}
  #allocation0 [shape = 'u32[]', space=smem, size = 0x4, offset = 0x4, fixed_abs, tag = 'smem constant byte address 0x4 - core index']
  #allocation1 [shape = 'u32[144,128]{1,0:T(1,128)}', space=vmem, size = 0x12000, scoped, tag = 'internal scratch']
  %s0 = inlined_call_operand.vmem [shape: bf16[288,78], index: 0, kind: input, shape index: {}]
  %s1 = inlined_call_operand.vmem [shape: bf16[78,256], index: 1, kind: input, shape index: {}]
  %s2 = inlined_call_operand.vmem [shape: f32[1,128], index: 2, kind: input, shape index: {}]
  %s3 = inlined_call_operand.vmem [shape: bf16[128,128], index: 3, kind: input, shape index: {}]
  %s4 = inlined_call_operand.vmem [shape: f32[1,128], index: 4, kind: input, shape index: {}]
  %s5 = inlined_call_operand.vmem [shape: bf16[128,128], index: 5, kind: input, shape index: {}]
  %s6 = inlined_call_operand.hbm [shape: f32[1,128], index: 6, kind: input, shape index: {}]
  %s7 = inlined_call_operand.vmem [shape: bf16[128,128], index: 7, kind: input, shape index: {}]
  %s8 = inlined_call_operand.vmem [shape: f32[1,128], index: 8, kind: input, shape index: {}]
  %s9 = inlined_call_operand.hbm [shape: bf16[128,128], index: 9, kind: input, shape index: {}]
  %s10 = inlined_call_operand.vmem [shape: f32[1,128], index: 10, kind: input, shape index: {}]
  %s11 = inlined_call_operand.hbm [shape: bf16[128,128], index: 11, kind: input, shape index: {}]
  %s12 = inlined_call_operand.vmem [shape: f32[1,128], index: 12, kind: input, shape index: {}]
  %s13 = inlined_call_operand.hbm [shape: bf16[128,128], index: 13, kind: input, shape index: {}]
  %s14 = inlined_call_operand.vmem [shape: f32[1,128], index: 14, kind: input, shape index: {}]
  %s15 = inlined_call_operand.hbm [shape: bf16[288,128], index: 15, kind: output, shape index: {}]
  %s16 = sld [smem:[#allocation0]]
  $region109: #{tpu_custom_call.1} parent=0
    _
  %s18 = ssub.s32 1, %s16
  %s19 = scalar_select 0, %s18, %s16
  $region1: #{tpu_custom_call.1} parent=0
    #allocation2 [shape = 'u8[512]{0}', space=vmem, size = 0x400, scoped, tag = 'input window, operand 6, single buffered']
    #allocation3 [shape = 's32[2]{0}', space=sflag, size = 0x8, scoped, tag = 'scoped memory for tpu_custom_call.1']
    #allocation4 [shape = 's32[2]{0}', space=sflag, size = 0x8, scoped, tag = 'scoped memory for tpu_custom_call.1']
    #allocation5 [shape = 'u8[32768]{0}', space=vmem, size = 0x8000, scoped, tag = 'input window, operand 9, single buffered']
    #allocation6 [shape = 's32[1]{0}', space=sflag, size = 0x4, scoped, tag = 'scoped memory for tpu_custom_call.1']
    #allocation7 [shape = 'u8[32768]{0}', space=vmem, size = 0x8000, scoped, tag = 'input window, operand 11, single buffered']
    #allocation8 [shape = 'u8[32768]{0}', space=vmem, size = 0x8000, scoped, tag = 'input window, operand 13, single buffered']
    #allocation9 [shape = 's32[1]{0}', space=sflag, size = 0x4, scoped, tag = 'scoped memory for tpu_custom_call.1']
    #allocation10 [shape = 'u8[73728]{0}', space=vmem, size = 0x12000, scoped, tag = 'output window, operand 0']
    %20 = vsyncpa [#allocation3], 0
    %21 = vsyncpa [#allocation6], 0
    %22 = vsyncpa [#allocation9], 0
    %23 = vsyncpa [#allocation4], 0
    %s24 = scalar_lea.sflag [#allocation4], 1
    %25 = vsyncpa %s24, 0
    loop: start=0, step=1, limit=4
    $region2: #{tpu_custom_call.1} parent=1 // loop_pre_header
      _
    $region3: #{tpu_custom_call.1} parent=1 // loop_header
      %s27 = sphi 0, %s31
      %p28 = scmp.ge.s32.totalorder %s27, 4
      %s37 = sphi 0, %s39
      %s40 = sphi 0, %s37
      %s41 = sphi 0, %s40
      %s57 = sphi 0, %s41
      %s61 = sphi 0, %s61
      %s63 = sphi 0, %s61
      %s64 = sphi 0, %s63
      %s78 = sphi 0, %s64
      %s82 = sphi 0, %s82
      %s84 = sphi 0, %s82
      %s85 = sphi 0, %s84
      %s99 = sphi 0, %s85
      %s103 = sphi 0, %s103
      %s105 = sphi 0, %s103
      %s106 = sphi 0, %s105
      %s120 = sphi 0, %s106
      %s124 = sphi 0, %s124
      %s126 = sphi 0, %s124
      %s127 = sphi 0, %s126
      %s141 = sphi 0, %s127
      %s145 = sphi 0, %s145
      %s147 = sphi 0, %s145
      %s148 = sphi 0, %s147
      %s162 = sphi 0, %s148
      %s166 = sphi 0, %s166
      %s168 = sphi 0, %s166
      %s169 = sphi 0, %s168
      %s183 = sphi 0, %s169
      %s187 = sphi 0, %s187
      %s189 = sphi 0, %s187
      %s190 = sphi 0, %s189
      %s204 = sphi 0, %s190
      %s208 = sphi 0, %s208
      %s210 = sphi 0, %s208
      %s211 = sphi 0, %s210
      %s225 = sphi 0, %s211
      %s229 = sphi 0, %s229
      %s231 = sphi 0, %s229
      %s232 = sphi 0, %s231
      %s246 = sphi 0, %s232
      %s250 = sphi 0, %s250
      %s252 = sphi 0, %s250
      %s253 = sphi 0, %s252
      %s267 = sphi 0, %s253
      %s271 = sphi 0, %s271
      %s273 = sphi 0, %s271
      %s274 = sphi 0, %s273
      %s288 = sphi 0, %s274
      %s292 = sphi 0, %s292
      %s294 = sphi 0, %s292
      %s295 = sphi 0, %s294
      %s309 = sphi 0, %s295
      %s313 = sphi 0, %s313
      %s315 = sphi 0, %s313
      %s316 = sphi 0, %s315
      %s330 = sphi 0, %s316
      %s334 = sphi 0, %s334
      %s336 = sphi 0, %s334
      %s337 = sphi 0, %s336
      %s351 = sphi 0, %s337
      %s357 = sphi 0, %s359
      %s360 = sphi 0, %s357
      %s361 = sphi 0, %s360
      %s377 = sphi 0, %s361
    $region4: #{tpu_custom_call.1} parent=1 // loop_header_branch
      %30 = sbr.rel (%p28) target = $region8
    $region5: #{tpu_custom_call.1} parent=1 // loop_body
      %s32 = ssub.s32 %s27, 1
      %s33 = ssub.s32 %s27, 2
      %s34 = sadd.s32 %s27, 1
      %s35 = ssub.s32 %s27, %s34
      %p36 = scmp.eq.s32.totalorder %s35, 0
      %s38 = sadd.s32 %s37, 1
      %s39 = scalar_select %p36, %s37, %s38
      %p42 = pneg %p36
      %p43 = scmp.eq.s32.totalorder %s27, 1
      %p44 = por %p42, %p43
      %p45 = scmp.ne.s32.totalorder %s37, %s40
      %p46 = scmp.eq.s32.totalorder %s27, 0
      %p47 = por %p45, %p46
      %p48 = scmp.ne.s32.totalorder %s37, %s40
      %p49 = scmp.eq.s32.totalorder %s32, 1
      %p50 = por %p48, %p49
      %p51 = scmp.ne.s32.totalorder %s40, %s41
      %p52 = scmp.eq.s32.totalorder %s32, 0
      %p53 = por %p51, %p52
      %p54 = scmp.ne.s32.totalorder %s40, %s41
      %p55 = scmp.eq.s32.totalorder %s33, 1
      %p56 = por %p54, %p55
      %p58 = scmp.ne.s32.totalorder %s41, %s57
      %p59 = scmp.eq.s32.totalorder %s33, 0
      %p60 = por %p58, %p59
      %s62 = sadd.s32 %s61, 1
      %p65 = scmp.eq.s32.totalorder %s27, 1
      %p66 = scmp.ne.s32.totalorder %s61, %s63
      %p67 = scmp.eq.s32.totalorder %s27, 0
      %p68 = por %p66, %p67
      %p69 = scmp.ne.s32.totalorder %s61, %s63
      %p70 = scmp.eq.s32.totalorder %s32, 1
      %p71 = por %p69, %p70
      %p72 = scmp.ne.s32.totalorder %s63, %s64
      %p73 = scmp.eq.s32.totalorder %s32, 0
      %p74 = por %p72, %p73
      %p75 = scmp.ne.s32.totalorder %s63, %s64
      %p76 = scmp.eq.s32.totalorder %s33, 1
      %p77 = por %p75, %p76
      %p79 = scmp.ne.s32.totalorder %s64, %s78
      %p80 = scmp.eq.s32.totalorder %s33, 0
      %p81 = por %p79, %p80
      %s83 = sadd.s32 %s82, 1
      %p86 = scmp.eq.s32.totalorder %s27, 1
      %p87 = scmp.ne.s32.totalorder %s82, %s84
      %p88 = scmp.eq.s32.totalorder %s27, 0
      %p89 = por %p87, %p88
      %p90 = scmp.ne.s32.totalorder %s82, %s84
      %p91 = scmp.eq.s32.totalorder %s32, 1
      %p92 = por %p90, %p91
      %p93 = scmp.ne.s32.totalorder %s84, %s85
      %p94 = scmp.eq.s32.totalorder %s32, 0
      %p95 = por %p93, %p94
      %p96 = scmp.ne.s32.totalorder %s84, %s85
      %p97 = scmp.eq.s32.totalorder %s33, 1
      %p98 = por %p96, %p97
      %p100 = scmp.ne.s32.totalorder %s85, %s99
      %p101 = scmp.eq.s32.totalorder %s33, 0
      %p102 = por %p100, %p101
      %s104 = sadd.s32 %s103, 1
      %p107 = scmp.eq.s32.totalorder %s27, 1
      %p108 = scmp.ne.s32.totalorder %s103, %s105
      %p109 = scmp.eq.s32.totalorder %s27, 0
      %p110 = por %p108, %p109
      %p111 = scmp.ne.s32.totalorder %s103, %s105
      %p112 = scmp.eq.s32.totalorder %s32, 1
      %p113 = por %p111, %p112
      %p114 = scmp.ne.s32.totalorder %s105, %s106
      %p115 = scmp.eq.s32.totalorder %s32, 0
      %p116 = por %p114, %p115
      %p117 = scmp.ne.s32.totalorder %s105, %s106
      %p118 = scmp.eq.s32.totalorder %s33, 1
      %p119 = por %p117, %p118
      %p121 = scmp.ne.s32.totalorder %s106, %s120
      %p122 = scmp.eq.s32.totalorder %s33, 0
      %p123 = por %p121, %p122
      %s125 = sadd.s32 %s124, 1
      %p128 = scmp.eq.s32.totalorder %s27, 1
      %p129 = scmp.ne.s32.totalorder %s124, %s126
      %p130 = scmp.eq.s32.totalorder %s27, 0
      %p131 = por %p129, %p130
      %p132 = scmp.ne.s32.totalorder %s124, %s126
      %p133 = scmp.eq.s32.totalorder %s32, 1
      %p134 = por %p132, %p133
      %p135 = scmp.ne.s32.totalorder %s126, %s127
      %p136 = scmp.eq.s32.totalorder %s32, 0
      %p137 = por %p135, %p136
      %p138 = scmp.ne.s32.totalorder %s126, %s127
      %p139 = scmp.eq.s32.totalorder %s33, 1
      %p140 = por %p138, %p139
      %p142 = scmp.ne.s32.totalorder %s127, %s141
      %p143 = scmp.eq.s32.totalorder %s33, 0
      %p144 = por %p142, %p143
      %s146 = sadd.s32 %s145, 1
      %p149 = scmp.eq.s32.totalorder %s27, 1
      %p150 = scmp.ne.s32.totalorder %s145, %s147
      %p151 = scmp.eq.s32.totalorder %s27, 0
      %p152 = por %p150, %p151
      %p153 = scmp.ne.s32.totalorder %s145, %s147
      %p154 = scmp.eq.s32.totalorder %s32, 1
      %p155 = por %p153, %p154
      %p156 = scmp.ne.s32.totalorder %s147, %s148
      %p157 = scmp.eq.s32.totalorder %s32, 0
      %p158 = por %p156, %p157
      %p159 = scmp.ne.s32.totalorder %s147, %s148
      %p160 = scmp.eq.s32.totalorder %s33, 1
      %p161 = por %p159, %p160
      %p163 = scmp.ne.s32.totalorder %s148, %s162
      %p164 = scmp.eq.s32.totalorder %s33, 0
      %p165 = por %p163, %p164
      %s167 = sadd.s32 %s166, 1
      %p170 = scmp.eq.s32.totalorder %s27, 1
      %p171 = scmp.ne.s32.totalorder %s166, %s168
      %p172 = scmp.eq.s32.totalorder %s27, 0
      %p173 = por %p171, %p172
      %p174 = scmp.ne.s32.totalorder %s166, %s168
      %p175 = scmp.eq.s32.totalorder %s32, 1
      %p176 = por %p174, %p175
      %p177 = scmp.ne.s32.totalorder %s168, %s169
      %p178 = scmp.eq.s32.totalorder %s32, 0
      %p179 = por %p177, %p178
      %p180 = scmp.ne.s32.totalorder %s168, %s169
      %p181 = scmp.eq.s32.totalorder %s33, 1
      %p182 = por %p180, %p181
      %p184 = scmp.ne.s32.totalorder %s169, %s183
      %p185 = scmp.eq.s32.totalorder %s33, 0
      %p186 = por %p184, %p185
      %s188 = sadd.s32 %s187, 1
      %p191 = scmp.eq.s32.totalorder %s27, 1
      %p192 = scmp.ne.s32.totalorder %s187, %s189
      %p193 = scmp.eq.s32.totalorder %s27, 0
      %p194 = por %p192, %p193
      %p195 = scmp.ne.s32.totalorder %s187, %s189
      %p196 = scmp.eq.s32.totalorder %s32, 1
      %p197 = por %p195, %p196
      %p198 = scmp.ne.s32.totalorder %s189, %s190
      %p199 = scmp.eq.s32.totalorder %s32, 0
      %p200 = por %p198, %p199
      %p201 = scmp.ne.s32.totalorder %s189, %s190
      %p202 = scmp.eq.s32.totalorder %s33, 1
      %p203 = por %p201, %p202
      %p205 = scmp.ne.s32.totalorder %s190, %s204
      %p206 = scmp.eq.s32.totalorder %s33, 0
      %p207 = por %p205, %p206
      %s209 = sadd.s32 %s208, 1
      %p212 = scmp.eq.s32.totalorder %s27, 1
      %p213 = scmp.ne.s32.totalorder %s208, %s210
      %p214 = scmp.eq.s32.totalorder %s27, 0
      %p215 = por %p213, %p214
      %p216 = scmp.ne.s32.totalorder %s208, %s210
      %p217 = scmp.eq.s32.totalorder %s32, 1
      %p218 = por %p216, %p217
      %p219 = scmp.ne.s32.totalorder %s210, %s211
      %p220 = scmp.eq.s32.totalorder %s32, 0
      %p221 = por %p219, %p220
      %p222 = scmp.ne.s32.totalorder %s210, %s211
      %p223 = scmp.eq.s32.totalorder %s33, 1
      %p224 = por %p222, %p223
      %p226 = scmp.ne.s32.totalorder %s211, %s225
      %p227 = scmp.eq.s32.totalorder %s33, 0
      %p228 = por %p226, %p227
      %s230 = sadd.s32 %s229, 1
      %p233 = scmp.eq.s32.totalorder %s27, 1
      %p234 = scmp.ne.s32.totalorder %s229, %s231
      %p235 = scmp.eq.s32.totalorder %s27, 0
      %p236 = por %p234, %p235
      %p237 = scmp.ne.s32.totalorder %s229, %s231
      %p238 = scmp.eq.s32.totalorder %s32, 1
      %p239 = por %p237, %p238
      %p240 = scmp.ne.s32.totalorder %s231, %s232
      %p241 = scmp.eq.s32.totalorder %s32, 0
      %p242 = por %p240, %p241
      %p243 = scmp.ne.s32.totalorder %s231, %s232
      %p244 = scmp.eq.s32.totalorder %s33, 1
      %p245 = por %p243, %p244
      %p247 = scmp.ne.s32.totalorder %s232, %s246
      %p248 = scmp.eq.s32.totalorder %s33, 0
      %p249 = por %p247, %p248
      %s251 = sadd.s32 %s250, 1
      %p254 = scmp.eq.s32.totalorder %s27, 1
      %p255 = scmp.ne.s32.totalorder %s250, %s252
      %p256 = scmp.eq.s32.totalorder %s27, 0
      %p257 = por %p255, %p256
      %p258 = scmp.ne.s32.totalorder %s250, %s252
      %p259 = scmp.eq.s32.totalorder %s32, 1
      %p260 = por %p258, %p259
      %p261 = scmp.ne.s32.totalorder %s252, %s253
      %p262 = scmp.eq.s32.totalorder %s32, 0
      %p263 = por %p261, %p262
      %p264 = scmp.ne.s32.totalorder %s252, %s253
      %p265 = scmp.eq.s32.totalorder %s33, 1
      %p266 = por %p264, %p265
      %p268 = scmp.ne.s32.totalorder %s253, %s267
      %p269 = scmp.eq.s32.totalorder %s33, 0
      %p270 = por %p268, %p269
      %s272 = sadd.s32 %s271, 1
      %p275 = scmp.eq.s32.totalorder %s27, 1
      %p276 = scmp.ne.s32.totalorder %s271, %s273
      %p277 = scmp.eq.s32.totalorder %s27, 0
      %p278 = por %p276, %p277
      %p279 = scmp.ne.s32.totalorder %s271, %s273
      %p280 = scmp.eq.s32.totalorder %s32, 1
      %p281 = por %p279, %p280
      %p282 = scmp.ne.s32.totalorder %s273, %s274
      %p283 = scmp.eq.s32.totalorder %s32, 0
      %p284 = por %p282, %p283
      %p285 = scmp.ne.s32.totalorder %s273, %s274
      %p286 = scmp.eq.s32.totalorder %s33, 1
      %p287 = por %p285, %p286
      %p289 = scmp.ne.s32.totalorder %s274, %s288
      %p290 = scmp.eq.s32.totalorder %s33, 0
      %p291 = por %p289, %p290
      %s293 = sadd.s32 %s292, 1
      %p296 = scmp.eq.s32.totalorder %s27, 1
      %p297 = scmp.ne.s32.totalorder %s292, %s294
      %p298 = scmp.eq.s32.totalorder %s27, 0
      %p299 = por %p297, %p298
      %p300 = scmp.ne.s32.totalorder %s292, %s294
      %p301 = scmp.eq.s32.totalorder %s32, 1
      %p302 = por %p300, %p301
      %p303 = scmp.ne.s32.totalorder %s294, %s295
      %p304 = scmp.eq.s32.totalorder %s32, 0
      %p305 = por %p303, %p304
      %p306 = scmp.ne.s32.totalorder %s294, %s295
      %p307 = scmp.eq.s32.totalorder %s33, 1
      %p308 = por %p306, %p307
      %p310 = scmp.ne.s32.totalorder %s295, %s309
      %p311 = scmp.eq.s32.totalorder %s33, 0
      %p312 = por %p310, %p311
      %s314 = sadd.s32 %s313, 1
      %p317 = scmp.eq.s32.totalorder %s27, 1
      %p318 = scmp.ne.s32.totalorder %s313, %s315
      %p319 = scmp.eq.s32.totalorder %s27, 0
      %p320 = por %p318, %p319
      %p321 = scmp.ne.s32.totalorder %s313, %s315
      %p322 = scmp.eq.s32.totalorder %s32, 1
      %p323 = por %p321, %p322
      %p324 = scmp.ne.s32.totalorder %s315, %s316
      %p325 = scmp.eq.s32.totalorder %s32, 0
      %p326 = por %p324, %p325
      %p327 = scmp.ne.s32.totalorder %s315, %s316
      %p328 = scmp.eq.s32.totalorder %s33, 1
      %p329 = por %p327, %p328
      %p331 = scmp.ne.s32.totalorder %s316, %s330
      %p332 = scmp.eq.s32.totalorder %s33, 0
      %p333 = por %p331, %p332
      %s335 = sadd.s32 %s334, 1
      %p338 = scmp.eq.s32.totalorder %s27, 1
      %p339 = scmp.ne.s32.totalorder %s334, %s336
      %p340 = scmp.eq.s32.totalorder %s27, 0
      %p341 = por %p339, %p340
      %p342 = scmp.ne.s32.totalorder %s334, %s336
      %p343 = scmp.eq.s32.totalorder %s32, 1
      %p344 = por %p342, %p343
      %p345 = scmp.ne.s32.totalorder %s336, %s337
      %p346 = scmp.eq.s32.totalorder %s32, 0
      %p347 = por %p345, %p346
      %p348 = scmp.ne.s32.totalorder %s336, %s337
      %p349 = scmp.eq.s32.totalorder %s33, 1
      %p350 = por %p348, %p349
      %p352 = scmp.ne.s32.totalorder %s337, %s351
      %p353 = scmp.eq.s32.totalorder %s33, 0
      %p354 = por %p352, %p353
      %s355 = ssub.s32 %s27, %s34
      %p356 = scmp.eq.s32.totalorder %s355, 0
      %s358 = sadd.s32 %s357, 1
      %s359 = scalar_select %p356, %s357, %s358
      %p362 = pneg %p356
      %p363 = scmp.eq.s32.totalorder %s27, 1
      %p364 = por %p362, %p363
      %p365 = scmp.ne.s32.totalorder %s357, %s360
      %p366 = scmp.eq.s32.totalorder %s27, 0
      %p367 = por %p365, %p366
      %p368 = scmp.ne.s32.totalorder %s357, %s360
      %p369 = scmp.eq.s32.totalorder %s32, 1
      %p370 = por %p368, %p369
      %p371 = scmp.ne.s32.totalorder %s360, %s361
      %p372 = scmp.eq.s32.totalorder %s32, 0
      %p373 = por %p371, %p372
      %p374 = scmp.ne.s32.totalorder %s360, %s361
      %p375 = scmp.eq.s32.totalorder %s33, 1
      %p376 = por %p374, %p375
      %p378 = scmp.ne.s32.totalorder %s361, %s377
      %p379 = scmp.eq.s32.totalorder %s33, 0
      %p380 = por %p378, %p379
      %p381 = scmp.le.s32.totalorder 1, %s27
      %p382 = scmp.lt.s32.totalorder %s27, 3
      %p383 = pnand %p381, %p382
      %p384 = pneg %p383
      // Predicated region
      $region9: #{tpu_custom_call.1} parent=5 // pred_check
        _
      $region10: #{tpu_custom_call.1} parent=5 // pred_check_branch
        %386 = sbr.rel (%p383) target = $region12
      $region11: #{tpu_custom_call.1} parent=5 // pred_region
        %s387 = ssub.s32 %s27, 1
        // Predicated region
        $region13: #{tpu_custom_call.1} parent=11 // pred_check
          %p388 = pneg %p74
        $region14: #{tpu_custom_call.1} parent=11 // pred_check_branch
          %390 = sbr.rel (%p388) target = $region16
        $region15: #{tpu_custom_call.1} parent=11 // pred_region
          _
        $region16: #{tpu_custom_call.1} parent=11 // pred_fallthru
          _
        // Predicated region
        $region17: #{tpu_custom_call.1} parent=11 // pred_check
          %p391 = pneg %p95
        $region18: #{tpu_custom_call.1} parent=11 // pred_check_branch
          %393 = sbr.rel (%p391) target = $region20
        $region19: #{tpu_custom_call.1} parent=11 // pred_region
          _
        $region20: #{tpu_custom_call.1} parent=11 // pred_fallthru
          _
        // Predicated region
        $region21: #{tpu_custom_call.1} parent=11 // pred_check
          %p394 = pneg %p116
        $region22: #{tpu_custom_call.1} parent=11 // pred_check_branch
          %396 = sbr.rel (%p394) target = $region24
        $region23: #{tpu_custom_call.1} parent=11 // pred_region
          _
        $region24: #{tpu_custom_call.1} parent=11 // pred_fallthru
          _
        // Predicated region
        $region25: #{tpu_custom_call.1} parent=11 // pred_check
          %p397 = pneg %p137
        $region26: #{tpu_custom_call.1} parent=11 // pred_check_branch
          %399 = sbr.rel (%p397) target = $region28
        $region27: #{tpu_custom_call.1} parent=11 // pred_region
          _
        $region28: #{tpu_custom_call.1} parent=11 // pred_fallthru
          _
        // Predicated region
        $region29: #{tpu_custom_call.1} parent=11 // pred_check
          %p400 = pneg %p158
        $region30: #{tpu_custom_call.1} parent=11 // pred_check_branch
          %402 = sbr.rel (%p400) target = $region32
        $region31: #{tpu_custom_call.1} parent=11 // pred_region
          _
        $region32: #{tpu_custom_call.1} parent=11 // pred_fallthru
          _
        // Predicated region
        $region33: #{tpu_custom_call.1} parent=11 // pred_check
          %p403 = pneg %p179
        $region34: #{tpu_custom_call.1} parent=11 // pred_check_branch
          %405 = sbr.rel (%p403) target = $region36
        $region35: #{tpu_custom_call.1} parent=11 // pred_region
          %s407 = ssub.s32 16, 16
          %408 = vsyncadd [#allocation3], %s407
          %s410 = sshll.u32 [#allocation2], 4
          %s411 = int_to_ptr.vmem [resolvable:$true] %s410
          %413 = dma.hbm_to_vmem [thread:$0]  %s6, 16, %s411, [#allocation3]
        $region36: #{tpu_custom_call.1} parent=11 // pred_fallthru
          _
        // Predicated region
        $region37: #{tpu_custom_call.1} parent=11 // pred_check
          %p414 = pneg %p200
        $region38: #{tpu_custom_call.1} parent=11 // pred_check_branch
          %416 = sbr.rel (%p414) target = $region40
        $region39: #{tpu_custom_call.1} parent=11 // pred_region
          _
        $region40: #{tpu_custom_call.1} parent=11 // pred_fallthru
          _
        // Predicated region
        $region41: #{tpu_custom_call.1} parent=11 // pred_check
          %p417 = pneg %p221
        $region42: #{tpu_custom_call.1} parent=11 // pred_check_branch
          %419 = sbr.rel (%p417) target = $region44
        $region43: #{tpu_custom_call.1} parent=11 // pred_region
          _
        $region44: #{tpu_custom_call.1} parent=11 // pred_fallthru
          _
        // Predicated region
        $region45: #{tpu_custom_call.1} parent=11 // pred_check
          %p420 = pneg %p242
        $region46: #{tpu_custom_call.1} parent=11 // pred_check_branch
          %422 = sbr.rel (%p420) target = $region48
        $region47: #{tpu_custom_call.1} parent=11 // pred_region
          %s424 = ssub.s32 1024, 1024
          %425 = vsyncadd [#allocation6], %s424
          %s426 = sshll.u32 [#allocation5], 4
          %s427 = int_to_ptr.vmem [resolvable:$true] %s426
          %432 = dma.hbm_to_vmem [thread:$0]  %s9, 1024, %s427, [#allocation6], 64, 64, 4
        $region48: #{tpu_custom_call.1} parent=11 // pred_fallthru
          _
        // Predicated region
        $region49: #{tpu_custom_call.1} parent=11 // pred_check
          %p433 = pneg %p263
        $region50: #{tpu_custom_call.1} parent=11 // pred_check_branch
          %435 = sbr.rel (%p433) target = $region52
        $region51: #{tpu_custom_call.1} parent=11 // pred_region
          _
        $region52: #{tpu_custom_call.1} parent=11 // pred_fallthru
          _
        // Predicated region
        $region53: #{tpu_custom_call.1} parent=11 // pred_check
          %p436 = pneg %p284
        $region54: #{tpu_custom_call.1} parent=11 // pred_check_branch
          %438 = sbr.rel (%p436) target = $region56
        $region55: #{tpu_custom_call.1} parent=11 // pred_region
          %s440 = ssub.s32 1024, 1024
          %441 = vsyncadd [#allocation6], %s440
          %s442 = sshll.u32 [#allocation7], 4
          %s443 = int_to_ptr.vmem [resolvable:$true] %s442
          %448 = dma.hbm_to_vmem [thread:$0]  %s11, 1024, %s443, [#allocation6], 64, 64, 4
        $region56: #{tpu_custom_call.1} parent=11 // pred_fallthru
          _
        // Predicated region
        $region57: #{tpu_custom_call.1} parent=11 // pred_check
          %p449 = pneg %p305
        $region58: #{tpu_custom_call.1} parent=11 // pred_check_branch
          %451 = sbr.rel (%p449) target = $region60
        $region59: #{tpu_custom_call.1} parent=11 // pred_region
          _
        $region60: #{tpu_custom_call.1} parent=11 // pred_fallthru
          _
        // Predicated region
        $region61: #{tpu_custom_call.1} parent=11 // pred_check
          %p452 = pneg %p326
        $region62: #{tpu_custom_call.1} parent=11 // pred_check_branch
          %454 = sbr.rel (%p452) target = $region64
        $region63: #{tpu_custom_call.1} parent=11 // pred_region
          %s456 = ssub.s32 1024, 1024
          %457 = vsyncadd [#allocation9], %s456
          %s458 = sshll.u32 [#allocation8], 4
          %s459 = int_to_ptr.vmem [resolvable:$true] %s458
          %464 = dma.hbm_to_vmem [thread:$0]  %s13, 1024, %s459, [#allocation9], 64, 64, 4
        $region64: #{tpu_custom_call.1} parent=11 // pred_fallthru
          _
        // Predicated region
        $region65: #{tpu_custom_call.1} parent=11 // pred_check
          %p465 = pneg %p347
        $region66: #{tpu_custom_call.1} parent=11 // pred_check_branch
          %467 = sbr.rel (%p465) target = $region68
        $region67: #{tpu_custom_call.1} parent=11 // pred_region
          _
        $region68: #{tpu_custom_call.1} parent=11 // pred_fallthru
          _
      $region12: #{tpu_custom_call.1} parent=5 // pred_fallthru
        _
      %p468 = scmp.lt.s32.totalorder %s27, 2
      // Predicated region
      $region69: #{tpu_custom_call.1} parent=5 // pred_check
        %p469 = pneg %p468
      $region70: #{tpu_custom_call.1} parent=5 // pred_check_branch
        %471 = sbr.rel (%p469) target = $region72
      $region71: #{tpu_custom_call.1} parent=5 // pred_region
        // Predicated region
        $region73: #{tpu_custom_call.1} parent=71 // pred_check
          %p472 = pneg %p47
        $region74: #{tpu_custom_call.1} parent=71 // pred_check_branch
          %474 = sbr.rel (%p472) target = $region76
        $region75: #{tpu_custom_call.1} parent=71 // pred_region
          %s475 = smul.u32 18, %s27
          %p476 = scmp.lt.s32.totalorder %s475, 35
          %s477 = scalar_select %p476, %s475, 35
          %s478 = smul.addr %s477, 4
          %s479 = scalar_lea.vmem %s0, %s478
          %s480 = smul.u32 18, %s27
        $region76: #{tpu_custom_call.1} parent=71 // pred_fallthru
          _
      $region72: #{tpu_custom_call.1} parent=5 // pred_fallthru
        _
      %p481 = scmp.le.s32.totalorder 1, %s27
      %p482 = scmp.lt.s32.totalorder %s27, 3
      %p483 = pnand %p481, %p482
      %p484 = pneg %p483
      // Predicated region
      $region77: #{tpu_custom_call.1} parent=5 // pred_check
        _
      $region78: #{tpu_custom_call.1} parent=5 // pred_check_branch
        %486 = sbr.rel (%p483) target = $region80
      $region79: #{tpu_custom_call.1} parent=5 // pred_region
        %s487 = ssub.s32 %s27, 1
        // Predicated region
        $region81: #{tpu_custom_call.1} parent=79 // pred_check
          %p488 = pneg %p179
        $region82: #{tpu_custom_call.1} parent=79 // pred_check_branch
          %490 = sbr.rel (%p488) target = $region84
        $region83: #{tpu_custom_call.1} parent=79 // pred_region
          %491 = dma.done [#allocation3], 16
        $region84: #{tpu_custom_call.1} parent=79 // pred_fallthru
          _
        // Predicated region
        $region85: #{tpu_custom_call.1} parent=79 // pred_check
          %p492 = pneg %p242
        $region86: #{tpu_custom_call.1} parent=79 // pred_check_branch
          %494 = sbr.rel (%p492) target = $region88
        $region87: #{tpu_custom_call.1} parent=79 // pred_region
          %495 = dma.done [#allocation6], 1024
        $region88: #{tpu_custom_call.1} parent=79 // pred_fallthru
          _
        // Predicated region
        $region89: #{tpu_custom_call.1} parent=79 // pred_check
          %p496 = pneg %p284
        $region90: #{tpu_custom_call.1} parent=79 // pred_check_branch
          %498 = sbr.rel (%p496) target = $region92
        $region91: #{tpu_custom_call.1} parent=79 // pred_region
          %499 = dma.done [#allocation6], 1024
        $region92: #{tpu_custom_call.1} parent=79 // pred_fallthru
          _
        // Predicated region
        $region93: #{tpu_custom_call.1} parent=79 // pred_check
          %p500 = pneg %p326
        $region94: #{tpu_custom_call.1} parent=79 // pred_check_branch
          %502 = sbr.rel (%p500) target = $region96
        $region95: #{tpu_custom_call.1} parent=79 // pred_region
          %503 = dma.done [#allocation9], 1024
        $region96: #{tpu_custom_call.1} parent=79 // pred_fallthru
          _
        %s504 = smul.u32 18, %s32
        %p505 = scmp.lt.s32.totalorder %s504, 35
        %s506 = scalar_select %p505, %s504, 35
        %s507 = smul.addr %s506, 4
        %s508 = scalar_lea.vmem %s0, %s507
        %p509 = pneg %p53
        %p510 = pneg %p50
        %p511 = pneg %p74
        %p512 = pneg %p71
        %p513 = pneg %p95
        %p514 = pneg %p92
        %p515 = pneg %p116
        %p516 = pneg %p113
        %p517 = pneg %p137
        %p518 = pneg %p134
        %p519 = pneg %p158
        %p520 = pneg %p155
        %p521 = pneg %p179
        %p522 = pneg %p176
        %p523 = pneg %p200
        %p524 = pneg %p197
        %p525 = pneg %p221
        %p526 = pneg %p218
        %p527 = pneg %p242
        %p528 = pneg %p239
        %p529 = pneg %p263
        %p530 = pneg %p260
        %p531 = pneg %p284
        %p532 = pneg %p281
        %p533 = pneg %p305
        %p534 = pneg %p302
        %p535 = pneg %p326
        %p536 = pneg %p323
        %p537 = pneg %p347
        %p538 = pneg %p344
        %p539 = pneg %p373
        %p540 = pneg %p370
        %s541 = sand.u32 %s360, 1
        %s542 = scalar_lea.sflag [#allocation4], %s541
        %s543 = sand.u32 %s360, 1
        %s544 = smul.addr %s543, 72
        %s545 = scalar_lea.vmem [#allocation10], %s544
        %s546 = smul.u32 18, %s32
        %p547 = scmp.lt.s32.totalorder %s546, 35
        %s548 = scalar_select %p547, %s546, 35
        %s549 = smul.addr %s548, 4
        %s550 = scalar_lea.vmem %s0, %s549
        %s551 = smul.u32 18, %s32
        %s552 = smul.u32 18, %s32
        %v554 = vld [vmem:[%s550] sm:$0xf]
        %v555 = vld [vmem:[%s550 + $0x4] sm:$0xf]
        %v556 = vld [vmem:[%s550 + $0x8] sm:$0xf]
        %v557 = vld [vmem:[%s550 + $0xc] sm:$0xf]
        %v558 = vld [vmem:[%s550 + $0x10] sm:$0xf]
        %v559 = vld [vmem:[%s550 + $0x14] sm:$0xf]
        %v560 = vld [vmem:[%s550 + $0x18] sm:$0xf]
        %v561 = vld [vmem:[%s550 + $0x1c] sm:$0xf]
        %v562 = vld [vmem:[%s550 + $0x20] sm:$0xf]
        %v563 = vld [vmem:[%s550 + $0x24] sm:$0xf]
        %v564 = vld [vmem:[%s550 + $0x28] sm:$0xf]
        %v565 = vld [vmem:[%s550 + $0x2c] sm:$0xf]
        %v566 = vld [vmem:[%s550 + $0x30] sm:$0xf]
        %v567 = vld [vmem:[%s550 + $0x34] sm:$0xf]
        %v568 = vld [vmem:[%s550 + $0x38] sm:$0xf]
        %v569 = vld [vmem:[%s550 + $0x3c] sm:$0xf]
        %v570 = vld [vmem:[%s550 + $0x40] sm:$0xf]
        %v571 = vld [vmem:[%s550 + $0x44] sm:$0xf]
        %v572 = vld [vmem:[%s1] sm:$0xff]
        %v573 = vld [vmem:[%s1 + $0x8] sm:$0xff]
        %v574 = vld [vmem:[%s1 + $0x10] sm:$0xff]
        %v575 = vld [vmem:[%s1 + $0x18] sm:$0xff]
        %v576 = vld [vmem:[%s1 + $0x20] sm:$0xff]
        %v577 = vld [vmem:[%s1 + $0x28] sm:$0xff]
        %v578 = vld [vmem:[%s1 + $0x30] sm:$0xff]
        %v579 = vld [vmem:[%s1 + $0x38] sm:$0xff]
        %v580 = vld [vmem:[%s1 + $0x40] sm:$0xff]
        %v581 = vld [vmem:[%s1 + $0x48] sm:$0x77]
        %v600 = vunpack.c.l.b16 %v554
        %v601 = vunpack.c.l.b16 %v555
        %v602 = vunpack.c.l.b16 %v556
        %v603 = vunpack.c.l.b16 %v557
        %v604 = vunpack.c.l.b16 %v558
        %v605 = vunpack.c.l.b16 %v559
        %v606 = vunpack.c.l.b16 %v560
        %v607 = vunpack.c.l.b16 %v561
        %v608 = vunpack.c.l.b16 %v562
        %v609 = vunpack.c.l.b16 %v563
        %v610 = vunpack.c.l.b16 %v564
        %v611 = vunpack.c.l.b16 %v565
        %v612 = vunpack.c.l.b16 %v566
        %v613 = vunpack.c.l.b16 %v567
        %v614 = vunpack.c.l.b16 %v568
        %v615 = vunpack.c.l.b16 %v569
        %v616 = vunpack.c.l.b16 %v570
        %v617 = vunpack.c.l.b16 %v571
        %v618 = vpack.c.b16 %v601, %v600
        %v619 = vpack.c.b16 %v603, %v602
        %v620 = vpack.c.b16 %v605, %v604
        %v621 = vpack.c.b16 %v607, %v606
        %v622 = vpack.c.b16 %v609, %v608
        %v623 = vpack.c.b16 %v611, %v610
        %v624 = vpack.c.b16 %v613, %v612
        %v625 = vpack.c.b16 %v615, %v614
        %v626 = vpack.c.b16 %v617, %v616
        %v637 = vunpack.c.l.b16 %v572
        %v638 = vunpack.c.h.b16 %v572
        %v639 = vunpack.c.l.b16 %v573
        %v640 = vunpack.c.h.b16 %v573
        %v641 = vunpack.c.l.b16 %v574
        %v642 = vunpack.c.h.b16 %v574
        %v643 = vunpack.c.l.b16 %v575
        %v644 = vunpack.c.h.b16 %v575
        %v645 = vunpack.c.l.b16 %v576
        %v646 = vunpack.c.h.b16 %v576
        %v647 = vunpack.c.l.b16 %v577
        %v648 = vunpack.c.h.b16 %v577
        %v649 = vunpack.c.l.b16 %v578
        %v650 = vunpack.c.h.b16 %v578
        %v651 = vunpack.c.l.b16 %v579
        %v652 = vunpack.c.h.b16 %v579
        %v653 = vunpack.c.l.b16 %v580
        %v654 = vunpack.c.h.b16 %v580
        %v655 = vunpack.c.l.b16 %v581
        %v656 = vunpack.c.h.b16 %v581
        %v657 = vpack.c.b16 %v639, %v637
        %v658 = vpack.c.b16 %v640, %v638
        %v659 = vpack.c.b16 %v643, %v641
        %v660 = vpack.c.b16 %v644, %v642
        %v661 = vpack.c.b16 %v647, %v645
        %v662 = vpack.c.b16 %v648, %v646
        %v663 = vpack.c.b16 %v651, %v649
        %v664 = vpack.c.b16 %v652, %v650
        %v665 = vpack.c.b16 %v655, %v653
        %v666 = vpack.c.b16 %v656, %v654
        %vm675 = vcmask 637952
        %v677 = vsel %vm675, %v618, 0
        %v680 = vsel %vm675, %v619, 0
        %v683 = vsel %vm675, %v620, 0
        %v686 = vsel %vm675, %v621, 0
        %v689 = vsel %vm675, %v622, 0
        %v692 = vsel %vm675, %v623, 0
        %v695 = vsel %vm675, %v624, 0
        %v698 = vsel %vm675, %v625, 0
        %v701 = vsel %vm675, %v626, 0
        %vm703 = vcmask 1046528
        %v705 = vsel %vm703, %v665, 0
        %v708 = vsel %vm703, %v666, 0
        %710 = vmatprep.subr.bf16.mxu0 0
        %711 = vmatpush1.bf16.msra.mxu0 0
        %712 = vmatprep.subr.bf16.mxu0 0
        %713 = vmatpush1.bf16.msra.mxu0 0
        %714 = vmatprep.subr.bf16.mxu0 0
        %715 = vmatpush1.bf16.msra.mxu0 0
        %716 = vmatprep.subr.bf16.mxu0 %v708
        %717 = vmatpush1.bf16.msra.mxu0 %v705
        %718 = vmatprep.subr.bf16.mxu0 %v664
        %719 = vmatpush1.bf16.msra.mxu0 %v663
        %720 = vmatprep.subr.bf16.mxu0 %v662
        %721 = vmatpush1.bf16.msra.mxu0 %v661
        %722 = vmatprep.subr.bf16.mxu0 %v660
        %723 = vmatpush1.bf16.msra.mxu0 %v659
        %724 = vmatprep.subr.bf16.mxu0 %v658
        %725 = vmatpush1.bf16.msra.mxu0 %v657
        %726 = vmatprep.subr.bf16.mxu0 0
        %727 = vmatpush2.bf16.msra.mxu0 0
        %728 = vmatprep.subr.bf16.mxu0 0
        %729 = vmatpush2.bf16.msra.mxu0 0
        %730 = vmatprep.subr.bf16.mxu0 0
        %731 = vmatpush2.bf16.msra.mxu0 0
        %732 = vmatprep.subr.bf16.mxu0 0
        %733 = vmatpush2.bf16.msra.mxu0 0
        %734 = vmatprep.subr.bf16.mxu0 0
        %735 = vmatpush2.bf16.msra.mxu0 0
        %736 = vmatprep.subr.bf16.mxu0 0
        %737 = vmatpush2.bf16.msra.mxu0 0
        %738 = vmatprep.subr.bf16.mxu0 0
        %739 = vmatpush2.bf16.msra.mxu0 0
        %740 = vmatprep.subr.bf16.mxu0 0
        %741 = vmatpush2.bf16.msra.mxu0 0
        %742 = vmatprep.mubr.bf16.mxu0 0
        %743 = vmatmul.mubr.bf16.gmra.mxu0 %v677
        %v744 = vpop.f32.mrf.mxu0
        %v745 = vadd.f32 0.0, %v744
        %v746 = vpop.f32.mrf.mxu0
        %v747 = vadd.f32 0.0, %v746
        %v748 = vpop.f32.mrf.mxu0
        %v749 = vadd.f32 0.0, %v748
        %v750 = vpop.f32.mrf.mxu0
        %v751 = vadd.f32 0.0, %v750
        %752 = vmatprep.mubr.bf16.mxu0 0
        %753 = vmatmul.mubr.bf16.gmra.mxu0 %v680
        %v754 = vpop.f32.mrf.mxu0
        %v755 = vadd.f32 0.0, %v754
        %v756 = vpop.f32.mrf.mxu0
        %v757 = vadd.f32 0.0, %v756
        %v758 = vpop.f32.mrf.mxu0
        %v759 = vadd.f32 0.0, %v758
        %v760 = vpop.f32.mrf.mxu0
        %v761 = vadd.f32 0.0, %v760
        %762 = vmatprep.mubr.bf16.mxu0 0
        %763 = vmatmul.mubr.bf16.gmra.mxu0 %v683
        %v764 = vpop.f32.mrf.mxu0
        %v765 = vadd.f32 0.0, %v764
        %v766 = vpop.f32.mrf.mxu0
        %v767 = vadd.f32 0.0, %v766
        %v768 = vpop.f32.mrf.mxu0
        %v769 = vadd.f32 0.0, %v768
        %v770 = vpop.f32.mrf.mxu0
        %v771 = vadd.f32 0.0, %v770
        %772 = vmatprep.mubr.bf16.mxu0 0
        %773 = vmatmul.mubr.bf16.gmra.mxu0 %v686
        %v774 = vpop.f32.mrf.mxu0
        %v775 = vadd.f32 0.0, %v774
        %v776 = vpop.f32.mrf.mxu0
        %v777 = vadd.f32 0.0, %v776
        %v778 = vpop.f32.mrf.mxu0
        %v779 = vadd.f32 0.0, %v778
        %v780 = vpop.f32.mrf.mxu0
        %v781 = vadd.f32 0.0, %v780
        %782 = vmatprep.mubr.bf16.mxu0 0
        %783 = vmatmul.mubr.bf16.gmra.mxu0 %v689
        %v784 = vpop.f32.mrf.mxu0
        %v785 = vadd.f32 0.0, %v784
        %v786 = vpop.f32.mrf.mxu0
        %v787 = vadd.f32 0.0, %v786
        %v788 = vpop.f32.mrf.mxu0
        %v789 = vadd.f32 0.0, %v788
        %v790 = vpop.f32.mrf.mxu0
        %v791 = vadd.f32 0.0, %v790
        %792 = vmatprep.mubr.bf16.mxu0 0
        %793 = vmatmul.mubr.bf16.gmra.mxu0 %v692
        %v794 = vpop.f32.mrf.mxu0
        %v795 = vadd.f32 0.0, %v794
        %v796 = vpop.f32.mrf.mxu0
        %v797 = vadd.f32 0.0, %v796
        %v798 = vpop.f32.mrf.mxu0
        %v799 = vadd.f32 0.0, %v798
        %v800 = vpop.f32.mrf.mxu0
        %v801 = vadd.f32 0.0, %v800
        %802 = vmatprep.mubr.bf16.mxu0 0
        %803 = vmatmul.mubr.bf16.gmra.mxu0 %v695
        %v804 = vpop.f32.mrf.mxu0
        %v805 = vadd.f32 0.0, %v804
        %v806 = vpop.f32.mrf.mxu0
        %v807 = vadd.f32 0.0, %v806
        %v808 = vpop.f32.mrf.mxu0
        %v809 = vadd.f32 0.0, %v808
        %v810 = vpop.f32.mrf.mxu0
        %v811 = vadd.f32 0.0, %v810
        %812 = vmatprep.mubr.bf16.mxu0 0
        %813 = vmatmul.mubr.bf16.gmra.mxu0 %v698
        %v814 = vpop.f32.mrf.mxu0
        %v815 = vadd.f32 0.0, %v814
        %v816 = vpop.f32.mrf.mxu0
        %v817 = vadd.f32 0.0, %v816
        %v818 = vpop.f32.mrf.mxu0
        %v819 = vadd.f32 0.0, %v818
        %v820 = vpop.f32.mrf.mxu0
        %v821 = vadd.f32 0.0, %v820
        %822 = vmatprep.mubr.bf16.mxu0 0
        %823 = vmatmul.mubr.bf16.gmra.mxu0 %v701
        %v824 = vpop.f32.mrf.mxu0
        %v825 = vadd.f32 0.0, %v824
        %v826 = vpop.f32.mrf.mxu0
        %v827 = vadd.f32 0.0, %v826
        %v828 = vpop.f32.mrf.mxu0
        %v829 = vadd.f32 0.0, %v828
        %v830 = vpop.f32.mrf.mxu0
        %v831 = vadd.f32 0.0, %v830
        %832 = vdwg.mxu0
        %v833 = vld [vmem:[%s2] sm:$0x1]
        %v835 = vlaneseq
        %v836 = vshrl.u32 %v835, 7
        %v837 = vsub.s32 0, %v836
        %v838 = vrot.slane %v833, %v837
        %v840 = vadd.f32 %v745, %v838
        %v841 = vadd.f32 %v749, %v838
        %v842 = vadd.f32 %v755, %v838
        %v843 = vadd.f32 %v759, %v838
        %v844 = vadd.f32 %v765, %v838
        %v845 = vadd.f32 %v769, %v838
        %v846 = vadd.f32 %v775, %v838
        %v847 = vadd.f32 %v779, %v838
        %v848 = vadd.f32 %v785, %v838
        %v849 = vadd.f32 %v789, %v838
        %v850 = vadd.f32 %v795, %v838
        %v851 = vadd.f32 %v799, %v838
        %v852 = vadd.f32 %v805, %v838
        %v853 = vadd.f32 %v809, %v838
        %v854 = vadd.f32 %v815, %v838
        %v855 = vadd.f32 %v819, %v838
        %v856 = vadd.f32 %v825, %v838
        %v857 = vadd.f32 %v829, %v838
        %v858 = vmax.f32 %v840, 0.0
        %v859 = vmax.f32 %v841, 0.0
        %v860 = vmax.f32 %v842, 0.0
        %v861 = vmax.f32 %v843, 0.0
        %v862 = vmax.f32 %v844, 0.0
        %v863 = vmax.f32 %v845, 0.0
        %v864 = vmax.f32 %v846, 0.0
        %v865 = vmax.f32 %v847, 0.0
        %v866 = vmax.f32 %v848, 0.0
        %v867 = vmax.f32 %v849, 0.0
        %v868 = vmax.f32 %v850, 0.0
        %v869 = vmax.f32 %v851, 0.0
        %v870 = vmax.f32 %v852, 0.0
        %v871 = vmax.f32 %v853, 0.0
        %v872 = vmax.f32 %v854, 0.0
        %v873 = vmax.f32 %v855, 0.0
        %v874 = vmax.f32 %v856, 0.0
        %v875 = vmax.f32 %v857, 0.0
        %v876 = vpack.c.bf16 %v859, %v858
        %v877 = vpack.c.bf16 %v861, %v860
        %v878 = vpack.c.bf16 %v863, %v862
        %v879 = vpack.c.bf16 %v865, %v864
        %v880 = vpack.c.bf16 %v867, %v866
        %v881 = vpack.c.bf16 %v869, %v868
        %v882 = vpack.c.bf16 %v871, %v870
        %v883 = vpack.c.bf16 %v873, %v872
        %v884 = vpack.c.bf16 %v875, %v874
        %v885 = vld [vmem:[%s3] sm:$0xf]
        %v886 = vld [vmem:[%s3 + $0x4] sm:$0xf]
        %v887 = vld [vmem:[%s3 + $0x8] sm:$0xf]
        %v888 = vld [vmem:[%s3 + $0xc] sm:$0xf]
        %v889 = vld [vmem:[%s3 + $0x10] sm:$0xf]
        %v890 = vld [vmem:[%s3 + $0x14] sm:$0xf]
        %v891 = vld [vmem:[%s3 + $0x18] sm:$0xf]
        %v892 = vld [vmem:[%s3 + $0x1c] sm:$0xf]
        %v893 = vld [vmem:[%s3 + $0x20] sm:$0xf]
        %v894 = vld [vmem:[%s3 + $0x24] sm:$0xf]
        %v895 = vld [vmem:[%s3 + $0x28] sm:$0xf]
        %v896 = vld [vmem:[%s3 + $0x2c] sm:$0xf]
        %v897 = vld [vmem:[%s3 + $0x30] sm:$0xf]
        %v898 = vld [vmem:[%s3 + $0x34] sm:$0xf]
        %v899 = vld [vmem:[%s3 + $0x38] sm:$0xf]
        %v900 = vld [vmem:[%s3 + $0x3c] sm:$0xf]
        %v901 = vld [vmem:[%s4] sm:$0x1]
        %v903 = vlaneseq
        %v904 = vshrl.u32 %v903, 7
        %v905 = vsub.s32 0, %v904
        %v906 = vrot.slane %v901, %v905
        %v924 = vunpack.c.l.b16 %v885
        %v925 = vunpack.c.l.b16 %v886
        %v926 = vunpack.c.l.b16 %v887
        %v927 = vunpack.c.l.b16 %v888
        %v928 = vunpack.c.l.b16 %v889
        %v929 = vunpack.c.l.b16 %v890
        %v930 = vunpack.c.l.b16 %v891
        %v931 = vunpack.c.l.b16 %v892
        %v932 = vunpack.c.l.b16 %v893
        %v933 = vunpack.c.l.b16 %v894
        %v934 = vunpack.c.l.b16 %v895
        %v935 = vunpack.c.l.b16 %v896
        %v936 = vunpack.c.l.b16 %v897
        %v937 = vunpack.c.l.b16 %v898
        %v938 = vunpack.c.l.b16 %v899
        %v939 = vunpack.c.l.b16 %v900
        %v940 = vpack.c.b16 %v925, %v924
        %v941 = vpack.c.b16 %v927, %v926
        %v942 = vpack.c.b16 %v929, %v928
        %v943 = vpack.c.b16 %v931, %v930
        %v944 = vpack.c.b16 %v933, %v932
        %v945 = vpack.c.b16 %v935, %v934
        %v946 = vpack.c.b16 %v937, %v936
        %v947 = vpack.c.b16 %v939, %v938
        %956 = vmatprep.subr.bf16.mxu0 0
        %957 = vmatpush1.bf16.msra.mxu0 %v947
        %958 = vmatprep.subr.bf16.mxu0 0
        %959 = vmatpush1.bf16.msra.mxu0 %v946
        %960 = vmatprep.subr.bf16.mxu0 0
        %961 = vmatpush1.bf16.msra.mxu0 %v945
        %962 = vmatprep.subr.bf16.mxu0 0
        %963 = vmatpush1.bf16.msra.mxu0 %v944
        %964 = vmatprep.subr.bf16.mxu0 0
        %965 = vmatpush1.bf16.msra.mxu0 %v943
        %966 = vmatprep.subr.bf16.mxu0 0
        %967 = vmatpush1.bf16.msra.mxu0 %v942
        %968 = vmatprep.subr.bf16.mxu0 0
        %969 = vmatpush1.bf16.msra.mxu0 %v941
        %970 = vmatprep.subr.bf16.mxu0 0
        %971 = vmatpush1.bf16.msra.mxu0 %v940
        %972 = vmatprep.subr.bf16.mxu0 0
        %973 = vmatpush2.bf16.msra.mxu0 0
        %974 = vmatprep.subr.bf16.mxu0 0
        %975 = vmatpush2.bf16.msra.mxu0 0
        %976 = vmatprep.subr.bf16.mxu0 0
        %977 = vmatpush2.bf16.msra.mxu0 0
        %978 = vmatprep.subr.bf16.mxu0 0
        %979 = vmatpush2.bf16.msra.mxu0 0
        %980 = vmatprep.subr.bf16.mxu0 0
        %981 = vmatpush2.bf16.msra.mxu0 0
        %982 = vmatprep.subr.bf16.mxu0 0
        %983 = vmatpush2.bf16.msra.mxu0 0
        %984 = vmatprep.subr.bf16.mxu0 0
        %985 = vmatpush2.bf16.msra.mxu0 0
        %986 = vmatprep.subr.bf16.mxu0 0
        %987 = vmatpush2.bf16.msra.mxu0 0
        %988 = vmatprep.mubr.bf16.mxu0 0
        %989 = vmatmul.mubr.bf16.gmra.mxu0 %v876
        %v990 = vpop.f32.mrf.mxu0
        %v991 = vadd.f32 %v906, %v990
        %v992 = vpop.f32.mrf.mxu0
        %v993 = vpop.f32.mrf.mxu0
        %v994 = vadd.f32 %v906, %v993
        %v995 = vpop.f32.mrf.mxu0
        %996 = vmatprep.mubr.bf16.mxu0 0
        %997 = vmatmul.mubr.bf16.gmra.mxu0 %v877
        %v998 = vpop.f32.mrf.mxu0
        %v999 = vadd.f32 %v906, %v998
        %v1000 = vpop.f32.mrf.mxu0
        %v1001 = vpop.f32.mrf.mxu0
        %v1002 = vadd.f32 %v906, %v1001
        %v1003 = vpop.f32.mrf.mxu0
        %1004 = vmatprep.mubr.bf16.mxu0 0
        %1005 = vmatmul.mubr.bf16.gmra.mxu0 %v878
        %v1006 = vpop.f32.mrf.mxu0
        %v1007 = vadd.f32 %v906, %v1006
        %v1008 = vpop.f32.mrf.mxu0
        %v1009 = vpop.f32.mrf.mxu0
        %v1010 = vadd.f32 %v906, %v1009
        %v1011 = vpop.f32.mrf.mxu0
        %1012 = vmatprep.mubr.bf16.mxu0 0
        %1013 = vmatmul.mubr.bf16.gmra.mxu0 %v879
        %v1014 = vpop.f32.mrf.mxu0
        %v1015 = vadd.f32 %v906, %v1014
        %v1016 = vpop.f32.mrf.mxu0
        %v1017 = vpop.f32.mrf.mxu0
        %v1018 = vadd.f32 %v906, %v1017
        %v1019 = vpop.f32.mrf.mxu0
        %1020 = vmatprep.mubr.bf16.mxu0 0
        %1021 = vmatmul.mubr.bf16.gmra.mxu0 %v880
        %v1022 = vpop.f32.mrf.mxu0
        %v1023 = vadd.f32 %v906, %v1022
        %v1024 = vpop.f32.mrf.mxu0
        %v1025 = vpop.f32.mrf.mxu0
        %v1026 = vadd.f32 %v906, %v1025
        %v1027 = vpop.f32.mrf.mxu0
        %1028 = vmatprep.mubr.bf16.mxu0 0
        %1029 = vmatmul.mubr.bf16.gmra.mxu0 %v881
        %v1030 = vpop.f32.mrf.mxu0
        %v1031 = vadd.f32 %v906, %v1030
        %v1032 = vpop.f32.mrf.mxu0
        %v1033 = vpop.f32.mrf.mxu0
        %v1034 = vadd.f32 %v906, %v1033
        %v1035 = vpop.f32.mrf.mxu0
        %1036 = vmatprep.mubr.bf16.mxu0 0
        %1037 = vmatmul.mubr.bf16.gmra.mxu0 %v882
        %v1038 = vpop.f32.mrf.mxu0
        %v1039 = vadd.f32 %v906, %v1038
        %v1040 = vpop.f32.mrf.mxu0
        %v1041 = vpop.f32.mrf.mxu0
        %v1042 = vadd.f32 %v906, %v1041
        %v1043 = vpop.f32.mrf.mxu0
        %1044 = vmatprep.mubr.bf16.mxu0 0
        %1045 = vmatmul.mubr.bf16.gmra.mxu0 %v883
        %v1046 = vpop.f32.mrf.mxu0
        %v1047 = vadd.f32 %v906, %v1046
        %v1048 = vpop.f32.mrf.mxu0
        %v1049 = vpop.f32.mrf.mxu0
        %v1050 = vadd.f32 %v906, %v1049
        %v1051 = vpop.f32.mrf.mxu0
        %1052 = vmatprep.mubr.bf16.mxu0 0
        %1053 = vmatmul.mubr.bf16.gmra.mxu0 %v884
        %v1054 = vpop.f32.mrf.mxu0
        %v1055 = vadd.f32 %v906, %v1054
        %v1056 = vpop.f32.mrf.mxu0
        %v1057 = vpop.f32.mrf.mxu0
        %v1058 = vadd.f32 %v906, %v1057
        %v1059 = vpop.f32.mrf.mxu0
        %1060 = vdwg.mxu0
        %v1061 = vmax.f32 %v991, 0.0
        %v1062 = vmax.f32 %v994, 0.0
        %v1063 = vmax.f32 %v999, 0.0
        %v1064 = vmax.f32 %v1002, 0.0
        %v1065 = vmax.f32 %v1007, 0.0
        %v1066 = vmax.f32 %v1010, 0.0
        %v1067 = vmax.f32 %v1015, 0.0
        %v1068 = vmax.f32 %v1018, 0.0
        %v1069 = vmax.f32 %v1023, 0.0
        %v1070 = vmax.f32 %v1026, 0.0
        %v1071 = vmax.f32 %v1031, 0.0
        %v1072 = vmax.f32 %v1034, 0.0
        %v1073 = vmax.f32 %v1039, 0.0
        %v1074 = vmax.f32 %v1042, 0.0
        %v1075 = vmax.f32 %v1047, 0.0
        %v1076 = vmax.f32 %v1050, 0.0
        %v1077 = vmax.f32 %v1055, 0.0
        %v1078 = vmax.f32 %v1058, 0.0
        %v1079 = vpack.c.bf16 %v1062, %v1061
        %v1080 = vpack.c.bf16 %v1064, %v1063
        %v1081 = vpack.c.bf16 %v1066, %v1065
        %v1082 = vpack.c.bf16 %v1068, %v1067
        %v1083 = vpack.c.bf16 %v1070, %v1069
        %v1084 = vpack.c.bf16 %v1072, %v1071
        %v1085 = vpack.c.bf16 %v1074, %v1073
        %v1086 = vpack.c.bf16 %v1076, %v1075
        %v1087 = vpack.c.bf16 %v1078, %v1077
        %v1088 = vld [vmem:[%s5] sm:$0xf]
        %v1089 = vld [vmem:[%s5 + $0x4] sm:$0xf]
        %v1090 = vld [vmem:[%s5 + $0x8] sm:$0xf]
        %v1091 = vld [vmem:[%s5 + $0xc] sm:$0xf]
        %v1092 = vld [vmem:[%s5 + $0x10] sm:$0xf]
        %v1093 = vld [vmem:[%s5 + $0x14] sm:$0xf]
        %v1094 = vld [vmem:[%s5 + $0x18] sm:$0xf]
        %v1095 = vld [vmem:[%s5 + $0x1c] sm:$0xf]
        %v1096 = vld [vmem:[%s5 + $0x20] sm:$0xf]
        %v1097 = vld [vmem:[%s5 + $0x24] sm:$0xf]
        %v1098 = vld [vmem:[%s5 + $0x28] sm:$0xf]
        %v1099 = vld [vmem:[%s5 + $0x2c] sm:$0xf]
        %v1100 = vld [vmem:[%s5 + $0x30] sm:$0xf]
        %v1101 = vld [vmem:[%s5 + $0x34] sm:$0xf]
        %v1102 = vld [vmem:[%s5 + $0x38] sm:$0xf]
        %v1103 = vld [vmem:[%s5 + $0x3c] sm:$0xf]
        %v1104 = vld [vmem:[#allocation2] sm:$0x1]
        %v1106 = vlaneseq
        %v1107 = vshrl.u32 %v1106, 7
        %v1108 = vsub.s32 0, %v1107
        %v1109 = vrot.slane %v1104, %v1108
        %v1127 = vunpack.c.l.b16 %v1088
        %v1128 = vunpack.c.l.b16 %v1089
        %v1129 = vunpack.c.l.b16 %v1090
        %v1130 = vunpack.c.l.b16 %v1091
        %v1131 = vunpack.c.l.b16 %v1092
        %v1132 = vunpack.c.l.b16 %v1093
        %v1133 = vunpack.c.l.b16 %v1094
        %v1134 = vunpack.c.l.b16 %v1095
        %v1135 = vunpack.c.l.b16 %v1096
        %v1136 = vunpack.c.l.b16 %v1097
        %v1137 = vunpack.c.l.b16 %v1098
        %v1138 = vunpack.c.l.b16 %v1099
        %v1139 = vunpack.c.l.b16 %v1100
        %v1140 = vunpack.c.l.b16 %v1101
        %v1141 = vunpack.c.l.b16 %v1102
        %v1142 = vunpack.c.l.b16 %v1103
        %v1143 = vpack.c.b16 %v1128, %v1127
        %v1144 = vpack.c.b16 %v1130, %v1129
        %v1145 = vpack.c.b16 %v1132, %v1131
        %v1146 = vpack.c.b16 %v1134, %v1133
        %v1147 = vpack.c.b16 %v1136, %v1135
        %v1148 = vpack.c.b16 %v1138, %v1137
        %v1149 = vpack.c.b16 %v1140, %v1139
        %v1150 = vpack.c.b16 %v1142, %v1141
        %1159 = vmatprep.subr.bf16.mxu0 0
        %1160 = vmatpush1.bf16.msra.mxu0 %v1150
        %1161 = vmatprep.subr.bf16.mxu0 0
        %1162 = vmatpush1.bf16.msra.mxu0 %v1149
        %1163 = vmatprep.subr.bf16.mxu0 0
        %1164 = vmatpush1.bf16.msra.mxu0 %v1148
        %1165 = vmatprep.subr.bf16.mxu0 0
        %1166 = vmatpush1.bf16.msra.mxu0 %v1147
        %1167 = vmatprep.subr.bf16.mxu0 0
        %1168 = vmatpush1.bf16.msra.mxu0 %v1146
        %1169 = vmatprep.subr.bf16.mxu0 0
        %1170 = vmatpush1.bf16.msra.mxu0 %v1145
        %1171 = vmatprep.subr.bf16.mxu0 0
        %1172 = vmatpush1.bf16.msra.mxu0 %v1144
        %1173 = vmatprep.subr.bf16.mxu0 0
        %1174 = vmatpush1.bf16.msra.mxu0 %v1143
        %1175 = vmatprep.subr.bf16.mxu0 0
        %1176 = vmatpush2.bf16.msra.mxu0 0
        %1177 = vmatprep.subr.bf16.mxu0 0
        %1178 = vmatpush2.bf16.msra.mxu0 0
        %1179 = vmatprep.subr.bf16.mxu0 0
        %1180 = vmatpush2.bf16.msra.mxu0 0
        %1181 = vmatprep.subr.bf16.mxu0 0
        %1182 = vmatpush2.bf16.msra.mxu0 0
        %1183 = vmatprep.subr.bf16.mxu0 0
        %1184 = vmatpush2.bf16.msra.mxu0 0
        %1185 = vmatprep.subr.bf16.mxu0 0
        %1186 = vmatpush2.bf16.msra.mxu0 0
        %1187 = vmatprep.subr.bf16.mxu0 0
        %1188 = vmatpush2.bf16.msra.mxu0 0
        %1189 = vmatprep.subr.bf16.mxu0 0
        %1190 = vmatpush2.bf16.msra.mxu0 0
        %1191 = vmatprep.mubr.bf16.mxu0 0
        %1192 = vmatmul.mubr.bf16.gmra.mxu0 %v1079
        %v1193 = vpop.f32.mrf.mxu0
        %v1194 = vadd.f32 %v1109, %v1193
        %v1195 = vpop.f32.mrf.mxu0
        %v1196 = vpop.f32.mrf.mxu0
        %v1197 = vadd.f32 %v1109, %v1196
        %v1198 = vpop.f32.mrf.mxu0
        %1199 = vmatprep.mubr.bf16.mxu0 0
        %1200 = vmatmul.mubr.bf16.gmra.mxu0 %v1080
        %v1201 = vpop.f32.mrf.mxu0
        %v1202 = vadd.f32 %v1109, %v1201
        %v1203 = vpop.f32.mrf.mxu0
        %v1204 = vpop.f32.mrf.mxu0
        %v1205 = vadd.f32 %v1109, %v1204
        %v1206 = vpop.f32.mrf.mxu0
        %1207 = vmatprep.mubr.bf16.mxu0 0
        %1208 = vmatmul.mubr.bf16.gmra.mxu0 %v1081
        %v1209 = vpop.f32.mrf.mxu0
        %v1210 = vadd.f32 %v1109, %v1209
        %v1211 = vpop.f32.mrf.mxu0
        %v1212 = vpop.f32.mrf.mxu0
        %v1213 = vadd.f32 %v1109, %v1212
        %v1214 = vpop.f32.mrf.mxu0
        %1215 = vmatprep.mubr.bf16.mxu0 0
        %1216 = vmatmul.mubr.bf16.gmra.mxu0 %v1082
        %v1217 = vpop.f32.mrf.mxu0
        %v1218 = vadd.f32 %v1109, %v1217
        %v1219 = vpop.f32.mrf.mxu0
        %v1220 = vpop.f32.mrf.mxu0
        %v1221 = vadd.f32 %v1109, %v1220
        %v1222 = vpop.f32.mrf.mxu0
        %1223 = vmatprep.mubr.bf16.mxu0 0
        %1224 = vmatmul.mubr.bf16.gmra.mxu0 %v1083
        %v1225 = vpop.f32.mrf.mxu0
        %v1226 = vadd.f32 %v1109, %v1225
        %v1227 = vpop.f32.mrf.mxu0
        %v1228 = vpop.f32.mrf.mxu0
        %v1229 = vadd.f32 %v1109, %v1228
        %v1230 = vpop.f32.mrf.mxu0
        %1231 = vmatprep.mubr.bf16.mxu0 0
        %1232 = vmatmul.mubr.bf16.gmra.mxu0 %v1084
        %v1233 = vpop.f32.mrf.mxu0
        %v1234 = vadd.f32 %v1109, %v1233
        %v1235 = vpop.f32.mrf.mxu0
        %v1236 = vpop.f32.mrf.mxu0
        %v1237 = vadd.f32 %v1109, %v1236
        %v1238 = vpop.f32.mrf.mxu0
        %1239 = vmatprep.mubr.bf16.mxu0 0
        %1240 = vmatmul.mubr.bf16.gmra.mxu0 %v1085
        %v1241 = vpop.f32.mrf.mxu0
        %v1242 = vadd.f32 %v1109, %v1241
        %v1243 = vpop.f32.mrf.mxu0
        %v1244 = vpop.f32.mrf.mxu0
        %v1245 = vadd.f32 %v1109, %v1244
        %v1246 = vpop.f32.mrf.mxu0
        %1247 = vmatprep.mubr.bf16.mxu0 0
        %1248 = vmatmul.mubr.bf16.gmra.mxu0 %v1086
        %v1249 = vpop.f32.mrf.mxu0
        %v1250 = vadd.f32 %v1109, %v1249
        %v1251 = vpop.f32.mrf.mxu0
        %v1252 = vpop.f32.mrf.mxu0
        %v1253 = vadd.f32 %v1109, %v1252
        %v1254 = vpop.f32.mrf.mxu0
        %1255 = vmatprep.mubr.bf16.mxu0 0
        %1256 = vmatmul.mubr.bf16.gmra.mxu0 %v1087
        %v1257 = vpop.f32.mrf.mxu0
        %v1258 = vadd.f32 %v1109, %v1257
        %v1259 = vpop.f32.mrf.mxu0
        %v1260 = vpop.f32.mrf.mxu0
        %v1261 = vadd.f32 %v1109, %v1260
        %v1262 = vpop.f32.mrf.mxu0
        %1263 = vdwg.mxu0
        %v1264 = vmax.f32 %v1194, 0.0
        %v1265 = vmax.f32 %v1197, 0.0
        %v1266 = vmax.f32 %v1202, 0.0
        %v1267 = vmax.f32 %v1205, 0.0
        %v1268 = vmax.f32 %v1210, 0.0
        %v1269 = vmax.f32 %v1213, 0.0
        %v1270 = vmax.f32 %v1218, 0.0
        %v1271 = vmax.f32 %v1221, 0.0
        %v1272 = vmax.f32 %v1226, 0.0
        %v1273 = vmax.f32 %v1229, 0.0
        %v1274 = vmax.f32 %v1234, 0.0
        %v1275 = vmax.f32 %v1237, 0.0
        %v1276 = vmax.f32 %v1242, 0.0
        %v1277 = vmax.f32 %v1245, 0.0
        %v1278 = vmax.f32 %v1250, 0.0
        %v1279 = vmax.f32 %v1253, 0.0
        %v1280 = vmax.f32 %v1258, 0.0
        %v1281 = vmax.f32 %v1261, 0.0
        %v1282 = vpack.c.bf16 %v1265, %v1264
        %v1283 = vpack.c.bf16 %v1267, %v1266
        %v1284 = vpack.c.bf16 %v1269, %v1268
        %v1285 = vpack.c.bf16 %v1271, %v1270
        %v1286 = vpack.c.bf16 %v1273, %v1272
        %v1287 = vpack.c.bf16 %v1275, %v1274
        %v1288 = vpack.c.bf16 %v1277, %v1276
        %v1289 = vpack.c.bf16 %v1279, %v1278
        %v1290 = vpack.c.bf16 %v1281, %v1280
        %v1291 = vld [vmem:[%s7] sm:$0xf]
        %v1292 = vld [vmem:[%s7 + $0x4] sm:$0xf]
        %v1293 = vld [vmem:[%s7 + $0x8] sm:$0xf]
        %v1294 = vld [vmem:[%s7 + $0xc] sm:$0xf]
        %v1295 = vld [vmem:[%s7 + $0x10] sm:$0xf]
        %v1296 = vld [vmem:[%s7 + $0x14] sm:$0xf]
        %v1297 = vld [vmem:[%s7 + $0x18] sm:$0xf]
        %v1298 = vld [vmem:[%s7 + $0x1c] sm:$0xf]
        %v1299 = vld [vmem:[%s7 + $0x20] sm:$0xf]
        %v1300 = vld [vmem:[%s7 + $0x24] sm:$0xf]
        %v1301 = vld [vmem:[%s7 + $0x28] sm:$0xf]
        %v1302 = vld [vmem:[%s7 + $0x2c] sm:$0xf]
        %v1303 = vld [vmem:[%s7 + $0x30] sm:$0xf]
        %v1304 = vld [vmem:[%s7 + $0x34] sm:$0xf]
        %v1305 = vld [vmem:[%s7 + $0x38] sm:$0xf]
        %v1306 = vld [vmem:[%s7 + $0x3c] sm:$0xf]
        %v1323 = vunpack.c.l.b16 %v1291
        %v1324 = vunpack.c.l.b16 %v1292
        %v1325 = vunpack.c.l.b16 %v1293
        %v1326 = vunpack.c.l.b16 %v1294
        %v1327 = vunpack.c.l.b16 %v1295
        %v1328 = vunpack.c.l.b16 %v1296
        %v1329 = vunpack.c.l.b16 %v1297
        %v1330 = vunpack.c.l.b16 %v1298
        %v1331 = vunpack.c.l.b16 %v1299
        %v1332 = vunpack.c.l.b16 %v1300
        %v1333 = vunpack.c.l.b16 %v1301
        %v1334 = vunpack.c.l.b16 %v1302
        %v1335 = vunpack.c.l.b16 %v1303
        %v1336 = vunpack.c.l.b16 %v1304
        %v1337 = vunpack.c.l.b16 %v1305
        %v1338 = vunpack.c.l.b16 %v1306
        %v1339 = vpack.c.b16 %v1324, %v1323
        %v1340 = vpack.c.b16 %v1326, %v1325
        %v1341 = vpack.c.b16 %v1328, %v1327
        %v1342 = vpack.c.b16 %v1330, %v1329
        %v1343 = vpack.c.b16 %v1332, %v1331
        %v1344 = vpack.c.b16 %v1334, %v1333
        %v1345 = vpack.c.b16 %v1336, %v1335
        %v1346 = vpack.c.b16 %v1338, %v1337
        %1355 = vmatprep.subr.bf16.mxu0 0
        %1356 = vmatpush1.bf16.msra.mxu0 %v1346
        %1357 = vmatprep.subr.bf16.mxu0 0
        %1358 = vmatpush1.bf16.msra.mxu0 %v1345
        %1359 = vmatprep.subr.bf16.mxu0 0
        %1360 = vmatpush1.bf16.msra.mxu0 %v1344
        %1361 = vmatprep.subr.bf16.mxu0 0
        %1362 = vmatpush1.bf16.msra.mxu0 %v1343
        %1363 = vmatprep.subr.bf16.mxu0 0
        %1364 = vmatpush1.bf16.msra.mxu0 %v1342
        %1365 = vmatprep.subr.bf16.mxu0 0
        %1366 = vmatpush1.bf16.msra.mxu0 %v1341
        %1367 = vmatprep.subr.bf16.mxu0 0
        %1368 = vmatpush1.bf16.msra.mxu0 %v1340
        %1369 = vmatprep.subr.bf16.mxu0 0
        %1370 = vmatpush1.bf16.msra.mxu0 %v1339
        %1371 = vmatprep.subr.bf16.mxu0 0
        %1372 = vmatpush2.bf16.msra.mxu0 0
        %1373 = vmatprep.subr.bf16.mxu0 0
        %1374 = vmatpush2.bf16.msra.mxu0 0
        %1375 = vmatprep.subr.bf16.mxu0 0
        %1376 = vmatpush2.bf16.msra.mxu0 0
        %1377 = vmatprep.subr.bf16.mxu0 0
        %1378 = vmatpush2.bf16.msra.mxu0 0
        %1379 = vmatprep.subr.bf16.mxu0 0
        %1380 = vmatpush2.bf16.msra.mxu0 0
        %1381 = vmatprep.subr.bf16.mxu0 0
        %1382 = vmatpush2.bf16.msra.mxu0 0
        %1383 = vmatprep.subr.bf16.mxu0 0
        %1384 = vmatpush2.bf16.msra.mxu0 0
        %1385 = vmatprep.subr.bf16.mxu0 0
        %1386 = vmatpush2.bf16.msra.mxu0 0
        %1387 = vmatprep.mubr.bf16.mxu0 0
        %1388 = vmatmul.mubr.bf16.gmra.mxu0 %v1282
        %v1389 = vpop.f32.mrf.mxu0
        %v1390 = vadd.f32 0.0, %v1389
        %v1391 = vpop.f32.mrf.mxu0
        %v1392 = vpop.f32.mrf.mxu0
        %v1393 = vadd.f32 0.0, %v1392
        %v1394 = vpop.f32.mrf.mxu0
        %1395 = vmatprep.mubr.bf16.mxu0 0
        %1396 = vmatmul.mubr.bf16.gmra.mxu0 %v1283
        %v1397 = vpop.f32.mrf.mxu0
        %v1398 = vadd.f32 0.0, %v1397
        %v1399 = vpop.f32.mrf.mxu0
        %v1400 = vpop.f32.mrf.mxu0
        %v1401 = vadd.f32 0.0, %v1400
        %v1402 = vpop.f32.mrf.mxu0
        %1403 = vmatprep.mubr.bf16.mxu0 0
        %1404 = vmatmul.mubr.bf16.gmra.mxu0 %v1284
        %v1405 = vpop.f32.mrf.mxu0
        %v1406 = vadd.f32 0.0, %v1405
        %v1407 = vpop.f32.mrf.mxu0
        %v1408 = vpop.f32.mrf.mxu0
        %v1409 = vadd.f32 0.0, %v1408
        %v1410 = vpop.f32.mrf.mxu0
        %1411 = vmatprep.mubr.bf16.mxu0 0
        %1412 = vmatmul.mubr.bf16.gmra.mxu0 %v1285
        %v1413 = vpop.f32.mrf.mxu0
        %v1414 = vadd.f32 0.0, %v1413
        %v1415 = vpop.f32.mrf.mxu0
        %v1416 = vpop.f32.mrf.mxu0
        %v1417 = vadd.f32 0.0, %v1416
        %v1418 = vpop.f32.mrf.mxu0
        %1419 = vmatprep.mubr.bf16.mxu0 0
        %1420 = vmatmul.mubr.bf16.gmra.mxu0 %v1286
        %v1421 = vpop.f32.mrf.mxu0
        %v1422 = vadd.f32 0.0, %v1421
        %v1423 = vpop.f32.mrf.mxu0
        %v1424 = vpop.f32.mrf.mxu0
        %v1425 = vadd.f32 0.0, %v1424
        %v1426 = vpop.f32.mrf.mxu0
        %1427 = vmatprep.mubr.bf16.mxu0 0
        %1428 = vmatmul.mubr.bf16.gmra.mxu0 %v1287
        %v1429 = vpop.f32.mrf.mxu0
        %v1430 = vadd.f32 0.0, %v1429
        %v1431 = vpop.f32.mrf.mxu0
        %v1432 = vpop.f32.mrf.mxu0
        %v1433 = vadd.f32 0.0, %v1432
        %v1434 = vpop.f32.mrf.mxu0
        %1435 = vmatprep.mubr.bf16.mxu0 0
        %1436 = vmatmul.mubr.bf16.gmra.mxu0 %v1288
        %v1437 = vpop.f32.mrf.mxu0
        %v1438 = vadd.f32 0.0, %v1437
        %v1439 = vpop.f32.mrf.mxu0
        %v1440 = vpop.f32.mrf.mxu0
        %v1441 = vadd.f32 0.0, %v1440
        %v1442 = vpop.f32.mrf.mxu0
        %1443 = vmatprep.mubr.bf16.mxu0 0
        %1444 = vmatmul.mubr.bf16.gmra.mxu0 %v1289
        %v1445 = vpop.f32.mrf.mxu0
        %v1446 = vadd.f32 0.0, %v1445
        %v1447 = vpop.f32.mrf.mxu0
        %v1448 = vpop.f32.mrf.mxu0
        %v1449 = vadd.f32 0.0, %v1448
        %v1450 = vpop.f32.mrf.mxu0
        %1451 = vmatprep.mubr.bf16.mxu0 0
        %1452 = vmatmul.mubr.bf16.gmra.mxu0 %v1290
        %v1453 = vpop.f32.mrf.mxu0
        %v1454 = vadd.f32 0.0, %v1453
        %v1455 = vpop.f32.mrf.mxu0
        %v1456 = vpop.f32.mrf.mxu0
        %v1457 = vadd.f32 0.0, %v1456
        %v1458 = vpop.f32.mrf.mxu0
        %1459 = vdwg.mxu0
        %v1460 = vadd.f32 %v747, %v1390
        %v1461 = vadd.f32 %v751, %v1393
        %v1462 = vadd.f32 %v757, %v1398
        %v1463 = vadd.f32 %v761, %v1401
        %v1464 = vadd.f32 %v767, %v1406
        %v1465 = vadd.f32 %v771, %v1409
        %v1466 = vadd.f32 %v777, %v1414
        %v1467 = vadd.f32 %v781, %v1417
        %v1468 = vadd.f32 %v787, %v1422
        %v1469 = vadd.f32 %v791, %v1425
        %v1470 = vadd.f32 %v797, %v1430
        %v1471 = vadd.f32 %v801, %v1433
        %v1472 = vadd.f32 %v807, %v1438
        %v1473 = vadd.f32 %v811, %v1441
        %v1474 = vadd.f32 %v817, %v1446
        %v1475 = vadd.f32 %v821, %v1449
        %v1476 = vadd.f32 %v827, %v1454
        %v1477 = vadd.f32 %v831, %v1457
        %v1478 = vld [vmem:[%s8] sm:$0x1]
        %v1480 = vlaneseq
        %v1481 = vshrl.u32 %v1480, 7
        %v1482 = vsub.s32 0, %v1481
        %v1483 = vrot.slane %v1478, %v1482
        %v1485 = vadd.f32 %v1460, %v1483
        %v1486 = vadd.f32 %v1461, %v1483
        %v1487 = vadd.f32 %v1462, %v1483
        %v1488 = vadd.f32 %v1463, %v1483
        %v1489 = vadd.f32 %v1464, %v1483
        %v1490 = vadd.f32 %v1465, %v1483
        %v1491 = vadd.f32 %v1466, %v1483
        %v1492 = vadd.f32 %v1467, %v1483
        %v1493 = vadd.f32 %v1468, %v1483
        %v1494 = vadd.f32 %v1469, %v1483
        %v1495 = vadd.f32 %v1470, %v1483
        %v1496 = vadd.f32 %v1471, %v1483
        %v1497 = vadd.f32 %v1472, %v1483
        %v1498 = vadd.f32 %v1473, %v1483
        %v1499 = vadd.f32 %v1474, %v1483
        %v1500 = vadd.f32 %v1475, %v1483
        %v1501 = vadd.f32 %v1476, %v1483
        %v1502 = vadd.f32 %v1477, %v1483
        %v1503 = vmax.f32 %v1485, 0.0
        %v1504 = vmax.f32 %v1486, 0.0
        %v1505 = vmax.f32 %v1487, 0.0
        %v1506 = vmax.f32 %v1488, 0.0
        %v1507 = vmax.f32 %v1489, 0.0
        %v1508 = vmax.f32 %v1490, 0.0
        %v1509 = vmax.f32 %v1491, 0.0
        %v1510 = vmax.f32 %v1492, 0.0
        %v1511 = vmax.f32 %v1493, 0.0
        %v1512 = vmax.f32 %v1494, 0.0
        %v1513 = vmax.f32 %v1495, 0.0
        %v1514 = vmax.f32 %v1496, 0.0
        %v1515 = vmax.f32 %v1497, 0.0
        %v1516 = vmax.f32 %v1498, 0.0
        %v1517 = vmax.f32 %v1499, 0.0
        %v1518 = vmax.f32 %v1500, 0.0
        %v1519 = vmax.f32 %v1501, 0.0
        %v1520 = vmax.f32 %v1502, 0.0
        %v1521 = vand.u32 2147483647, %v1485
        %v1522 = vand.u32 2147483647, %v1486
        %v1523 = vand.u32 2147483647, %v1487
        %v1524 = vand.u32 2147483647, %v1488
        %v1525 = vand.u32 2147483647, %v1489
        %v1526 = vand.u32 2147483647, %v1490
        %v1527 = vand.u32 2147483647, %v1491
        %v1528 = vand.u32 2147483647, %v1492
        %v1529 = vand.u32 2147483647, %v1493
        %v1530 = vand.u32 2147483647, %v1494
        %v1531 = vand.u32 2147483647, %v1495
        %v1532 = vand.u32 2147483647, %v1496
        %v1533 = vand.u32 2147483647, %v1497
        %v1534 = vand.u32 2147483647, %v1498
        %v1535 = vand.u32 2147483647, %v1499
        %v1536 = vand.u32 2147483647, %v1500
        %v1537 = vand.u32 2147483647, %v1501
        %v1538 = vand.u32 2147483647, %v1502
        %v1539 = vsub.f32 0.0, %v1521
        %v1540 = vsub.f32 0.0, %v1522
        %v1541 = vsub.f32 0.0, %v1523
        %v1542 = vsub.f32 0.0, %v1524
        %v1543 = vsub.f32 0.0, %v1525
        %v1544 = vsub.f32 0.0, %v1526
        %v1545 = vsub.f32 0.0, %v1527
        %v1546 = vsub.f32 0.0, %v1528
        %v1547 = vsub.f32 0.0, %v1529
        %v1548 = vsub.f32 0.0, %v1530
        %v1549 = vsub.f32 0.0, %v1531
        %v1550 = vsub.f32 0.0, %v1532
        %v1551 = vsub.f32 0.0, %v1533
        %v1552 = vsub.f32 0.0, %v1534
        %v1553 = vsub.f32 0.0, %v1535
        %v1554 = vsub.f32 0.0, %v1536
        %v1555 = vsub.f32 0.0, %v1537
        %v1556 = vsub.f32 0.0, %v1538
        %v1557 = vmul.f32 %v1539, 1.442695
        %v1558 = vpow.pop %v1557
        %v1559 = vmul.f32 %v1540, 1.442695
        %v1560 = vpow.pop %v1559
        %v1561 = vmul.f32 %v1541, 1.442695
        %v1562 = vpow.pop %v1561
        %v1563 = vmul.f32 %v1542, 1.442695
        %v1564 = vpow.pop %v1563
        %v1565 = vmul.f32 %v1543, 1.442695
        %v1566 = vpow.pop %v1565
        %v1567 = vmul.f32 %v1544, 1.442695
        %v1568 = vpow.pop %v1567
        %v1569 = vmul.f32 %v1545, 1.442695
        %v1570 = vpow.pop %v1569
        %v1571 = vmul.f32 %v1546, 1.442695
        %v1572 = vpow.pop %v1571
        %v1573 = vmul.f32 %v1547, 1.442695
        %v1574 = vpow.pop %v1573
        %v1575 = vmul.f32 %v1548, 1.442695
        %v1576 = vpow.pop %v1575
        %v1577 = vmul.f32 %v1549, 1.442695
        %v1578 = vpow.pop %v1577
        %v1579 = vmul.f32 %v1550, 1.442695
        %v1580 = vpow.pop %v1579
        %v1581 = vmul.f32 %v1551, 1.442695
        %v1582 = vpow.pop %v1581
        %v1583 = vmul.f32 %v1552, 1.442695
        %v1584 = vpow.pop %v1583
        %v1585 = vmul.f32 %v1553, 1.442695
        %v1586 = vpow.pop %v1585
        %v1587 = vmul.f32 %v1554, 1.442695
        %v1588 = vpow.pop %v1587
        %v1589 = vmul.f32 %v1555, 1.442695
        %v1590 = vpow.pop %v1589
        %v1591 = vmul.f32 %v1556, 1.442695
        %v1592 = vpow.pop %v1591
        %v1593 = vadd.f32 %v1558, 1.0
        %v1594 = vlog2.pop %v1593
        %v1595 = vmul.f32 %v1594, 0.6931472
        %v1596 = vmul.f32 -0.5, %v1558
        %v1597 = vadd.f32 %v1596, 1.0
        %v1598 = vmul.f32 %v1597, %v1558
        %v1599 = vand.u32 2147483647, %v1558
        %vm1600 = vcmp.lt.f32.partialorder %v1599, 0.0004427343
        %v1601 = vsel %vm1600, %v1598, %v1595
        %v1602 = vadd.f32 %v1560, 1.0
        %v1603 = vlog2.pop %v1602
        %v1604 = vmul.f32 %v1603, 0.6931472
        %v1605 = vmul.f32 -0.5, %v1560
        %v1606 = vadd.f32 %v1605, 1.0
        %v1607 = vmul.f32 %v1606, %v1560
        %v1608 = vand.u32 2147483647, %v1560
        %vm1609 = vcmp.lt.f32.partialorder %v1608, 0.0004427343
        %v1610 = vsel %vm1609, %v1607, %v1604
        %v1611 = vadd.f32 %v1562, 1.0
        %v1612 = vlog2.pop %v1611
        %v1613 = vmul.f32 %v1612, 0.6931472
        %v1614 = vmul.f32 -0.5, %v1562
        %v1615 = vadd.f32 %v1614, 1.0
        %v1616 = vmul.f32 %v1615, %v1562
        %v1617 = vand.u32 2147483647, %v1562
        %vm1618 = vcmp.lt.f32.partialorder %v1617, 0.0004427343
        %v1619 = vsel %vm1618, %v1616, %v1613
        %v1620 = vadd.f32 %v1564, 1.0
        %v1621 = vlog2.pop %v1620
        %v1622 = vmul.f32 %v1621, 0.6931472
        %v1623 = vmul.f32 -0.5, %v1564
        %v1624 = vadd.f32 %v1623, 1.0
        %v1625 = vmul.f32 %v1624, %v1564
        %v1626 = vand.u32 2147483647, %v1564
        %vm1627 = vcmp.lt.f32.partialorder %v1626, 0.0004427343
        %v1628 = vsel %vm1627, %v1625, %v1622
        %v1629 = vadd.f32 %v1566, 1.0
        %v1630 = vlog2.pop %v1629
        %v1631 = vmul.f32 %v1630, 0.6931472
        %v1632 = vmul.f32 -0.5, %v1566
        %v1633 = vadd.f32 %v1632, 1.0
        %v1634 = vmul.f32 %v1633, %v1566
        %v1635 = vand.u32 2147483647, %v1566
        %vm1636 = vcmp.lt.f32.partialorder %v1635, 0.0004427343
        %v1637 = vsel %vm1636, %v1634, %v1631
        %v1638 = vadd.f32 %v1568, 1.0
        %v1639 = vlog2.pop %v1638
        %v1640 = vmul.f32 %v1639, 0.6931472
        %v1641 = vmul.f32 -0.5, %v1568
        %v1642 = vadd.f32 %v1641, 1.0
        %v1643 = vmul.f32 %v1642, %v1568
        %v1644 = vand.u32 2147483647, %v1568
        %vm1645 = vcmp.lt.f32.partialorder %v1644, 0.0004427343
        %v1646 = vsel %vm1645, %v1643, %v1640
        %v1647 = vadd.f32 %v1570, 1.0
        %v1648 = vlog2.pop %v1647
        %v1649 = vmul.f32 %v1648, 0.6931472
        %v1650 = vmul.f32 -0.5, %v1570
        %v1651 = vadd.f32 %v1650, 1.0
        %v1652 = vmul.f32 %v1651, %v1570
        %v1653 = vand.u32 2147483647, %v1570
        %vm1654 = vcmp.lt.f32.partialorder %v1653, 0.0004427343
        %v1655 = vsel %vm1654, %v1652, %v1649
        %v1656 = vadd.f32 %v1572, 1.0
        %v1657 = vlog2.pop %v1656
        %v1658 = vmul.f32 %v1657, 0.6931472
        %v1659 = vmul.f32 -0.5, %v1572
        %v1660 = vadd.f32 %v1659, 1.0
        %v1661 = vmul.f32 %v1660, %v1572
        %v1662 = vand.u32 2147483647, %v1572
        %vm1663 = vcmp.lt.f32.partialorder %v1662, 0.0004427343
        %v1664 = vsel %vm1663, %v1661, %v1658
        %v1665 = vadd.f32 %v1574, 1.0
        %v1666 = vlog2.pop %v1665
        %v1667 = vmul.f32 %v1666, 0.6931472
        %v1668 = vmul.f32 -0.5, %v1574
        %v1669 = vadd.f32 %v1668, 1.0
        %v1670 = vmul.f32 %v1669, %v1574
        %v1671 = vand.u32 2147483647, %v1574
        %vm1672 = vcmp.lt.f32.partialorder %v1671, 0.0004427343
        %v1673 = vsel %vm1672, %v1670, %v1667
        %v1674 = vadd.f32 %v1576, 1.0
        %v1675 = vlog2.pop %v1674
        %v1676 = vmul.f32 %v1675, 0.6931472
        %v1677 = vmul.f32 -0.5, %v1576
        %v1678 = vadd.f32 %v1677, 1.0
        %v1679 = vmul.f32 %v1678, %v1576
        %v1680 = vand.u32 2147483647, %v1576
        %vm1681 = vcmp.lt.f32.partialorder %v1680, 0.0004427343
        %v1682 = vsel %vm1681, %v1679, %v1676
        %v1683 = vadd.f32 %v1578, 1.0
        %v1684 = vlog2.pop %v1683
        %v1685 = vmul.f32 %v1684, 0.6931472
        %v1686 = vmul.f32 -0.5, %v1578
        %v1687 = vadd.f32 %v1686, 1.0
        %v1688 = vmul.f32 %v1687, %v1578
        %v1689 = vand.u32 2147483647, %v1578
        %vm1690 = vcmp.lt.f32.partialorder %v1689, 0.0004427343
        %v1691 = vsel %vm1690, %v1688, %v1685
        %v1692 = vadd.f32 %v1580, 1.0
        %v1693 = vlog2.pop %v1692
        %v1694 = vmul.f32 %v1693, 0.6931472
        %v1695 = vmul.f32 -0.5, %v1580
        %v1696 = vadd.f32 %v1695, 1.0
        %v1697 = vmul.f32 %v1696, %v1580
        %v1698 = vand.u32 2147483647, %v1580
        %vm1699 = vcmp.lt.f32.partialorder %v1698, 0.0004427343
        %v1700 = vsel %vm1699, %v1697, %v1694
        %v1701 = vadd.f32 %v1582, 1.0
        %v1702 = vlog2.pop %v1701
        %v1703 = vmul.f32 %v1702, 0.6931472
        %v1704 = vmul.f32 -0.5, %v1582
        %v1705 = vadd.f32 %v1704, 1.0
        %v1706 = vmul.f32 %v1705, %v1582
        %v1707 = vand.u32 2147483647, %v1582
        %vm1708 = vcmp.lt.f32.partialorder %v1707, 0.0004427343
        %v1709 = vsel %vm1708, %v1706, %v1703
        %v1710 = vadd.f32 %v1584, 1.0
        %v1711 = vlog2.pop %v1710
        %v1712 = vmul.f32 %v1711, 0.6931472
        %v1713 = vmul.f32 -0.5, %v1584
        %v1714 = vadd.f32 %v1713, 1.0
        %v1715 = vmul.f32 %v1714, %v1584
        %v1716 = vand.u32 2147483647, %v1584
        %vm1717 = vcmp.lt.f32.partialorder %v1716, 0.0004427343
        %v1718 = vsel %vm1717, %v1715, %v1712
        %v1719 = vadd.f32 %v1586, 1.0
        %v1720 = vlog2.pop %v1719
        %v1721 = vmul.f32 %v1720, 0.6931472
        %v1722 = vmul.f32 -0.5, %v1586
        %v1723 = vadd.f32 %v1722, 1.0
        %v1724 = vmul.f32 %v1723, %v1586
        %v1725 = vand.u32 2147483647, %v1586
        %vm1726 = vcmp.lt.f32.partialorder %v1725, 0.0004427343
        %v1727 = vsel %vm1726, %v1724, %v1721
        %v1728 = vadd.f32 %v1588, 1.0
        %v1729 = vlog2.pop %v1728
        %v1730 = vmul.f32 %v1729, 0.6931472
        %v1731 = vmul.f32 -0.5, %v1588
        %v1732 = vadd.f32 %v1731, 1.0
        %v1733 = vmul.f32 %v1732, %v1588
        %v1734 = vand.u32 2147483647, %v1588
        %vm1735 = vcmp.lt.f32.partialorder %v1734, 0.0004427343
        %v1736 = vsel %vm1735, %v1733, %v1730
        %v1737 = vadd.f32 %v1590, 1.0
        %v1738 = vlog2.pop %v1737
        %v1739 = vmul.f32 %v1738, 0.6931472
        %v1740 = vmul.f32 -0.5, %v1590
        %v1741 = vadd.f32 %v1740, 1.0
        %v1742 = vmul.f32 %v1741, %v1590
        %v1743 = vand.u32 2147483647, %v1590
        %vm1744 = vcmp.lt.f32.partialorder %v1743, 0.0004427343
        %v1745 = vsel %vm1744, %v1742, %v1739
        %v1746 = vadd.f32 %v1592, 1.0
        %v1747 = vlog2.pop %v1746
        %v1748 = vmul.f32 %v1747, 0.6931472
        %v1749 = vmul.f32 -0.5, %v1592
        %v1750 = vadd.f32 %v1749, 1.0
        %v1751 = vmul.f32 %v1750, %v1592
        %v1752 = vand.u32 2147483647, %v1592
        %vm1753 = vcmp.lt.f32.partialorder %v1752, 0.0004427343
        %v1754 = vsel %vm1753, %v1751, %v1748
        %v1755 = vadd.f32 %v1503, %v1601
        %v1756 = vadd.f32 %v1504, %v1610
        %v1757 = vadd.f32 %v1505, %v1619
        %v1758 = vadd.f32 %v1506, %v1628
        %v1759 = vadd.f32 %v1507, %v1637
        %v1760 = vadd.f32 %v1508, %v1646
        %v1761 = vadd.f32 %v1509, %v1655
        %v1762 = vadd.f32 %v1510, %v1664
        %v1763 = vadd.f32 %v1511, %v1673
        %v1764 = vadd.f32 %v1512, %v1682
        %v1765 = vadd.f32 %v1513, %v1691
        %v1766 = vadd.f32 %v1514, %v1700
        %v1767 = vadd.f32 %v1515, %v1709
        %v1768 = vadd.f32 %v1516, %v1718
        %v1769 = vadd.f32 %v1517, %v1727
        %v1770 = vadd.f32 %v1518, %v1736
        %v1771 = vadd.f32 %v1519, %v1745
        %v1772 = vadd.f32 %v1520, %v1754
        %v1773 = vpack.c.bf16 %v1756, %v1755
        %v1774 = vpack.c.bf16 %v1758, %v1757
        %v1775 = vpack.c.bf16 %v1760, %v1759
        %v1776 = vpack.c.bf16 %v1762, %v1761
        %v1777 = vpack.c.bf16 %v1764, %v1763
        %v1778 = vpack.c.bf16 %v1766, %v1765
        %v1779 = vpack.c.bf16 %v1768, %v1767
        %v1780 = vpack.c.bf16 %v1770, %v1769
        %v1781 = vpack.c.bf16 %v1772, %v1771
        %v1782 = vld [vmem:[#allocation5] sm:$0xf]
        %v1783 = vld [vmem:[#allocation5 + $0x4] sm:$0xf]
        %v1784 = vld [vmem:[#allocation5 + $0x8] sm:$0xf]
        %v1785 = vld [vmem:[#allocation5 + $0xc] sm:$0xf]
        %v1786 = vld [vmem:[#allocation5 + $0x10] sm:$0xf]
        %v1787 = vld [vmem:[#allocation5 + $0x14] sm:$0xf]
        %v1788 = vld [vmem:[#allocation5 + $0x18] sm:$0xf]
        %v1789 = vld [vmem:[#allocation5 + $0x1c] sm:$0xf]
        %v1790 = vld [vmem:[#allocation5 + $0x20] sm:$0xf]
        %v1791 = vld [vmem:[#allocation5 + $0x24] sm:$0xf]
        %v1792 = vld [vmem:[#allocation5 + $0x28] sm:$0xf]
        %v1793 = vld [vmem:[#allocation5 + $0x2c] sm:$0xf]
        %v1794 = vld [vmem:[#allocation5 + $0x30] sm:$0xf]
        %v1795 = vld [vmem:[#allocation5 + $0x34] sm:$0xf]
        %v1796 = vld [vmem:[#allocation5 + $0x38] sm:$0xf]
        %v1797 = vld [vmem:[#allocation5 + $0x3c] sm:$0xf]
        %v1798 = vld [vmem:[%s10] sm:$0x1]
        %v1800 = vlaneseq
        %v1801 = vshrl.u32 %v1800, 7
        %v1802 = vsub.s32 0, %v1801
        %v1803 = vrot.slane %v1798, %v1802
        %v1821 = vunpack.c.l.b16 %v1782
        %v1822 = vunpack.c.l.b16 %v1783
        %v1823 = vunpack.c.l.b16 %v1784
        %v1824 = vunpack.c.l.b16 %v1785
        %v1825 = vunpack.c.l.b16 %v1786
        %v1826 = vunpack.c.l.b16 %v1787
        %v1827 = vunpack.c.l.b16 %v1788
        %v1828 = vunpack.c.l.b16 %v1789
        %v1829 = vunpack.c.l.b16 %v1790
        %v1830 = vunpack.c.l.b16 %v1791
        %v1831 = vunpack.c.l.b16 %v1792
        %v1832 = vunpack.c.l.b16 %v1793
        %v1833 = vunpack.c.l.b16 %v1794
        %v1834 = vunpack.c.l.b16 %v1795
        %v1835 = vunpack.c.l.b16 %v1796
        %v1836 = vunpack.c.l.b16 %v1797
        %v1837 = vpack.c.b16 %v1822, %v1821
        %v1838 = vpack.c.b16 %v1824, %v1823
        %v1839 = vpack.c.b16 %v1826, %v1825
        %v1840 = vpack.c.b16 %v1828, %v1827
        %v1841 = vpack.c.b16 %v1830, %v1829
        %v1842 = vpack.c.b16 %v1832, %v1831
        %v1843 = vpack.c.b16 %v1834, %v1833
        %v1844 = vpack.c.b16 %v1836, %v1835
        %1853 = vmatprep.subr.bf16.mxu0 0
        %1854 = vmatpush1.bf16.msra.mxu0 %v1844
        %1855 = vmatprep.subr.bf16.mxu0 0
        %1856 = vmatpush1.bf16.msra.mxu0 %v1843
        %1857 = vmatprep.subr.bf16.mxu0 0
        %1858 = vmatpush1.bf16.msra.mxu0 %v1842
        %1859 = vmatprep.subr.bf16.mxu0 0
        %1860 = vmatpush1.bf16.msra.mxu0 %v1841
        %1861 = vmatprep.subr.bf16.mxu0 0
        %1862 = vmatpush1.bf16.msra.mxu0 %v1840
        %1863 = vmatprep.subr.bf16.mxu0 0
        %1864 = vmatpush1.bf16.msra.mxu0 %v1839
        %1865 = vmatprep.subr.bf16.mxu0 0
        %1866 = vmatpush1.bf16.msra.mxu0 %v1838
        %1867 = vmatprep.subr.bf16.mxu0 0
        %1868 = vmatpush1.bf16.msra.mxu0 %v1837
        %1869 = vmatprep.subr.bf16.mxu0 0
        %1870 = vmatpush2.bf16.msra.mxu0 0
        %1871 = vmatprep.subr.bf16.mxu0 0
        %1872 = vmatpush2.bf16.msra.mxu0 0
        %1873 = vmatprep.subr.bf16.mxu0 0
        %1874 = vmatpush2.bf16.msra.mxu0 0
        %1875 = vmatprep.subr.bf16.mxu0 0
        %1876 = vmatpush2.bf16.msra.mxu0 0
        %1877 = vmatprep.subr.bf16.mxu0 0
        %1878 = vmatpush2.bf16.msra.mxu0 0
        %1879 = vmatprep.subr.bf16.mxu0 0
        %1880 = vmatpush2.bf16.msra.mxu0 0
        %1881 = vmatprep.subr.bf16.mxu0 0
        %1882 = vmatpush2.bf16.msra.mxu0 0
        %1883 = vmatprep.subr.bf16.mxu0 0
        %1884 = vmatpush2.bf16.msra.mxu0 0
        %1885 = vmatprep.mubr.bf16.mxu0 0
        %1886 = vmatmul.mubr.bf16.gmra.mxu0 %v1773
        %v1887 = vpop.f32.mrf.mxu0
        %v1888 = vadd.f32 %v1803, %v1887
        %v1889 = vpop.f32.mrf.mxu0
        %v1890 = vpop.f32.mrf.mxu0
        %v1891 = vadd.f32 %v1803, %v1890
        %v1892 = vpop.f32.mrf.mxu0
        %1893 = vmatprep.mubr.bf16.mxu0 0
        %1894 = vmatmul.mubr.bf16.gmra.mxu0 %v1774
        %v1895 = vpop.f32.mrf.mxu0
        %v1896 = vadd.f32 %v1803, %v1895
        %v1897 = vpop.f32.mrf.mxu0
        %v1898 = vpop.f32.mrf.mxu0
        %v1899 = vadd.f32 %v1803, %v1898
        %v1900 = vpop.f32.mrf.mxu0
        %1901 = vmatprep.mubr.bf16.mxu0 0
        %1902 = vmatmul.mubr.bf16.gmra.mxu0 %v1775
        %v1903 = vpop.f32.mrf.mxu0
        %v1904 = vadd.f32 %v1803, %v1903
        %v1905 = vpop.f32.mrf.mxu0
        %v1906 = vpop.f32.mrf.mxu0
        %v1907 = vadd.f32 %v1803, %v1906
        %v1908 = vpop.f32.mrf.mxu0
        %1909 = vmatprep.mubr.bf16.mxu0 0
        %1910 = vmatmul.mubr.bf16.gmra.mxu0 %v1776
        %v1911 = vpop.f32.mrf.mxu0
        %v1912 = vadd.f32 %v1803, %v1911
        %v1913 = vpop.f32.mrf.mxu0
        %v1914 = vpop.f32.mrf.mxu0
        %v1915 = vadd.f32 %v1803, %v1914
        %v1916 = vpop.f32.mrf.mxu0
        %1917 = vmatprep.mubr.bf16.mxu0 0
        %1918 = vmatmul.mubr.bf16.gmra.mxu0 %v1777
        %v1919 = vpop.f32.mrf.mxu0
        %v1920 = vadd.f32 %v1803, %v1919
        %v1921 = vpop.f32.mrf.mxu0
        %v1922 = vpop.f32.mrf.mxu0
        %v1923 = vadd.f32 %v1803, %v1922
        %v1924 = vpop.f32.mrf.mxu0
        %1925 = vmatprep.mubr.bf16.mxu0 0
        %1926 = vmatmul.mubr.bf16.gmra.mxu0 %v1778
        %v1927 = vpop.f32.mrf.mxu0
        %v1928 = vadd.f32 %v1803, %v1927
        %v1929 = vpop.f32.mrf.mxu0
        %v1930 = vpop.f32.mrf.mxu0
        %v1931 = vadd.f32 %v1803, %v1930
        %v1932 = vpop.f32.mrf.mxu0
        %1933 = vmatprep.mubr.bf16.mxu0 0
        %1934 = vmatmul.mubr.bf16.gmra.mxu0 %v1779
        %v1935 = vpop.f32.mrf.mxu0
        %v1936 = vadd.f32 %v1803, %v1935
        %v1937 = vpop.f32.mrf.mxu0
        %v1938 = vpop.f32.mrf.mxu0
        %v1939 = vadd.f32 %v1803, %v1938
        %v1940 = vpop.f32.mrf.mxu0
        %1941 = vmatprep.mubr.bf16.mxu0 0
        %1942 = vmatmul.mubr.bf16.gmra.mxu0 %v1780
        %v1943 = vpop.f32.mrf.mxu0
        %v1944 = vadd.f32 %v1803, %v1943
        %v1945 = vpop.f32.mrf.mxu0
        %v1946 = vpop.f32.mrf.mxu0
        %v1947 = vadd.f32 %v1803, %v1946
        %v1948 = vpop.f32.mrf.mxu0
        %1949 = vmatprep.mubr.bf16.mxu0 0
        %1950 = vmatmul.mubr.bf16.gmra.mxu0 %v1781
        %v1951 = vpop.f32.mrf.mxu0
        %v1952 = vadd.f32 %v1803, %v1951
        %v1953 = vpop.f32.mrf.mxu0
        %v1954 = vpop.f32.mrf.mxu0
        %v1955 = vadd.f32 %v1803, %v1954
        %v1956 = vpop.f32.mrf.mxu0
        %1957 = vdwg.mxu0
        %v1958 = vmax.f32 %v1888, 0.0
        %v1959 = vmax.f32 %v1891, 0.0
        %v1960 = vmax.f32 %v1896, 0.0
        %v1961 = vmax.f32 %v1899, 0.0
        %v1962 = vmax.f32 %v1904, 0.0
        %v1963 = vmax.f32 %v1907, 0.0
        %v1964 = vmax.f32 %v1912, 0.0
        %v1965 = vmax.f32 %v1915, 0.0
        %v1966 = vmax.f32 %v1920, 0.0
        %v1967 = vmax.f32 %v1923, 0.0
        %v1968 = vmax.f32 %v1928, 0.0
        %v1969 = vmax.f32 %v1931, 0.0
        %v1970 = vmax.f32 %v1936, 0.0
        %v1971 = vmax.f32 %v1939, 0.0
        %v1972 = vmax.f32 %v1944, 0.0
        %v1973 = vmax.f32 %v1947, 0.0
        %v1974 = vmax.f32 %v1952, 0.0
        %v1975 = vmax.f32 %v1955, 0.0
        %v1976 = vand.u32 2147483647, %v1888
        %v1977 = vand.u32 2147483647, %v1891
        %v1978 = vand.u32 2147483647, %v1896
        %v1979 = vand.u32 2147483647, %v1899
        %v1980 = vand.u32 2147483647, %v1904
        %v1981 = vand.u32 2147483647, %v1907
        %v1982 = vand.u32 2147483647, %v1912
        %v1983 = vand.u32 2147483647, %v1915
        %v1984 = vand.u32 2147483647, %v1920
        %v1985 = vand.u32 2147483647, %v1923
        %v1986 = vand.u32 2147483647, %v1928
        %v1987 = vand.u32 2147483647, %v1931
        %v1988 = vand.u32 2147483647, %v1936
        %v1989 = vand.u32 2147483647, %v1939
        %v1990 = vand.u32 2147483647, %v1944
        %v1991 = vand.u32 2147483647, %v1947
        %v1992 = vand.u32 2147483647, %v1952
        %v1993 = vand.u32 2147483647, %v1955
        %v1994 = vsub.f32 0.0, %v1976
        %v1995 = vsub.f32 0.0, %v1977
        %v1996 = vsub.f32 0.0, %v1978
        %v1997 = vsub.f32 0.0, %v1979
        %v1998 = vsub.f32 0.0, %v1980
        %v1999 = vsub.f32 0.0, %v1981
        %v2000 = vsub.f32 0.0, %v1982
        %v2001 = vsub.f32 0.0, %v1983
        %v2002 = vsub.f32 0.0, %v1984
        %v2003 = vsub.f32 0.0, %v1985
        %v2004 = vsub.f32 0.0, %v1986
        %v2005 = vsub.f32 0.0, %v1987
        %v2006 = vsub.f32 0.0, %v1988
        %v2007 = vsub.f32 0.0, %v1989
        %v2008 = vsub.f32 0.0, %v1990
        %v2009 = vsub.f32 0.0, %v1991
        %v2010 = vsub.f32 0.0, %v1992
        %v2011 = vsub.f32 0.0, %v1993
        %v2012 = vmul.f32 %v1994, 1.442695
        %v2013 = vpow.pop %v2012
        %v2014 = vmul.f32 %v1995, 1.442695
        %v2015 = vpow.pop %v2014
        %v2016 = vmul.f32 %v1996, 1.442695
        %v2017 = vpow.pop %v2016
        %v2018 = vmul.f32 %v1997, 1.442695
        %v2019 = vpow.pop %v2018
        %v2020 = vmul.f32 %v1998, 1.442695
        %v2021 = vpow.pop %v2020
        %v2022 = vmul.f32 %v1999, 1.442695
        %v2023 = vpow.pop %v2022
        %v2024 = vmul.f32 %v2000, 1.442695
        %v2025 = vpow.pop %v2024
        %v2026 = vmul.f32 %v2001, 1.442695
        %v2027 = vpow.pop %v2026
        %v2028 = vmul.f32 %v2002, 1.442695
        %v2029 = vpow.pop %v2028
        %v2030 = vmul.f32 %v2003, 1.442695
        %v2031 = vpow.pop %v2030
        %v2032 = vmul.f32 %v2004, 1.442695
        %v2033 = vpow.pop %v2032
        %v2034 = vmul.f32 %v2005, 1.442695
        %v2035 = vpow.pop %v2034
        %v2036 = vmul.f32 %v2006, 1.442695
        %v2037 = vpow.pop %v2036
        %v2038 = vmul.f32 %v2007, 1.442695
        %v2039 = vpow.pop %v2038
        %v2040 = vmul.f32 %v2008, 1.442695
        %v2041 = vpow.pop %v2040
        %v2042 = vmul.f32 %v2009, 1.442695
        %v2043 = vpow.pop %v2042
        %v2044 = vmul.f32 %v2010, 1.442695
        %v2045 = vpow.pop %v2044
        %v2046 = vmul.f32 %v2011, 1.442695
        %v2047 = vpow.pop %v2046
        %v2048 = vadd.f32 %v2013, 1.0
        %v2049 = vlog2.pop %v2048
        %v2050 = vmul.f32 %v2049, 0.6931472
        %v2051 = vmul.f32 -0.5, %v2013
        %v2052 = vadd.f32 %v2051, 1.0
        %v2053 = vmul.f32 %v2052, %v2013
        %v2054 = vand.u32 2147483647, %v2013
        %vm2055 = vcmp.lt.f32.partialorder %v2054, 0.0004427343
        %v2056 = vsel %vm2055, %v2053, %v2050
        %v2057 = vadd.f32 %v2015, 1.0
        %v2058 = vlog2.pop %v2057
        %v2059 = vmul.f32 %v2058, 0.6931472
        %v2060 = vmul.f32 -0.5, %v2015
        %v2061 = vadd.f32 %v2060, 1.0
        %v2062 = vmul.f32 %v2061, %v2015
        %v2063 = vand.u32 2147483647, %v2015
        %vm2064 = vcmp.lt.f32.partialorder %v2063, 0.0004427343
        %v2065 = vsel %vm2064, %v2062, %v2059
        %v2066 = vadd.f32 %v2017, 1.0
        %v2067 = vlog2.pop %v2066
        %v2068 = vmul.f32 %v2067, 0.6931472
        %v2069 = vmul.f32 -0.5, %v2017
        %v2070 = vadd.f32 %v2069, 1.0
        %v2071 = vmul.f32 %v2070, %v2017
        %v2072 = vand.u32 2147483647, %v2017
        %vm2073 = vcmp.lt.f32.partialorder %v2072, 0.0004427343
        %v2074 = vsel %vm2073, %v2071, %v2068
        %v2075 = vadd.f32 %v2019, 1.0
        %v2076 = vlog2.pop %v2075
        %v2077 = vmul.f32 %v2076, 0.6931472
        %v2078 = vmul.f32 -0.5, %v2019
        %v2079 = vadd.f32 %v2078, 1.0
        %v2080 = vmul.f32 %v2079, %v2019
        %v2081 = vand.u32 2147483647, %v2019
        %vm2082 = vcmp.lt.f32.partialorder %v2081, 0.0004427343
        %v2083 = vsel %vm2082, %v2080, %v2077
        %v2084 = vadd.f32 %v2021, 1.0
        %v2085 = vlog2.pop %v2084
        %v2086 = vmul.f32 %v2085, 0.6931472
        %v2087 = vmul.f32 -0.5, %v2021
        %v2088 = vadd.f32 %v2087, 1.0
        %v2089 = vmul.f32 %v2088, %v2021
        %v2090 = vand.u32 2147483647, %v2021
        %vm2091 = vcmp.lt.f32.partialorder %v2090, 0.0004427343
        %v2092 = vsel %vm2091, %v2089, %v2086
        %v2093 = vadd.f32 %v2023, 1.0
        %v2094 = vlog2.pop %v2093
        %v2095 = vmul.f32 %v2094, 0.6931472
        %v2096 = vmul.f32 -0.5, %v2023
        %v2097 = vadd.f32 %v2096, 1.0
        %v2098 = vmul.f32 %v2097, %v2023
        %v2099 = vand.u32 2147483647, %v2023
        %vm2100 = vcmp.lt.f32.partialorder %v2099, 0.0004427343
        %v2101 = vsel %vm2100, %v2098, %v2095
        %v2102 = vadd.f32 %v2025, 1.0
        %v2103 = vlog2.pop %v2102
        %v2104 = vmul.f32 %v2103, 0.6931472
        %v2105 = vmul.f32 -0.5, %v2025
        %v2106 = vadd.f32 %v2105, 1.0
        %v2107 = vmul.f32 %v2106, %v2025
        %v2108 = vand.u32 2147483647, %v2025
        %vm2109 = vcmp.lt.f32.partialorder %v2108, 0.0004427343
        %v2110 = vsel %vm2109, %v2107, %v2104
        %v2111 = vadd.f32 %v2027, 1.0
        %v2112 = vlog2.pop %v2111
        %v2113 = vmul.f32 %v2112, 0.6931472
        %v2114 = vmul.f32 -0.5, %v2027
        %v2115 = vadd.f32 %v2114, 1.0
        %v2116 = vmul.f32 %v2115, %v2027
        %v2117 = vand.u32 2147483647, %v2027
        %vm2118 = vcmp.lt.f32.partialorder %v2117, 0.0004427343
        %v2119 = vsel %vm2118, %v2116, %v2113
        %v2120 = vadd.f32 %v2029, 1.0
        %v2121 = vlog2.pop %v2120
        %v2122 = vmul.f32 %v2121, 0.6931472
        %v2123 = vmul.f32 -0.5, %v2029
        %v2124 = vadd.f32 %v2123, 1.0
        %v2125 = vmul.f32 %v2124, %v2029
        %v2126 = vand.u32 2147483647, %v2029
        %vm2127 = vcmp.lt.f32.partialorder %v2126, 0.0004427343
        %v2128 = vsel %vm2127, %v2125, %v2122
        %v2129 = vadd.f32 %v2031, 1.0
        %v2130 = vlog2.pop %v2129
        %v2131 = vmul.f32 %v2130, 0.6931472
        %v2132 = vmul.f32 -0.5, %v2031
        %v2133 = vadd.f32 %v2132, 1.0
        %v2134 = vmul.f32 %v2133, %v2031
        %v2135 = vand.u32 2147483647, %v2031
        %vm2136 = vcmp.lt.f32.partialorder %v2135, 0.0004427343
        %v2137 = vsel %vm2136, %v2134, %v2131
        %v2138 = vadd.f32 %v2033, 1.0
        %v2139 = vlog2.pop %v2138
        %v2140 = vmul.f32 %v2139, 0.6931472
        %v2141 = vmul.f32 -0.5, %v2033
        %v2142 = vadd.f32 %v2141, 1.0
        %v2143 = vmul.f32 %v2142, %v2033
        %v2144 = vand.u32 2147483647, %v2033
        %vm2145 = vcmp.lt.f32.partialorder %v2144, 0.0004427343
        %v2146 = vsel %vm2145, %v2143, %v2140
        %v2147 = vadd.f32 %v2035, 1.0
        %v2148 = vlog2.pop %v2147
        %v2149 = vmul.f32 %v2148, 0.6931472
        %v2150 = vmul.f32 -0.5, %v2035
        %v2151 = vadd.f32 %v2150, 1.0
        %v2152 = vmul.f32 %v2151, %v2035
        %v2153 = vand.u32 2147483647, %v2035
        %vm2154 = vcmp.lt.f32.partialorder %v2153, 0.0004427343
        %v2155 = vsel %vm2154, %v2152, %v2149
        %v2156 = vadd.f32 %v2037, 1.0
        %v2157 = vlog2.pop %v2156
        %v2158 = vmul.f32 %v2157, 0.6931472
        %v2159 = vmul.f32 -0.5, %v2037
        %v2160 = vadd.f32 %v2159, 1.0
        %v2161 = vmul.f32 %v2160, %v2037
        %v2162 = vand.u32 2147483647, %v2037
        %vm2163 = vcmp.lt.f32.partialorder %v2162, 0.0004427343
        %v2164 = vsel %vm2163, %v2161, %v2158
        %v2165 = vadd.f32 %v2039, 1.0
        %v2166 = vlog2.pop %v2165
        %v2167 = vmul.f32 %v2166, 0.6931472
        %v2168 = vmul.f32 -0.5, %v2039
        %v2169 = vadd.f32 %v2168, 1.0
        %v2170 = vmul.f32 %v2169, %v2039
        %v2171 = vand.u32 2147483647, %v2039
        %vm2172 = vcmp.lt.f32.partialorder %v2171, 0.0004427343
        %v2173 = vsel %vm2172, %v2170, %v2167
        %v2174 = vadd.f32 %v2041, 1.0
        %v2175 = vlog2.pop %v2174
        %v2176 = vmul.f32 %v2175, 0.6931472
        %v2177 = vmul.f32 -0.5, %v2041
        %v2178 = vadd.f32 %v2177, 1.0
        %v2179 = vmul.f32 %v2178, %v2041
        %v2180 = vand.u32 2147483647, %v2041
        %vm2181 = vcmp.lt.f32.partialorder %v2180, 0.0004427343
        %v2182 = vsel %vm2181, %v2179, %v2176
        %v2183 = vadd.f32 %v2043, 1.0
        %v2184 = vlog2.pop %v2183
        %v2185 = vmul.f32 %v2184, 0.6931472
        %v2186 = vmul.f32 -0.5, %v2043
        %v2187 = vadd.f32 %v2186, 1.0
        %v2188 = vmul.f32 %v2187, %v2043
        %v2189 = vand.u32 2147483647, %v2043
        %vm2190 = vcmp.lt.f32.partialorder %v2189, 0.0004427343
        %v2191 = vsel %vm2190, %v2188, %v2185
        %v2192 = vadd.f32 %v2045, 1.0
        %v2193 = vlog2.pop %v2192
        %v2194 = vmul.f32 %v2193, 0.6931472
        %v2195 = vmul.f32 -0.5, %v2045
        %v2196 = vadd.f32 %v2195, 1.0
        %v2197 = vmul.f32 %v2196, %v2045
        %v2198 = vand.u32 2147483647, %v2045
        %vm2199 = vcmp.lt.f32.partialorder %v2198, 0.0004427343
        %v2200 = vsel %vm2199, %v2197, %v2194
        %v2201 = vadd.f32 %v2047, 1.0
        %v2202 = vlog2.pop %v2201
        %v2203 = vmul.f32 %v2202, 0.6931472
        %v2204 = vmul.f32 -0.5, %v2047
        %v2205 = vadd.f32 %v2204, 1.0
        %v2206 = vmul.f32 %v2205, %v2047
        %v2207 = vand.u32 2147483647, %v2047
        %vm2208 = vcmp.lt.f32.partialorder %v2207, 0.0004427343
        %v2209 = vsel %vm2208, %v2206, %v2203
        %v2210 = vadd.f32 %v1958, %v2056
        %v2211 = vadd.f32 %v1959, %v2065
        %v2212 = vadd.f32 %v1960, %v2074
        %v2213 = vadd.f32 %v1961, %v2083
        %v2214 = vadd.f32 %v1962, %v2092
        %v2215 = vadd.f32 %v1963, %v2101
        %v2216 = vadd.f32 %v1964, %v2110
        %v2217 = vadd.f32 %v1965, %v2119
        %v2218 = vadd.f32 %v1966, %v2128
        %v2219 = vadd.f32 %v1967, %v2137
        %v2220 = vadd.f32 %v1968, %v2146
        %v2221 = vadd.f32 %v1969, %v2155
        %v2222 = vadd.f32 %v1970, %v2164
        %v2223 = vadd.f32 %v1971, %v2173
        %v2224 = vadd.f32 %v1972, %v2182
        %v2225 = vadd.f32 %v1973, %v2191
        %v2226 = vadd.f32 %v1974, %v2200
        %v2227 = vadd.f32 %v1975, %v2209
        %v2228 = vpack.c.bf16 %v2211, %v2210
        %v2229 = vpack.c.bf16 %v2213, %v2212
        %v2230 = vpack.c.bf16 %v2215, %v2214
        %v2231 = vpack.c.bf16 %v2217, %v2216
        %v2232 = vpack.c.bf16 %v2219, %v2218
        %v2233 = vpack.c.bf16 %v2221, %v2220
        %v2234 = vpack.c.bf16 %v2223, %v2222
        %v2235 = vpack.c.bf16 %v2225, %v2224
        %v2236 = vpack.c.bf16 %v2227, %v2226
        %v2237 = vld [vmem:[#allocation7] sm:$0xf]
        %v2238 = vld [vmem:[#allocation7 + $0x4] sm:$0xf]
        %v2239 = vld [vmem:[#allocation7 + $0x8] sm:$0xf]
        %v2240 = vld [vmem:[#allocation7 + $0xc] sm:$0xf]
        %v2241 = vld [vmem:[#allocation7 + $0x10] sm:$0xf]
        %v2242 = vld [vmem:[#allocation7 + $0x14] sm:$0xf]
        %v2243 = vld [vmem:[#allocation7 + $0x18] sm:$0xf]
        %v2244 = vld [vmem:[#allocation7 + $0x1c] sm:$0xf]
        %v2245 = vld [vmem:[#allocation7 + $0x20] sm:$0xf]
        %v2246 = vld [vmem:[#allocation7 + $0x24] sm:$0xf]
        %v2247 = vld [vmem:[#allocation7 + $0x28] sm:$0xf]
        %v2248 = vld [vmem:[#allocation7 + $0x2c] sm:$0xf]
        %v2249 = vld [vmem:[#allocation7 + $0x30] sm:$0xf]
        %v2250 = vld [vmem:[#allocation7 + $0x34] sm:$0xf]
        %v2251 = vld [vmem:[#allocation7 + $0x38] sm:$0xf]
        %v2252 = vld [vmem:[#allocation7 + $0x3c] sm:$0xf]
        %v2253 = vld [vmem:[%s12] sm:$0x1]
        %v2255 = vlaneseq
        %v2256 = vshrl.u32 %v2255, 7
        %v2257 = vsub.s32 0, %v2256
        %v2258 = vrot.slane %v2253, %v2257
        %v2276 = vunpack.c.l.b16 %v2237
        %v2277 = vunpack.c.l.b16 %v2238
        %v2278 = vunpack.c.l.b16 %v2239
        %v2279 = vunpack.c.l.b16 %v2240
        %v2280 = vunpack.c.l.b16 %v2241
        %v2281 = vunpack.c.l.b16 %v2242
        %v2282 = vunpack.c.l.b16 %v2243
        %v2283 = vunpack.c.l.b16 %v2244
        %v2284 = vunpack.c.l.b16 %v2245
        %v2285 = vunpack.c.l.b16 %v2246
        %v2286 = vunpack.c.l.b16 %v2247
        %v2287 = vunpack.c.l.b16 %v2248
        %v2288 = vunpack.c.l.b16 %v2249
        %v2289 = vunpack.c.l.b16 %v2250
        %v2290 = vunpack.c.l.b16 %v2251
        %v2291 = vunpack.c.l.b16 %v2252
        %v2292 = vpack.c.b16 %v2277, %v2276
        %v2293 = vpack.c.b16 %v2279, %v2278
        %v2294 = vpack.c.b16 %v2281, %v2280
        %v2295 = vpack.c.b16 %v2283, %v2282
        %v2296 = vpack.c.b16 %v2285, %v2284
        %v2297 = vpack.c.b16 %v2287, %v2286
        %v2298 = vpack.c.b16 %v2289, %v2288
        %v2299 = vpack.c.b16 %v2291, %v2290
        %2308 = vmatprep.subr.bf16.mxu0 0
        %2309 = vmatpush1.bf16.msra.mxu0 %v2299
        %2310 = vmatprep.subr.bf16.mxu0 0
        %2311 = vmatpush1.bf16.msra.mxu0 %v2298
        %2312 = vmatprep.subr.bf16.mxu0 0
        %2313 = vmatpush1.bf16.msra.mxu0 %v2297
        %2314 = vmatprep.subr.bf16.mxu0 0
        %2315 = vmatpush1.bf16.msra.mxu0 %v2296
        %2316 = vmatprep.subr.bf16.mxu0 0
        %2317 = vmatpush1.bf16.msra.mxu0 %v2295
        %2318 = vmatprep.subr.bf16.mxu0 0
        %2319 = vmatpush1.bf16.msra.mxu0 %v2294
        %2320 = vmatprep.subr.bf16.mxu0 0
        %2321 = vmatpush1.bf16.msra.mxu0 %v2293
        %2322 = vmatprep.subr.bf16.mxu0 0
        %2323 = vmatpush1.bf16.msra.mxu0 %v2292
        %2324 = vmatprep.subr.bf16.mxu0 0
        %2325 = vmatpush2.bf16.msra.mxu0 0
        %2326 = vmatprep.subr.bf16.mxu0 0
        %2327 = vmatpush2.bf16.msra.mxu0 0
        %2328 = vmatprep.subr.bf16.mxu0 0
        %2329 = vmatpush2.bf16.msra.mxu0 0
        %2330 = vmatprep.subr.bf16.mxu0 0
        %2331 = vmatpush2.bf16.msra.mxu0 0
        %2332 = vmatprep.subr.bf16.mxu0 0
        %2333 = vmatpush2.bf16.msra.mxu0 0
        %2334 = vmatprep.subr.bf16.mxu0 0
        %2335 = vmatpush2.bf16.msra.mxu0 0
        %2336 = vmatprep.subr.bf16.mxu0 0
        %2337 = vmatpush2.bf16.msra.mxu0 0
        %2338 = vmatprep.subr.bf16.mxu0 0
        %2339 = vmatpush2.bf16.msra.mxu0 0
        %2340 = vmatprep.mubr.bf16.mxu0 0
        %2341 = vmatmul.mubr.bf16.gmra.mxu0 %v2228
        %v2342 = vpop.f32.mrf.mxu0
        %v2343 = vadd.f32 %v2258, %v2342
        %v2344 = vpop.f32.mrf.mxu0
        %v2345 = vpop.f32.mrf.mxu0
        %v2346 = vadd.f32 %v2258, %v2345
        %v2347 = vpop.f32.mrf.mxu0
        %2348 = vmatprep.mubr.bf16.mxu0 0
        %2349 = vmatmul.mubr.bf16.gmra.mxu0 %v2229
        %v2350 = vpop.f32.mrf.mxu0
        %v2351 = vadd.f32 %v2258, %v2350
        %v2352 = vpop.f32.mrf.mxu0
        %v2353 = vpop.f32.mrf.mxu0
        %v2354 = vadd.f32 %v2258, %v2353
        %v2355 = vpop.f32.mrf.mxu0
        %2356 = vmatprep.mubr.bf16.mxu0 0
        %2357 = vmatmul.mubr.bf16.gmra.mxu0 %v2230
        %v2358 = vpop.f32.mrf.mxu0
        %v2359 = vadd.f32 %v2258, %v2358
        %v2360 = vpop.f32.mrf.mxu0
        %v2361 = vpop.f32.mrf.mxu0
        %v2362 = vadd.f32 %v2258, %v2361
        %v2363 = vpop.f32.mrf.mxu0
        %2364 = vmatprep.mubr.bf16.mxu0 0
        %2365 = vmatmul.mubr.bf16.gmra.mxu0 %v2231
        %v2366 = vpop.f32.mrf.mxu0
        %v2367 = vadd.f32 %v2258, %v2366
        %v2368 = vpop.f32.mrf.mxu0
        %v2369 = vpop.f32.mrf.mxu0
        %v2370 = vadd.f32 %v2258, %v2369
        %v2371 = vpop.f32.mrf.mxu0
        %2372 = vmatprep.mubr.bf16.mxu0 0
        %2373 = vmatmul.mubr.bf16.gmra.mxu0 %v2232
        %v2374 = vpop.f32.mrf.mxu0
        %v2375 = vadd.f32 %v2258, %v2374
        %v2376 = vpop.f32.mrf.mxu0
        %v2377 = vpop.f32.mrf.mxu0
        %v2378 = vadd.f32 %v2258, %v2377
        %v2379 = vpop.f32.mrf.mxu0
        %2380 = vmatprep.mubr.bf16.mxu0 0
        %2381 = vmatmul.mubr.bf16.gmra.mxu0 %v2233
        %v2382 = vpop.f32.mrf.mxu0
        %v2383 = vadd.f32 %v2258, %v2382
        %v2384 = vpop.f32.mrf.mxu0
        %v2385 = vpop.f32.mrf.mxu0
        %v2386 = vadd.f32 %v2258, %v2385
        %v2387 = vpop.f32.mrf.mxu0
        %2388 = vmatprep.mubr.bf16.mxu0 0
        %2389 = vmatmul.mubr.bf16.gmra.mxu0 %v2234
        %v2390 = vpop.f32.mrf.mxu0
        %v2391 = vadd.f32 %v2258, %v2390
        %v2392 = vpop.f32.mrf.mxu0
        %v2393 = vpop.f32.mrf.mxu0
        %v2394 = vadd.f32 %v2258, %v2393
        %v2395 = vpop.f32.mrf.mxu0
        %2396 = vmatprep.mubr.bf16.mxu0 0
        %2397 = vmatmul.mubr.bf16.gmra.mxu0 %v2235
        %v2398 = vpop.f32.mrf.mxu0
        %v2399 = vadd.f32 %v2258, %v2398
        %v2400 = vpop.f32.mrf.mxu0
        %v2401 = vpop.f32.mrf.mxu0
        %v2402 = vadd.f32 %v2258, %v2401
        %v2403 = vpop.f32.mrf.mxu0
        %2404 = vmatprep.mubr.bf16.mxu0 0
        %2405 = vmatmul.mubr.bf16.gmra.mxu0 %v2236
        %v2406 = vpop.f32.mrf.mxu0
        %v2407 = vadd.f32 %v2258, %v2406
        %v2408 = vpop.f32.mrf.mxu0
        %v2409 = vpop.f32.mrf.mxu0
        %v2410 = vadd.f32 %v2258, %v2409
        %v2411 = vpop.f32.mrf.mxu0
        %2412 = vdwg.mxu0
        %v2413 = vmax.f32 %v2343, 0.0
        %v2414 = vmax.f32 %v2346, 0.0
        %v2415 = vmax.f32 %v2351, 0.0
        %v2416 = vmax.f32 %v2354, 0.0
        %v2417 = vmax.f32 %v2359, 0.0
        %v2418 = vmax.f32 %v2362, 0.0
        %v2419 = vmax.f32 %v2367, 0.0
        %v2420 = vmax.f32 %v2370, 0.0
        %v2421 = vmax.f32 %v2375, 0.0
        %v2422 = vmax.f32 %v2378, 0.0
        %v2423 = vmax.f32 %v2383, 0.0
        %v2424 = vmax.f32 %v2386, 0.0
        %v2425 = vmax.f32 %v2391, 0.0
        %v2426 = vmax.f32 %v2394, 0.0
        %v2427 = vmax.f32 %v2399, 0.0
        %v2428 = vmax.f32 %v2402, 0.0
        %v2429 = vmax.f32 %v2407, 0.0
        %v2430 = vmax.f32 %v2410, 0.0
        %v2431 = vand.u32 2147483647, %v2343
        %v2432 = vand.u32 2147483647, %v2346
        %v2433 = vand.u32 2147483647, %v2351
        %v2434 = vand.u32 2147483647, %v2354
        %v2435 = vand.u32 2147483647, %v2359
        %v2436 = vand.u32 2147483647, %v2362
        %v2437 = vand.u32 2147483647, %v2367
        %v2438 = vand.u32 2147483647, %v2370
        %v2439 = vand.u32 2147483647, %v2375
        %v2440 = vand.u32 2147483647, %v2378
        %v2441 = vand.u32 2147483647, %v2383
        %v2442 = vand.u32 2147483647, %v2386
        %v2443 = vand.u32 2147483647, %v2391
        %v2444 = vand.u32 2147483647, %v2394
        %v2445 = vand.u32 2147483647, %v2399
        %v2446 = vand.u32 2147483647, %v2402
        %v2447 = vand.u32 2147483647, %v2407
        %v2448 = vand.u32 2147483647, %v2410
        %v2449 = vsub.f32 0.0, %v2431
        %v2450 = vsub.f32 0.0, %v2432
        %v2451 = vsub.f32 0.0, %v2433
        %v2452 = vsub.f32 0.0, %v2434
        %v2453 = vsub.f32 0.0, %v2435
        %v2454 = vsub.f32 0.0, %v2436
        %v2455 = vsub.f32 0.0, %v2437
        %v2456 = vsub.f32 0.0, %v2438
        %v2457 = vsub.f32 0.0, %v2439
        %v2458 = vsub.f32 0.0, %v2440
        %v2459 = vsub.f32 0.0, %v2441
        %v2460 = vsub.f32 0.0, %v2442
        %v2461 = vsub.f32 0.0, %v2443
        %v2462 = vsub.f32 0.0, %v2444
        %v2463 = vsub.f32 0.0, %v2445
        %v2464 = vsub.f32 0.0, %v2446
        %v2465 = vsub.f32 0.0, %v2447
        %v2466 = vsub.f32 0.0, %v2448
        %v2467 = vmul.f32 %v2449, 1.442695
        %v2468 = vpow.pop %v2467
        %v2469 = vmul.f32 %v2450, 1.442695
        %v2470 = vpow.pop %v2469
        %v2471 = vmul.f32 %v2451, 1.442695
        %v2472 = vpow.pop %v2471
        %v2473 = vmul.f32 %v2452, 1.442695
        %v2474 = vpow.pop %v2473
        %v2475 = vmul.f32 %v2453, 1.442695
        %v2476 = vpow.pop %v2475
        %v2477 = vmul.f32 %v2454, 1.442695
        %v2478 = vpow.pop %v2477
        %v2479 = vmul.f32 %v2455, 1.442695
        %v2480 = vpow.pop %v2479
        %v2481 = vmul.f32 %v2456, 1.442695
        %v2482 = vpow.pop %v2481
        %v2483 = vmul.f32 %v2457, 1.442695
        %v2484 = vpow.pop %v2483
        %v2485 = vmul.f32 %v2458, 1.442695
        %v2486 = vpow.pop %v2485
        %v2487 = vmul.f32 %v2459, 1.442695
        %v2488 = vpow.pop %v2487
        %v2489 = vmul.f32 %v2460, 1.442695
        %v2490 = vpow.pop %v2489
        %v2491 = vmul.f32 %v2461, 1.442695
        %v2492 = vpow.pop %v2491
        %v2493 = vmul.f32 %v2462, 1.442695
        %v2494 = vpow.pop %v2493
        %v2495 = vmul.f32 %v2463, 1.442695
        %v2496 = vpow.pop %v2495
        %v2497 = vmul.f32 %v2464, 1.442695
        %v2498 = vpow.pop %v2497
        %v2499 = vmul.f32 %v2465, 1.442695
        %v2500 = vpow.pop %v2499
        %v2501 = vmul.f32 %v2466, 1.442695
        %v2502 = vpow.pop %v2501
        %v2503 = vadd.f32 %v2468, 1.0
        %v2504 = vlog2.pop %v2503
        %v2505 = vmul.f32 %v2504, 0.6931472
        %v2506 = vmul.f32 -0.5, %v2468
        %v2507 = vadd.f32 %v2506, 1.0
        %v2508 = vmul.f32 %v2507, %v2468
        %v2509 = vand.u32 2147483647, %v2468
        %vm2510 = vcmp.lt.f32.partialorder %v2509, 0.0004427343
        %v2511 = vsel %vm2510, %v2508, %v2505
        %v2512 = vadd.f32 %v2470, 1.0
        %v2513 = vlog2.pop %v2512
        %v2514 = vmul.f32 %v2513, 0.6931472
        %v2515 = vmul.f32 -0.5, %v2470
        %v2516 = vadd.f32 %v2515, 1.0
        %v2517 = vmul.f32 %v2516, %v2470
        %v2518 = vand.u32 2147483647, %v2470
        %vm2519 = vcmp.lt.f32.partialorder %v2518, 0.0004427343
        %v2520 = vsel %vm2519, %v2517, %v2514
        %v2521 = vadd.f32 %v2472, 1.0
        %v2522 = vlog2.pop %v2521
        %v2523 = vmul.f32 %v2522, 0.6931472
        %v2524 = vmul.f32 -0.5, %v2472
        %v2525 = vadd.f32 %v2524, 1.0
        %v2526 = vmul.f32 %v2525, %v2472
        %v2527 = vand.u32 2147483647, %v2472
        %vm2528 = vcmp.lt.f32.partialorder %v2527, 0.0004427343
        %v2529 = vsel %vm2528, %v2526, %v2523
        %v2530 = vadd.f32 %v2474, 1.0
        %v2531 = vlog2.pop %v2530
        %v2532 = vmul.f32 %v2531, 0.6931472
        %v2533 = vmul.f32 -0.5, %v2474
        %v2534 = vadd.f32 %v2533, 1.0
        %v2535 = vmul.f32 %v2534, %v2474
        %v2536 = vand.u32 2147483647, %v2474
        %vm2537 = vcmp.lt.f32.partialorder %v2536, 0.0004427343
        %v2538 = vsel %vm2537, %v2535, %v2532
        %v2539 = vadd.f32 %v2476, 1.0
        %v2540 = vlog2.pop %v2539
        %v2541 = vmul.f32 %v2540, 0.6931472
        %v2542 = vmul.f32 -0.5, %v2476
        %v2543 = vadd.f32 %v2542, 1.0
        %v2544 = vmul.f32 %v2543, %v2476
        %v2545 = vand.u32 2147483647, %v2476
        %vm2546 = vcmp.lt.f32.partialorder %v2545, 0.0004427343
        %v2547 = vsel %vm2546, %v2544, %v2541
        %v2548 = vadd.f32 %v2478, 1.0
        %v2549 = vlog2.pop %v2548
        %v2550 = vmul.f32 %v2549, 0.6931472
        %v2551 = vmul.f32 -0.5, %v2478
        %v2552 = vadd.f32 %v2551, 1.0
        %v2553 = vmul.f32 %v2552, %v2478
        %v2554 = vand.u32 2147483647, %v2478
        %vm2555 = vcmp.lt.f32.partialorder %v2554, 0.0004427343
        %v2556 = vsel %vm2555, %v2553, %v2550
        %v2557 = vadd.f32 %v2480, 1.0
        %v2558 = vlog2.pop %v2557
        %v2559 = vmul.f32 %v2558, 0.6931472
        %v2560 = vmul.f32 -0.5, %v2480
        %v2561 = vadd.f32 %v2560, 1.0
        %v2562 = vmul.f32 %v2561, %v2480
        %v2563 = vand.u32 2147483647, %v2480
        %vm2564 = vcmp.lt.f32.partialorder %v2563, 0.0004427343
        %v2565 = vsel %vm2564, %v2562, %v2559
        %v2566 = vadd.f32 %v2482, 1.0
        %v2567 = vlog2.pop %v2566
        %v2568 = vmul.f32 %v2567, 0.6931472
        %v2569 = vmul.f32 -0.5, %v2482
        %v2570 = vadd.f32 %v2569, 1.0
        %v2571 = vmul.f32 %v2570, %v2482
        %v2572 = vand.u32 2147483647, %v2482
        %vm2573 = vcmp.lt.f32.partialorder %v2572, 0.0004427343
        %v2574 = vsel %vm2573, %v2571, %v2568
        %v2575 = vadd.f32 %v2484, 1.0
        %v2576 = vlog2.pop %v2575
        %v2577 = vmul.f32 %v2576, 0.6931472
        %v2578 = vmul.f32 -0.5, %v2484
        %v2579 = vadd.f32 %v2578, 1.0
        %v2580 = vmul.f32 %v2579, %v2484
        %v2581 = vand.u32 2147483647, %v2484
        %vm2582 = vcmp.lt.f32.partialorder %v2581, 0.0004427343
        %v2583 = vsel %vm2582, %v2580, %v2577
        %v2584 = vadd.f32 %v2486, 1.0
        %v2585 = vlog2.pop %v2584
        %v2586 = vmul.f32 %v2585, 0.6931472
        %v2587 = vmul.f32 -0.5, %v2486
        %v2588 = vadd.f32 %v2587, 1.0
        %v2589 = vmul.f32 %v2588, %v2486
        %v2590 = vand.u32 2147483647, %v2486
        %vm2591 = vcmp.lt.f32.partialorder %v2590, 0.0004427343
        %v2592 = vsel %vm2591, %v2589, %v2586
        %v2593 = vadd.f32 %v2488, 1.0
        %v2594 = vlog2.pop %v2593
        %v2595 = vmul.f32 %v2594, 0.6931472
        %v2596 = vmul.f32 -0.5, %v2488
        %v2597 = vadd.f32 %v2596, 1.0
        %v2598 = vmul.f32 %v2597, %v2488
        %v2599 = vand.u32 2147483647, %v2488
        %vm2600 = vcmp.lt.f32.partialorder %v2599, 0.0004427343
        %v2601 = vsel %vm2600, %v2598, %v2595
        %v2602 = vadd.f32 %v2490, 1.0
        %v2603 = vlog2.pop %v2602
        %v2604 = vmul.f32 %v2603, 0.6931472
        %v2605 = vmul.f32 -0.5, %v2490
        %v2606 = vadd.f32 %v2605, 1.0
        %v2607 = vmul.f32 %v2606, %v2490
        %v2608 = vand.u32 2147483647, %v2490
        %vm2609 = vcmp.lt.f32.partialorder %v2608, 0.0004427343
        %v2610 = vsel %vm2609, %v2607, %v2604
        %v2611 = vadd.f32 %v2492, 1.0
        %v2612 = vlog2.pop %v2611
        %v2613 = vmul.f32 %v2612, 0.6931472
        %v2614 = vmul.f32 -0.5, %v2492
        %v2615 = vadd.f32 %v2614, 1.0
        %v2616 = vmul.f32 %v2615, %v2492
        %v2617 = vand.u32 2147483647, %v2492
        %vm2618 = vcmp.lt.f32.partialorder %v2617, 0.0004427343
        %v2619 = vsel %vm2618, %v2616, %v2613
        %v2620 = vadd.f32 %v2494, 1.0
        %v2621 = vlog2.pop %v2620
        %v2622 = vmul.f32 %v2621, 0.6931472
        %v2623 = vmul.f32 -0.5, %v2494
        %v2624 = vadd.f32 %v2623, 1.0
        %v2625 = vmul.f32 %v2624, %v2494
        %v2626 = vand.u32 2147483647, %v2494
        %vm2627 = vcmp.lt.f32.partialorder %v2626, 0.0004427343
        %v2628 = vsel %vm2627, %v2625, %v2622
        %v2629 = vadd.f32 %v2496, 1.0
        %v2630 = vlog2.pop %v2629
        %v2631 = vmul.f32 %v2630, 0.6931472
        %v2632 = vmul.f32 -0.5, %v2496
        %v2633 = vadd.f32 %v2632, 1.0
        %v2634 = vmul.f32 %v2633, %v2496
        %v2635 = vand.u32 2147483647, %v2496
        %vm2636 = vcmp.lt.f32.partialorder %v2635, 0.0004427343
        %v2637 = vsel %vm2636, %v2634, %v2631
        %v2638 = vadd.f32 %v2498, 1.0
        %v2639 = vlog2.pop %v2638
        %v2640 = vmul.f32 %v2639, 0.6931472
        %v2641 = vmul.f32 -0.5, %v2498
        %v2642 = vadd.f32 %v2641, 1.0
        %v2643 = vmul.f32 %v2642, %v2498
        %v2644 = vand.u32 2147483647, %v2498
        %vm2645 = vcmp.lt.f32.partialorder %v2644, 0.0004427343
        %v2646 = vsel %vm2645, %v2643, %v2640
        %v2647 = vadd.f32 %v2500, 1.0
        %v2648 = vlog2.pop %v2647
        %v2649 = vmul.f32 %v2648, 0.6931472
        %v2650 = vmul.f32 -0.5, %v2500
        %v2651 = vadd.f32 %v2650, 1.0
        %v2652 = vmul.f32 %v2651, %v2500
        %v2653 = vand.u32 2147483647, %v2500
        %vm2654 = vcmp.lt.f32.partialorder %v2653, 0.0004427343
        %v2655 = vsel %vm2654, %v2652, %v2649
        %v2656 = vadd.f32 %v2502, 1.0
        %v2657 = vlog2.pop %v2656
        %v2658 = vmul.f32 %v2657, 0.6931472
        %v2659 = vmul.f32 -0.5, %v2502
        %v2660 = vadd.f32 %v2659, 1.0
        %v2661 = vmul.f32 %v2660, %v2502
        %v2662 = vand.u32 2147483647, %v2502
        %vm2663 = vcmp.lt.f32.partialorder %v2662, 0.0004427343
        %v2664 = vsel %vm2663, %v2661, %v2658
        %v2665 = vadd.f32 %v2413, %v2511
        %v2666 = vadd.f32 %v2414, %v2520
        %v2667 = vadd.f32 %v2415, %v2529
        %v2668 = vadd.f32 %v2416, %v2538
        %v2669 = vadd.f32 %v2417, %v2547
        %v2670 = vadd.f32 %v2418, %v2556
        %v2671 = vadd.f32 %v2419, %v2565
        %v2672 = vadd.f32 %v2420, %v2574
        %v2673 = vadd.f32 %v2421, %v2583
        %v2674 = vadd.f32 %v2422, %v2592
        %v2675 = vadd.f32 %v2423, %v2601
        %v2676 = vadd.f32 %v2424, %v2610
        %v2677 = vadd.f32 %v2425, %v2619
        %v2678 = vadd.f32 %v2426, %v2628
        %v2679 = vadd.f32 %v2427, %v2637
        %v2680 = vadd.f32 %v2428, %v2646
        %v2681 = vadd.f32 %v2429, %v2655
        %v2682 = vadd.f32 %v2430, %v2664
        %v2683 = vpack.c.bf16 %v2666, %v2665
        %v2684 = vpack.c.bf16 %v2668, %v2667
        %v2685 = vpack.c.bf16 %v2670, %v2669
        %v2686 = vpack.c.bf16 %v2672, %v2671
        %v2687 = vpack.c.bf16 %v2674, %v2673
        %v2688 = vpack.c.bf16 %v2676, %v2675
        %v2689 = vpack.c.bf16 %v2678, %v2677
        %v2690 = vpack.c.bf16 %v2680, %v2679
        %v2691 = vpack.c.bf16 %v2682, %v2681
        %v2692 = vld [vmem:[#allocation8] sm:$0xf]
        %v2693 = vld [vmem:[#allocation8 + $0x4] sm:$0xf]
        %v2694 = vld [vmem:[#allocation8 + $0x8] sm:$0xf]
        %v2695 = vld [vmem:[#allocation8 + $0xc] sm:$0xf]
        %v2696 = vld [vmem:[#allocation8 + $0x10] sm:$0xf]
        %v2697 = vld [vmem:[#allocation8 + $0x14] sm:$0xf]
        %v2698 = vld [vmem:[#allocation8 + $0x18] sm:$0xf]
        %v2699 = vld [vmem:[#allocation8 + $0x1c] sm:$0xf]
        %v2700 = vld [vmem:[#allocation8 + $0x20] sm:$0xf]
        %v2701 = vld [vmem:[#allocation8 + $0x24] sm:$0xf]
        %v2702 = vld [vmem:[#allocation8 + $0x28] sm:$0xf]
        %v2703 = vld [vmem:[#allocation8 + $0x2c] sm:$0xf]
        %v2704 = vld [vmem:[#allocation8 + $0x30] sm:$0xf]
        %v2705 = vld [vmem:[#allocation8 + $0x34] sm:$0xf]
        %v2706 = vld [vmem:[#allocation8 + $0x38] sm:$0xf]
        %v2707 = vld [vmem:[#allocation8 + $0x3c] sm:$0xf]
        %v2708 = vld [vmem:[%s14] sm:$0x1]
        %v2710 = vlaneseq
        %v2711 = vshrl.u32 %v2710, 7
        %v2712 = vsub.s32 0, %v2711
        %v2713 = vrot.slane %v2708, %v2712
        %v2731 = vunpack.c.l.b16 %v2692
        %v2732 = vunpack.c.l.b16 %v2693
        %v2733 = vunpack.c.l.b16 %v2694
        %v2734 = vunpack.c.l.b16 %v2695
        %v2735 = vunpack.c.l.b16 %v2696
        %v2736 = vunpack.c.l.b16 %v2697
        %v2737 = vunpack.c.l.b16 %v2698
        %v2738 = vunpack.c.l.b16 %v2699
        %v2739 = vunpack.c.l.b16 %v2700
        %v2740 = vunpack.c.l.b16 %v2701
        %v2741 = vunpack.c.l.b16 %v2702
        %v2742 = vunpack.c.l.b16 %v2703
        %v2743 = vunpack.c.l.b16 %v2704
        %v2744 = vunpack.c.l.b16 %v2705
        %v2745 = vunpack.c.l.b16 %v2706
        %v2746 = vunpack.c.l.b16 %v2707
        %v2747 = vpack.c.b16 %v2732, %v2731
        %v2748 = vpack.c.b16 %v2734, %v2733
        %v2749 = vpack.c.b16 %v2736, %v2735
        %v2750 = vpack.c.b16 %v2738, %v2737
        %v2751 = vpack.c.b16 %v2740, %v2739
        %v2752 = vpack.c.b16 %v2742, %v2741
        %v2753 = vpack.c.b16 %v2744, %v2743
        %v2754 = vpack.c.b16 %v2746, %v2745
        %2763 = vmatprep.subr.bf16.mxu0 0
        %2764 = vmatpush1.bf16.msra.mxu0 %v2754
        %2765 = vmatprep.subr.bf16.mxu0 0
        %2766 = vmatpush1.bf16.msra.mxu0 %v2753
        %2767 = vmatprep.subr.bf16.mxu0 0
        %2768 = vmatpush1.bf16.msra.mxu0 %v2752
        %2769 = vmatprep.subr.bf16.mxu0 0
        %2770 = vmatpush1.bf16.msra.mxu0 %v2751
        %2771 = vmatprep.subr.bf16.mxu0 0
        %2772 = vmatpush1.bf16.msra.mxu0 %v2750
        %2773 = vmatprep.subr.bf16.mxu0 0
        %2774 = vmatpush1.bf16.msra.mxu0 %v2749
        %2775 = vmatprep.subr.bf16.mxu0 0
        %2776 = vmatpush1.bf16.msra.mxu0 %v2748
        %2777 = vmatprep.subr.bf16.mxu0 0
        %2778 = vmatpush1.bf16.msra.mxu0 %v2747
        %2779 = vmatprep.subr.bf16.mxu0 0
        %2780 = vmatpush2.bf16.msra.mxu0 0
        %2781 = vmatprep.subr.bf16.mxu0 0
        %2782 = vmatpush2.bf16.msra.mxu0 0
        %2783 = vmatprep.subr.bf16.mxu0 0
        %2784 = vmatpush2.bf16.msra.mxu0 0
        %2785 = vmatprep.subr.bf16.mxu0 0
        %2786 = vmatpush2.bf16.msra.mxu0 0
        %2787 = vmatprep.subr.bf16.mxu0 0
        %2788 = vmatpush2.bf16.msra.mxu0 0
        %2789 = vmatprep.subr.bf16.mxu0 0
        %2790 = vmatpush2.bf16.msra.mxu0 0
        %2791 = vmatprep.subr.bf16.mxu0 0
        %2792 = vmatpush2.bf16.msra.mxu0 0
        %2793 = vmatprep.subr.bf16.mxu0 0
        %2794 = vmatpush2.bf16.msra.mxu0 0
        %2795 = vmatprep.mubr.bf16.mxu0 0
        %2796 = vmatmul.mubr.bf16.gmra.mxu0 %v2683
        %v2797 = vpop.f32.mrf.mxu0
        %v2798 = vadd.f32 %v2713, %v2797
        %v2799 = vpop.f32.mrf.mxu0
        %v2800 = vpop.f32.mrf.mxu0
        %v2801 = vadd.f32 %v2713, %v2800
        %v2802 = vpop.f32.mrf.mxu0
        %2803 = vmatprep.mubr.bf16.mxu0 0
        %2804 = vmatmul.mubr.bf16.gmra.mxu0 %v2684
        %v2805 = vpop.f32.mrf.mxu0
        %v2806 = vadd.f32 %v2713, %v2805
        %v2807 = vpop.f32.mrf.mxu0
        %v2808 = vpop.f32.mrf.mxu0
        %v2809 = vadd.f32 %v2713, %v2808
        %v2810 = vpop.f32.mrf.mxu0
        %2811 = vmatprep.mubr.bf16.mxu0 0
        %2812 = vmatmul.mubr.bf16.gmra.mxu0 %v2685
        %v2813 = vpop.f32.mrf.mxu0
        %v2814 = vadd.f32 %v2713, %v2813
        %v2815 = vpop.f32.mrf.mxu0
        %v2816 = vpop.f32.mrf.mxu0
        %v2817 = vadd.f32 %v2713, %v2816
        %v2818 = vpop.f32.mrf.mxu0
        %2819 = vmatprep.mubr.bf16.mxu0 0
        %2820 = vmatmul.mubr.bf16.gmra.mxu0 %v2686
        %v2821 = vpop.f32.mrf.mxu0
        %v2822 = vadd.f32 %v2713, %v2821
        %v2823 = vpop.f32.mrf.mxu0
        %v2824 = vpop.f32.mrf.mxu0
        %v2825 = vadd.f32 %v2713, %v2824
        %v2826 = vpop.f32.mrf.mxu0
        %2827 = vmatprep.mubr.bf16.mxu0 0
        %2828 = vmatmul.mubr.bf16.gmra.mxu0 %v2687
        %v2829 = vpop.f32.mrf.mxu0
        %v2830 = vadd.f32 %v2713, %v2829
        %v2831 = vpop.f32.mrf.mxu0
        %v2832 = vpop.f32.mrf.mxu0
        %v2833 = vadd.f32 %v2713, %v2832
        %v2834 = vpop.f32.mrf.mxu0
        %2835 = vmatprep.mubr.bf16.mxu0 0
        %2836 = vmatmul.mubr.bf16.gmra.mxu0 %v2688
        %v2837 = vpop.f32.mrf.mxu0
        %v2838 = vadd.f32 %v2713, %v2837
        %v2839 = vpop.f32.mrf.mxu0
        %v2840 = vpop.f32.mrf.mxu0
        %v2841 = vadd.f32 %v2713, %v2840
        %v2842 = vpop.f32.mrf.mxu0
        %2843 = vmatprep.mubr.bf16.mxu0 0
        %2844 = vmatmul.mubr.bf16.gmra.mxu0 %v2689
        %v2845 = vpop.f32.mrf.mxu0
        %v2846 = vadd.f32 %v2713, %v2845
        %v2847 = vpop.f32.mrf.mxu0
        %v2848 = vpop.f32.mrf.mxu0
        %v2849 = vadd.f32 %v2713, %v2848
        %v2850 = vpop.f32.mrf.mxu0
        %2851 = vmatprep.mubr.bf16.mxu0 0
        %2852 = vmatmul.mubr.bf16.gmra.mxu0 %v2690
        %v2853 = vpop.f32.mrf.mxu0
        %v2854 = vadd.f32 %v2713, %v2853
        %v2855 = vpop.f32.mrf.mxu0
        %v2856 = vpop.f32.mrf.mxu0
        %v2857 = vadd.f32 %v2713, %v2856
        %v2858 = vpop.f32.mrf.mxu0
        %2859 = vmatprep.mubr.bf16.mxu0 0
        %2860 = vmatmul.mubr.bf16.gmra.mxu0 %v2691
        %v2861 = vpop.f32.mrf.mxu0
        %v2862 = vadd.f32 %v2713, %v2861
        %v2863 = vpop.f32.mrf.mxu0
        %v2864 = vpop.f32.mrf.mxu0
        %v2865 = vadd.f32 %v2713, %v2864
        %v2866 = vpop.f32.mrf.mxu0
        %2867 = vdwg.mxu0
        %v2868 = vmul.f32 %v2798, 0.5
        %v2869 = vmul.f32 %v2801, 0.5
        %v2870 = vmul.f32 %v2806, 0.5
        %v2871 = vmul.f32 %v2809, 0.5
        %v2872 = vmul.f32 %v2814, 0.5
        %v2873 = vmul.f32 %v2817, 0.5
        %v2874 = vmul.f32 %v2822, 0.5
        %v2875 = vmul.f32 %v2825, 0.5
        %v2876 = vmul.f32 %v2830, 0.5
        %v2877 = vmul.f32 %v2833, 0.5
        %v2878 = vmul.f32 %v2838, 0.5
        %v2879 = vmul.f32 %v2841, 0.5
        %v2880 = vmul.f32 %v2846, 0.5
        %v2881 = vmul.f32 %v2849, 0.5
        %v2882 = vmul.f32 %v2854, 0.5
        %v2883 = vmul.f32 %v2857, 0.5
        %v2884 = vmul.f32 %v2862, 0.5
        %v2885 = vmul.f32 %v2865, 0.5
        %v2886 = vtanh.pop %v2868
        %v2887 = vtanh.pop %v2869
        %v2888 = vtanh.pop %v2870
        %v2889 = vtanh.pop %v2871
        %v2890 = vtanh.pop %v2872
        %v2891 = vtanh.pop %v2873
        %v2892 = vtanh.pop %v2874
        %v2893 = vtanh.pop %v2875
        %v2894 = vtanh.pop %v2876
        %v2895 = vtanh.pop %v2877
        %v2896 = vtanh.pop %v2878
        %v2897 = vtanh.pop %v2879
        %v2898 = vtanh.pop %v2880
        %v2899 = vtanh.pop %v2881
        %v2900 = vtanh.pop %v2882
        %v2901 = vtanh.pop %v2883
        %v2902 = vtanh.pop %v2884
        %v2903 = vtanh.pop %v2885
        %v2904 = vadd.f32 %v2886, 1.0
        %v2905 = vadd.f32 %v2887, 1.0
        %v2906 = vadd.f32 %v2888, 1.0
        %v2907 = vadd.f32 %v2889, 1.0
        %v2908 = vadd.f32 %v2890, 1.0
        %v2909 = vadd.f32 %v2891, 1.0
        %v2910 = vadd.f32 %v2892, 1.0
        %v2911 = vadd.f32 %v2893, 1.0
        %v2912 = vadd.f32 %v2894, 1.0
        %v2913 = vadd.f32 %v2895, 1.0
        %v2914 = vadd.f32 %v2896, 1.0
        %v2915 = vadd.f32 %v2897, 1.0
        %v2916 = vadd.f32 %v2898, 1.0
        %v2917 = vadd.f32 %v2899, 1.0
        %v2918 = vadd.f32 %v2900, 1.0
        %v2919 = vadd.f32 %v2901, 1.0
        %v2920 = vadd.f32 %v2902, 1.0
        %v2921 = vadd.f32 %v2903, 1.0
        %v2922 = vmul.f32 %v2904, 0.5
        %v2923 = vmul.f32 %v2905, 0.5
        %v2924 = vmul.f32 %v2906, 0.5
        %v2925 = vmul.f32 %v2907, 0.5
        %v2926 = vmul.f32 %v2908, 0.5
        %v2927 = vmul.f32 %v2909, 0.5
        %v2928 = vmul.f32 %v2910, 0.5
        %v2929 = vmul.f32 %v2911, 0.5
        %v2930 = vmul.f32 %v2912, 0.5
        %v2931 = vmul.f32 %v2913, 0.5
        %v2932 = vmul.f32 %v2914, 0.5
        %v2933 = vmul.f32 %v2915, 0.5
        %v2934 = vmul.f32 %v2916, 0.5
        %v2935 = vmul.f32 %v2917, 0.5
        %v2936 = vmul.f32 %v2918, 0.5
        %v2937 = vmul.f32 %v2919, 0.5
        %v2938 = vmul.f32 %v2920, 0.5
        %v2939 = vmul.f32 %v2921, 0.5
        %v2940 = vpack.c.bf16 %v2923, %v2922
        %v2941 = vpack.c.bf16 %v2925, %v2924
        %v2942 = vpack.c.bf16 %v2927, %v2926
        %v2943 = vpack.c.bf16 %v2929, %v2928
        %v2944 = vpack.c.bf16 %v2931, %v2930
        %v2945 = vpack.c.bf16 %v2933, %v2932
        %v2946 = vpack.c.bf16 %v2935, %v2934
        %v2947 = vpack.c.bf16 %v2937, %v2936
        %v2948 = vpack.c.bf16 %v2939, %v2938
        %v2958 = vunpack.c.l.b16 %v2940
        %v2959 = vunpack.c.h.b16 %v2940
        %v2960 = vunpack.c.l.b16 %v2941
        %v2961 = vunpack.c.h.b16 %v2941
        %v2962 = vunpack.c.l.b16 %v2942
        %v2963 = vunpack.c.h.b16 %v2942
        %v2964 = vunpack.c.l.b16 %v2943
        %v2965 = vunpack.c.h.b16 %v2943
        %v2966 = vunpack.c.l.b16 %v2944
        %v2967 = vunpack.c.h.b16 %v2944
        %v2968 = vunpack.c.l.b16 %v2945
        %v2969 = vunpack.c.h.b16 %v2945
        %v2970 = vunpack.c.l.b16 %v2946
        %v2971 = vunpack.c.h.b16 %v2946
        %v2972 = vunpack.c.l.b16 %v2947
        %v2973 = vunpack.c.h.b16 %v2947
        %v2974 = vunpack.c.l.b16 %v2948
        %v2975 = vunpack.c.h.b16 %v2948
        %v2976 = vpack.c.b16 %v2958, %v2958
        %v2977 = vpack.c.b16 %v2959, %v2959
        %v2978 = vpack.c.b16 %v2960, %v2960
        %v2979 = vpack.c.b16 %v2961, %v2961
        %v2980 = vpack.c.b16 %v2962, %v2962
        %v2981 = vpack.c.b16 %v2963, %v2963
        %v2982 = vpack.c.b16 %v2964, %v2964
        %v2983 = vpack.c.b16 %v2965, %v2965
        %v2984 = vpack.c.b16 %v2966, %v2966
        %v2985 = vpack.c.b16 %v2967, %v2967
        %v2986 = vpack.c.b16 %v2968, %v2968
        %v2987 = vpack.c.b16 %v2969, %v2969
        %v2988 = vpack.c.b16 %v2970, %v2970
        %v2989 = vpack.c.b16 %v2971, %v2971
        %v2990 = vpack.c.b16 %v2972, %v2972
        %v2991 = vpack.c.b16 %v2973, %v2973
        %v2992 = vpack.c.b16 %v2974, %v2974
        %v2993 = vpack.c.b16 %v2975, %v2975
        %3012 = vst [vmem:[%s545] sm:$0xf] %v2976
        %3013 = vst [vmem:[%s545 + $0x4] sm:$0xf] %v2977
        %3014 = vst [vmem:[%s545 + $0x8] sm:$0xf] %v2978
        %3015 = vst [vmem:[%s545 + $0xc] sm:$0xf] %v2979
        %3016 = vst [vmem:[%s545 + $0x10] sm:$0xf] %v2980
        %3017 = vst [vmem:[%s545 + $0x14] sm:$0xf] %v2981
        %3018 = vst [vmem:[%s545 + $0x18] sm:$0xf] %v2982
        %3019 = vst [vmem:[%s545 + $0x1c] sm:$0xf] %v2983
        %3020 = vst [vmem:[%s545 + $0x20] sm:$0xf] %v2984
        %3021 = vst [vmem:[%s545 + $0x24] sm:$0xf] %v2985
        %3022 = vst [vmem:[%s545 + $0x28] sm:$0xf] %v2986
        %3023 = vst [vmem:[%s545 + $0x2c] sm:$0xf] %v2987
        %3024 = vst [vmem:[%s545 + $0x30] sm:$0xf] %v2988
        %3025 = vst [vmem:[%s545 + $0x34] sm:$0xf] %v2989
        %3026 = vst [vmem:[%s545 + $0x38] sm:$0xf] %v2990
        %3027 = vst [vmem:[%s545 + $0x3c] sm:$0xf] %v2991
        %3028 = vst [vmem:[%s545 + $0x40] sm:$0xf] %v2992
        %3029 = vst [vmem:[%s545 + $0x44] sm:$0xf] %v2993
        %s3030 = sand.u32 %s360, 1
        %s3031 = scalar_lea.sflag [#allocation4], %s3030
        %s3032 = sand.u32 %s360, 1
        %s3033 = smul.addr %s3032, 72
        %s3034 = scalar_lea.vmem [#allocation10], %s3033
        // Predicated region
        $region97: #{tpu_custom_call.1} parent=79 // pred_check
          %p3035 = pneg %p370
        $region98: #{tpu_custom_call.1} parent=79 // pred_check_branch
          %3037 = sbr.rel (%p3035) target = $region100
        $region99: #{tpu_custom_call.1} parent=79 // pred_region
          %s3038 = smul.u32 18, %s32
          %s3040 = ssub.s32 1152, 1152
          %3041 = vsyncadd %s3031, %s3040
          %s3042 = smul.addr %s3038, 64
          %s3043 = scalar_lea.hbm %s15, %s3042
          %s3044 = sshll.u32 %s3034, 4
          %s3045 = int_to_ptr.vmem [resolvable:$true] %s3044
          %3050 = dma.vmem_to_hbm [thread:$0]  %s3045, 1152, %s3043, %s3031, 64, 64, 4
        $region100: #{tpu_custom_call.1} parent=79 // pred_fallthru
          _
      $region80: #{tpu_custom_call.1} parent=5 // pred_fallthru
        _
      %p3051 = scmp.le.s32.totalorder 2, %s27
      // Predicated region
      $region101: #{tpu_custom_call.1} parent=5 // pred_check
        %p3052 = pneg %p3051
      $region102: #{tpu_custom_call.1} parent=5 // pred_check_branch
        %3054 = sbr.rel (%p3052) target = $region104
      $region103: #{tpu_custom_call.1} parent=5 // pred_region
        %s3055 = ssub.s32 %s27, 2
        // Predicated region
        $region105: #{tpu_custom_call.1} parent=103 // pred_check
          %p3056 = pneg %p376
        $region106: #{tpu_custom_call.1} parent=103 // pred_check_branch
          %3058 = sbr.rel (%p3056) target = $region108
        $region107: #{tpu_custom_call.1} parent=103 // pred_region
          %s3059 = sand.u32 %s361, 1
          %s3060 = scalar_lea.sflag [#allocation4], %s3059
          %s3061 = sand.u32 %s361, 1
          %s3062 = smul.addr %s3061, 72
          %s3063 = scalar_lea.vmem [#allocation10], %s3062
          %3064 = dma.done %s3060, 1152
        $region108: #{tpu_custom_call.1} parent=103 // pred_fallthru
          _
      $region104: #{tpu_custom_call.1} parent=5 // pred_fallthru
        _
    $region6: #{tpu_custom_call.1} parent=1 // loop_footer
      %s31 = sadd.s32 1, %s27
    $region7: #{tpu_custom_call.1} parent=1 // loop_footer_branch
      %26 = sbr.rel target = $region3
    $region8: #{tpu_custom_call.1} parent=1 // loop_exit
      _
    %3065 = vsyncpa [#allocation3], 1
    %s3066 = scalar_lea.sflag [#allocation3], 1
    %3067 = vsyncpa %s3066, 1
    %3068 = vsyncpa [#allocation6], 1
    %3069 = vsyncpa [#allocation9], 1
    %3070 = vsyncpa [#allocation4], 1
    %s3071 = scalar_lea.sflag [#allocation4], 1
    %3072 = vsyncpa %s3071, 1

</llo_original>
